<compile_context>
chip_gen: v7x
topology: tpu7x:2x2x1
jax: 0.10.0
libtpu: 0.0.40
codegen_flags: <defaults>
</compile_context>

<pallas_src>
import numpy as np
import jax
import jax.numpy as jnp
from jax.experimental import pallas as pl
from jax.experimental.pallas import tpu as pltpu


def _round_up(x, m):
    return (x + m - 1) // m * m


def vision_net_forward(x, conv_w, conv_b, fc_w, fc_b, images_per_step=8):
    """x: (B, C, H, W) float32 NCHW.  Returns (B, D) float32 embeddings."""
    B, C, H, W = x.shape
    C_mid = conv_w.shape[0]
    D = fc_w.shape[1]

    CP = _round_up(C_mid, 128)              # conv channels padded to lane width
    DP = _round_up(D, 128)                  # embedding dim padded to lane width

    Hp, Wp = H + 2, W + 2                   # spatially zero-padded dims (pad=1)
    HWp = Hp * Wp

    Bt = min(B, images_per_step)            # images per grid step
    nb = -(-B // Bt)                        # grid steps (>=2 shards on v7x's 2 TCs)
    B_pad = nb * Bt

    Rc = Bt * HWp                           # conv-output rows per grid step
    lead = W + 3                            # zero rows so every shifted slice is in-bounds
    Rb = _round_up(lead + Rc + (W + 3), 16)  # input-block rows (bf16 sublane tile)

    # ---- wrapper-side layout (single cheap pass over the input) ------------
    # NCHW -> NHWC, pad border, flatten each padded image row-major, group Bt
    # images per grid step, add lead/tail zero rows.  ~1.3x raw input bytes
    # (and bf16 halves that) instead of the 9x f32 im2col array.
    x_nhwc = jnp.transpose(x, (0, 2, 3, 1))
    x_padded = jnp.pad(x_nhwc, ((0, B_pad - B), (1, 1), (1, 1), (0, 0)))
    x_tiles = x_padded.reshape(nb, Rc, C)
    x_tiles = jnp.pad(x_tiles, ((0, 0), (lead, Rb - lead - Rc), (0, 0)))
    x_in = x_tiles.reshape(nb * Rb, C).astype(jnp.bfloat16)

    # per-tap conv weights: tap (kh, kw) -> (C, CP), zero-padded to 128 lanes.
    w_taps = jnp.transpose(conv_w, (2, 3, 1, 0)).reshape(9, C, C_mid)
    w_taps = jnp.pad(w_taps, ((0, 0), (0, 0), (0, CP - C_mid))).astype(jnp.bfloat16)
    cb = jnp.pad(conv_b, (0, CP - C_mid)).reshape(1, CP).astype(jnp.float32)
    fcw = jnp.pad(fc_w, ((0, CP - C_mid), (0, DP - D))).astype(jnp.float32)
    fcb = jnp.pad(fc_b, (0, DP - D)).reshape(1, DP).astype(jnp.float32)

    # pooling matrix: pooled[b] = mean over the H*W interior conv rows of image b
    # (border / lead rows get weight 0, so their garbage conv values are discarded).
    pool = np.zeros((Bt, Rc), np.float32)
    inv_hw = 1.0 / (H * W)
    for b in range(Bt):
        for i in range(1, H + 1):
            base = b * HWp + i * Wp + 1
            pool[b, base:base + W] = inv_hw
    pool = jnp.asarray(pool)

    def kernel(x_ref, w_ref, cb_ref, pool_ref, fcw_ref, fcb_ref, out_ref):
        # x_ref:    (Rb, C)    bf16  padded & flattened pixels (Bt images)
        # w_ref:    (9, C, CP) bf16  per-tap conv weights
        # cb_ref:   (1, CP)    f32   conv bias (zero-padded)
        # pool_ref: (Bt, Rc)   f32   global-average-pool matrix
        # fcw_ref:  (CP, DP)   f32   fc weight,  fcb_ref: (1, DP) f32 fc bias
        # out_ref:  (Bt, DP)   f32   lane-dense output block
        xf = x_ref[...].astype(jnp.float32)          # keep elementwise work in f32
        acc = None
        for kh in range(3):
            for kw in range(3):
                start = kh * Wp + kw                 # static row offset for this tap
                slab = xf[start:start + Rc, :].astype(jnp.bfloat16)
                part = jnp.dot(slab, w_ref[kh * 3 + kw],
                               preferred_element_type=jnp.float32)
                acc = part if acc is None else acc + part
        conv = jnp.maximum(acc + cb_ref[...], 0.0)   # (Rc, CP) f32, bias + ReLU
        pooled = jnp.dot(pool_ref[...], conv,
                         preferred_element_type=jnp.float32)   # (Bt, CP) GAP via MXU
        out = jnp.dot(pooled, fcw_ref[...],
                      preferred_element_type=jnp.float32)      # (Bt, DP)
        out_ref[...] = out + fcb_ref[...]

    out = pl.pallas_call(
        kernel,
        out_shape=jax.ShapeDtypeStruct((B_pad, DP), jnp.float32),
        grid_spec=pltpu.PrefetchScalarGridSpec(
            num_scalar_prefetch=0,
            grid=(nb,),
            in_specs=[
                pl.BlockSpec((Rb, C), lambda i: (i, 0)),
                pl.BlockSpec((9, C, CP), lambda i: (0, 0, 0)),
                pl.BlockSpec((1, CP), lambda i: (0, 0)),
                pl.BlockSpec((Bt, Rc), lambda i: (0, 0)),
                pl.BlockSpec((CP, DP), lambda i: (0, 0)),
                pl.BlockSpec((1, DP), lambda i: (0, 0)),
            ],
            out_specs=pl.BlockSpec((Bt, DP), lambda i: (i, 0)),
        ),
        compiler_params=pltpu.CompilerParams(
            dimension_semantics=("parallel",)),
    )(x_in, w_taps, cb, pool, fcw, fcb)

    return out[:B, :D]


def _reference(x, conv_w, conv_b, fc_w, fc_b):
    """Plain-JAX reference with the same bf16 quantization of x / conv_w."""
    xq = x.astype(jnp.bfloat16).astype(jnp.float32)
    wq = conv_w.astype(jnp.bfloat16).astype(jnp.float32)
    conv = jax.lax.conv_general_dilated(
        xq, wq, window_strides=(1, 1), padding="SAME",
        dimension_numbers=("NCHW", "OIHW", "NCHW"),
        precision=jax.lax.Precision.HIGHEST)
    conv = jnp.maximum(conv + conv_b[None, :, None, None], 0.0)
    pooled = jnp.mean(conv, axis=(2, 3))                        # (B, C_mid)
    return jnp.dot(pooled, fc_w,
                   precision=jax.lax.Precision.HIGHEST) + fc_b[None, :]


if __name__ == "__main__":
    key = jax.random.PRNGKey(0)
    k_x, k_cw, k_cb, k_fw, k_fb = jax.random.split(key, 5)

    B, C, H, W = 2, 4, 16, 16
    C_mid, D = 8, 32

    x = jax.random.normal(k_x, (B, C, H, W), dtype=jnp.float32)
    conv_w = jax.random.normal(k_cw, (C_mid, C, 3, 3), dtype=jnp.float32) * 0.1
    conv_b = jax.random.normal(k_cb, (C_mid,), dtype=jnp.float32) * 0.1
    fc_w = jax.random.normal(k_fw, (C_mid, D), dtype=jnp.float32) * 0.1
    fc_b = jax.random.normal(k_fb, (D,), dtype=jnp.float32) * 0.1

    out = vision_net_forward(x, conv_w, conv_b, fc_w, fc_b)
    out = jax.block_until_ready(out)

    ref = _reference(x, conv_w, conv_b, fc_w, fc_b)
    assert out.shape == (B, D)
    # bf16 quantization is matched in the reference; residual difference is
    # f32 accumulation-order only, so this tolerance has ample margin.
    assert jnp.allclose(out, ref, atol=2e-3, rtol=2e-3), "mismatch vs reference"

    print("KERNEL_OK")
</pallas_src>

<mosaic_0001>
module attributes {stable_mosaic.version = 11 : i64} {
  func.func @kernel(%arg0: i32, %arg1: memref<688x4xbf16, #tpu.memory_space<vmem>>, %arg2: memref<9x4x128xbf16, #tpu.memory_space<vmem>>, %arg3: memref<1x128xf32, #tpu.memory_space<vmem>>, %arg4: memref<2x648xf32, #tpu.memory_space<vmem>>, %arg5: memref<128x128xf32, #tpu.memory_space<vmem>>, %arg6: memref<1x128xf32, #tpu.memory_space<vmem>>, %arg7: memref<2x128xf32, #tpu.memory_space<vmem>>) attributes {dimension_semantics = [#tpu.dimension_semantics<parallel>], iteration_bounds = array<i64: 1>, scalar_prefetch = 0 : i64, scratch_operands = 0 : i64, tpu.core_type = #tpu.core_type<tc>, window_params = [{transform_indices = @transform_0, window_bounds = array<i64: 688, 4>}, {pipeline_mode = #tpu.pipeline_mode<synchronous>, transform_indices = @transform_1, window_bounds = array<i64: 9, 4, 128>}, {pipeline_mode = #tpu.pipeline_mode<synchronous>, transform_indices = @transform_2, window_bounds = array<i64: 1, 128>}, {pipeline_mode = #tpu.pipeline_mode<synchronous>, transform_indices = @transform_3, window_bounds = array<i64: 2, 648>}, {pipeline_mode = #tpu.pipeline_mode<synchronous>, transform_indices = @transform_4, window_bounds = array<i64: 128, 128>}, {pipeline_mode = #tpu.pipeline_mode<synchronous>, transform_indices = @transform_5, window_bounds = array<i64: 1, 128>}, {transform_indices = @transform_6, window_bounds = array<i64: 2, 128>}]} {
    %c0 = arith.constant 0 : index
    %c0_0 = arith.constant 0 : index
    %0 = vector.load %arg1[%c0, %c0_0] : memref<688x4xbf16, #tpu.memory_space<vmem>>, vector<688x4xbf16>
    %1 = arith.extf %0 : vector<688x4xbf16> to vector<688x4xf32>
    %2 = vector.extract_strided_slice %1 {offsets = [0, 0], sizes = [648, 4], strides = [1, 1]} : vector<688x4xf32> to vector<648x4xf32>
    %3 = arith.truncf %2 : vector<648x4xf32> to vector<648x4xbf16>
    %c0_1 = arith.constant 0 : index
    %c0_2 = arith.constant 0 : index
    %c0_3 = arith.constant 0 : index
    %4 = vector.load %arg2[%c0_1, %c0_2, %c0_3] : memref<9x4x128xbf16, #tpu.memory_space<vmem>>, vector<1x4x128xbf16>
    %5 = vector.shape_cast %4 : vector<1x4x128xbf16> to vector<4x128xbf16>
    %cst = arith.constant dense<0.000000e+00> : vector<648x128xf32>
    %6 = tpu.matmul %3, %5, %cst {dimension_numbers = #tpu.dot_dimension_numbers<[1], [0], [0], [1], [0, 0, 1, 1], [], []>} : vector<648x4xbf16>, vector<4x128xbf16>, vector<648x128xf32> -> vector<648x128xf32>
    %7 = vector.extract_strided_slice %1 {offsets = [1, 0], sizes = [648, 4], strides = [1, 1]} : vector<688x4xf32> to vector<648x4xf32>
    %8 = arith.truncf %7 : vector<648x4xf32> to vector<648x4xbf16>
    %c1 = arith.constant 1 : index
    %c0_4 = arith.constant 0 : index
    %c0_5 = arith.constant 0 : index
    %9 = vector.load %arg2[%c1, %c0_4, %c0_5] : memref<9x4x128xbf16, #tpu.memory_space<vmem>>, vector<1x4x128xbf16>
    %10 = vector.shape_cast %9 : vector<1x4x128xbf16> to vector<4x128xbf16>
    %cst_6 = arith.constant dense<0.000000e+00> : vector<648x128xf32>
    %11 = tpu.matmul %8, %10, %cst_6 {dimension_numbers = #tpu.dot_dimension_numbers<[1], [0], [0], [1], [0, 0, 1, 1], [], []>} : vector<648x4xbf16>, vector<4x128xbf16>, vector<648x128xf32> -> vector<648x128xf32>
    %12 = arith.addf %6, %11 : vector<648x128xf32>
    %13 = vector.extract_strided_slice %1 {offsets = [2, 0], sizes = [648, 4], strides = [1, 1]} : vector<688x4xf32> to vector<648x4xf32>
    %14 = arith.truncf %13 : vector<648x4xf32> to vector<648x4xbf16>
    %c2 = arith.constant 2 : index
    %c0_7 = arith.constant 0 : index
    %c0_8 = arith.constant 0 : index
    %15 = vector.load %arg2[%c2, %c0_7, %c0_8] : memref<9x4x128xbf16, #tpu.memory_space<vmem>>, vector<1x4x128xbf16>
    %16 = vector.shape_cast %15 : vector<1x4x128xbf16> to vector<4x128xbf16>
    %cst_9 = arith.constant dense<0.000000e+00> : vector<648x128xf32>
    %17 = tpu.matmul %14, %16, %cst_9 {dimension_numbers = #tpu.dot_dimension_numbers<[1], [0], [0], [1], [0, 0, 1, 1], [], []>} : vector<648x4xbf16>, vector<4x128xbf16>, vector<648x128xf32> -> vector<648x128xf32>
    %18 = arith.addf %12, %17 : vector<648x128xf32>
    %19 = vector.extract_strided_slice %1 {offsets = [18, 0], sizes = [648, 4], strides = [1, 1]} : vector<688x4xf32> to vector<648x4xf32>
    %20 = arith.truncf %19 : vector<648x4xf32> to vector<648x4xbf16>
    %c3 = arith.constant 3 : index
    %c0_10 = arith.constant 0 : index
    %c0_11 = arith.constant 0 : index
    %21 = vector.load %arg2[%c3, %c0_10, %c0_11] : memref<9x4x128xbf16, #tpu.memory_space<vmem>>, vector<1x4x128xbf16>
    %22 = vector.shape_cast %21 : vector<1x4x128xbf16> to vector<4x128xbf16>
    %cst_12 = arith.constant dense<0.000000e+00> : vector<648x128xf32>
    %23 = tpu.matmul %20, %22, %cst_12 {dimension_numbers = #tpu.dot_dimension_numbers<[1], [0], [0], [1], [0, 0, 1, 1], [], []>} : vector<648x4xbf16>, vector<4x128xbf16>, vector<648x128xf32> -> vector<648x128xf32>
    %24 = arith.addf %18, %23 : vector<648x128xf32>
    %25 = vector.extract_strided_slice %1 {offsets = [19, 0], sizes = [648, 4], strides = [1, 1]} : vector<688x4xf32> to vector<648x4xf32>
    %26 = arith.truncf %25 : vector<648x4xf32> to vector<648x4xbf16>
    %c4 = arith.constant 4 : index
    %c0_13 = arith.constant 0 : index
    %c0_14 = arith.constant 0 : index
    %27 = vector.load %arg2[%c4, %c0_13, %c0_14] : memref<9x4x128xbf16, #tpu.memory_space<vmem>>, vector<1x4x128xbf16>
    %28 = vector.shape_cast %27 : vector<1x4x128xbf16> to vector<4x128xbf16>
    %cst_15 = arith.constant dense<0.000000e+00> : vector<648x128xf32>
    %29 = tpu.matmul %26, %28, %cst_15 {dimension_numbers = #tpu.dot_dimension_numbers<[1], [0], [0], [1], [0, 0, 1, 1], [], []>} : vector<648x4xbf16>, vector<4x128xbf16>, vector<648x128xf32> -> vector<648x128xf32>
    %30 = arith.addf %24, %29 : vector<648x128xf32>
    %31 = vector.extract_strided_slice %1 {offsets = [20, 0], sizes = [648, 4], strides = [1, 1]} : vector<688x4xf32> to vector<648x4xf32>
    %32 = arith.truncf %31 : vector<648x4xf32> to vector<648x4xbf16>
    %c5 = arith.constant 5 : index
    %c0_16 = arith.constant 0 : index
    %c0_17 = arith.constant 0 : index
    %33 = vector.load %arg2[%c5, %c0_16, %c0_17] : memref<9x4x128xbf16, #tpu.memory_space<vmem>>, vector<1x4x128xbf16>
    %34 = vector.shape_cast %33 : vector<1x4x128xbf16> to vector<4x128xbf16>
    %cst_18 = arith.constant dense<0.000000e+00> : vector<648x128xf32>
    %35 = tpu.matmul %32, %34, %cst_18 {dimension_numbers = #tpu.dot_dimension_numbers<[1], [0], [0], [1], [0, 0, 1, 1], [], []>} : vector<648x4xbf16>, vector<4x128xbf16>, vector<648x128xf32> -> vector<648x128xf32>
    %36 = arith.addf %30, %35 : vector<648x128xf32>
    %37 = vector.extract_strided_slice %1 {offsets = [36, 0], sizes = [648, 4], strides = [1, 1]} : vector<688x4xf32> to vector<648x4xf32>
    %38 = arith.truncf %37 : vector<648x4xf32> to vector<648x4xbf16>
    %c6 = arith.constant 6 : index
    %c0_19 = arith.constant 0 : index
    %c0_20 = arith.constant 0 : index
    %39 = vector.load %arg2[%c6, %c0_19, %c0_20] : memref<9x4x128xbf16, #tpu.memory_space<vmem>>, vector<1x4x128xbf16>
    %40 = vector.shape_cast %39 : vector<1x4x128xbf16> to vector<4x128xbf16>
    %cst_21 = arith.constant dense<0.000000e+00> : vector<648x128xf32>
    %41 = tpu.matmul %38, %40, %cst_21 {dimension_numbers = #tpu.dot_dimension_numbers<[1], [0], [0], [1], [0, 0, 1, 1], [], []>} : vector<648x4xbf16>, vector<4x128xbf16>, vector<648x128xf32> -> vector<648x128xf32>
    %42 = arith.addf %36, %41 : vector<648x128xf32>
    %43 = vector.extract_strided_slice %1 {offsets = [37, 0], sizes = [648, 4], strides = [1, 1]} : vector<688x4xf32> to vector<648x4xf32>
    %44 = arith.truncf %43 : vector<648x4xf32> to vector<648x4xbf16>
    %c7 = arith.constant 7 : index
    %c0_22 = arith.constant 0 : index
    %c0_23 = arith.constant 0 : index
    %45 = vector.load %arg2[%c7, %c0_22, %c0_23] : memref<9x4x128xbf16, #tpu.memory_space<vmem>>, vector<1x4x128xbf16>
    %46 = vector.shape_cast %45 : vector<1x4x128xbf16> to vector<4x128xbf16>
    %cst_24 = arith.constant dense<0.000000e+00> : vector<648x128xf32>
    %47 = tpu.matmul %44, %46, %cst_24 {dimension_numbers = #tpu.dot_dimension_numbers<[1], [0], [0], [1], [0, 0, 1, 1], [], []>} : vector<648x4xbf16>, vector<4x128xbf16>, vector<648x128xf32> -> vector<648x128xf32>
    %48 = arith.addf %42, %47 : vector<648x128xf32>
    %49 = vector.extract_strided_slice %1 {offsets = [38, 0], sizes = [648, 4], strides = [1, 1]} : vector<688x4xf32> to vector<648x4xf32>
    %50 = arith.truncf %49 : vector<648x4xf32> to vector<648x4xbf16>
    %c8 = arith.constant 8 : index
    %c0_25 = arith.constant 0 : index
    %c0_26 = arith.constant 0 : index
    %51 = vector.load %arg2[%c8, %c0_25, %c0_26] : memref<9x4x128xbf16, #tpu.memory_space<vmem>>, vector<1x4x128xbf16>
    %52 = vector.shape_cast %51 : vector<1x4x128xbf16> to vector<4x128xbf16>
    %cst_27 = arith.constant dense<0.000000e+00> : vector<648x128xf32>
    %53 = tpu.matmul %50, %52, %cst_27 {dimension_numbers = #tpu.dot_dimension_numbers<[1], [0], [0], [1], [0, 0, 1, 1], [], []>} : vector<648x4xbf16>, vector<4x128xbf16>, vector<648x128xf32> -> vector<648x128xf32>
    %54 = arith.addf %48, %53 : vector<648x128xf32>
    %c0_28 = arith.constant 0 : index
    %c0_29 = arith.constant 0 : index
    %55 = vector.load %arg3[%c0_28, %c0_29] : memref<1x128xf32, #tpu.memory_space<vmem>>, vector<1x128xf32>
    %56 = vector.broadcast %55 : vector<1x128xf32> to vector<648x128xf32>
    %57 = arith.addf %54, %56 : vector<648x128xf32>
    %cst_30 = arith.constant 0.000000e+00 : f32
    %58 = vector.broadcast %cst_30 : f32 to vector<648x128xf32>
    %59 = arith.maximumf %57, %58 : vector<648x128xf32>
    %c0_31 = arith.constant 0 : index
    %c0_32 = arith.constant 0 : index
    %60 = vector.load %arg4[%c0_31, %c0_32] : memref<2x648xf32, #tpu.memory_space<vmem>>, vector<2x648xf32>
    %cst_33 = arith.constant dense<0.000000e+00> : vector<2x128xf32>
    %61 = tpu.matmul %60, %59, %cst_33 {dimension_numbers = #tpu.dot_dimension_numbers<[1], [0], [0], [1], [0, 0, 1, 1], [], []>} : vector<2x648xf32>, vector<648x128xf32>, vector<2x128xf32> -> vector<2x128xf32>
    %c0_34 = arith.constant 0 : index
    %c0_35 = arith.constant 0 : index
    %62 = vector.load %arg5[%c0_34, %c0_35] : memref<128x128xf32, #tpu.memory_space<vmem>>, vector<128x128xf32>
    %cst_36 = arith.constant dense<0.000000e+00> : vector<2x128xf32>
    %63 = tpu.matmul %61, %62, %cst_36 {dimension_numbers = #tpu.dot_dimension_numbers<[1], [0], [0], [1], [0, 0, 1, 1], [], []>} : vector<2x128xf32>, vector<128x128xf32>, vector<2x128xf32> -> vector<2x128xf32>
    %c0_37 = arith.constant 0 : index
    %c0_38 = arith.constant 0 : index
    %64 = vector.load %arg6[%c0_37, %c0_38] : memref<1x128xf32, #tpu.memory_space<vmem>>, vector<1x128xf32>
    %65 = vector.broadcast %64 : vector<1x128xf32> to vector<2x128xf32>
    %66 = arith.addf %63, %65 : vector<2x128xf32>
    %c0_39 = arith.constant 0 : index
    %c0_40 = arith.constant 0 : index
    %67 = vector.load %arg7[%c0_39, %c0_40] : memref<2x128xf32, #tpu.memory_space<vmem>>, vector<2x128xf32>
    tpu.vector_store %arg7[%c0_39, %c0_40], %66 {strides = array<i32>} : memref<2x128xf32, #tpu.memory_space<vmem>>, vector<2x128xf32>,
    return
  }
  func.func @transform_0(%arg0: i32) -> (i32, i32) {
    %c0_i32 = arith.constant 0 : i32
    %c0_i32_0 = arith.constant 0 : i32
    return %arg0, %c0_i32 : i32, i32
  }
  func.func @transform_1(%arg0: i32) -> (i32, i32, i32) {
    %c0_i32 = arith.constant 0 : i32
    %c0_i32_0 = arith.constant 0 : i32
    %c0_i32_1 = arith.constant 0 : i32
    %c0_i32_2 = arith.constant 0 : i32
    return %c0_i32, %c0_i32_0, %c0_i32_1 : i32, i32, i32
  }
  func.func @transform_2(%arg0: i32) -> (i32, i32) {
    %c0_i32 = arith.constant 0 : i32
    %c0_i32_0 = arith.constant 0 : i32
    %c0_i32_1 = arith.constant 0 : i32
    return %c0_i32, %c0_i32_0 : i32, i32
  }
  func.func @transform_3(%arg0: i32) -> (i32, i32) {
    %c0_i32 = arith.constant 0 : i32
    %c0_i32_0 = arith.constant 0 : i32
    %c0_i32_1 = arith.constant 0 : i32
    return %c0_i32, %c0_i32_0 : i32, i32
  }
  func.func @transform_4(%arg0: i32) -> (i32, i32) {
    %c0_i32 = arith.constant 0 : i32
    %c0_i32_0 = arith.constant 0 : i32
    %c0_i32_1 = arith.constant 0 : i32
    return %c0_i32, %c0_i32_0 : i32, i32
  }
  func.func @transform_5(%arg0: i32) -> (i32, i32) {
    %c0_i32 = arith.constant 0 : i32
    %c0_i32_0 = arith.constant 0 : i32
    %c0_i32_1 = arith.constant 0 : i32
    return %c0_i32, %c0_i32_0 : i32, i32
  }
  func.func @transform_6(%arg0: i32) -> (i32, i32) {
    %c0_i32 = arith.constant 0 : i32
    %c0_i32_0 = arith.constant 0 : i32
    return %arg0, %c0_i32 : i32, i32
  }
}

</mosaic_0001>

<llo_original>
// kernel: tpu_custom_call.1
$region0: #{tpu_custom_call.1}
  #allocation0 [shape = 'u32[]', space=smem, size = 0x4, offset = 0x4, fixed_abs, tag = 'smem constant byte address 0x4 - core index']
  #allocation1 [shape = 'u32[144,128]{1,0:T(1,128)}', space=vmem, size = 0x12000, scoped, tag = 'internal scratch']
  %s0 = inlined_call_operand.vmem [shape: bf16[688,4], index: 0, kind: input, shape index: {}]
  %s1 = inlined_call_operand.vmem [shape: bf16[9,4,128], index: 1, kind: input, shape index: {}]
  %s2 = inlined_call_operand.vmem [shape: f32[1,128], index: 2, kind: input, shape index: {}]
  %s3 = inlined_call_operand.vmem [shape: f32[2,648], index: 3, kind: input, shape index: {}]
  %s4 = inlined_call_operand.vmem [shape: f32[128,128], index: 4, kind: input, shape index: {}]
  %s5 = inlined_call_operand.vmem [shape: f32[1,128], index: 5, kind: input, shape index: {}]
  %s6 = inlined_call_operand.hbm [shape: f32[2,128], index: 6, kind: output, shape index: {}]
  %s7 = sld [smem:[#allocation0]]
  $region34: #{tpu_custom_call.1} parent=0
    _
  %s9 = ssub.s32 1, %s7
  %s10 = scalar_select 0, %s9, %s7
  $region1: #{tpu_custom_call.1} parent=0
    #allocation2 [shape = 'u8[1024]{0}', space=vmem, size = 0x400, scoped, tag = 'output window, operand 0, single buffered']
    #allocation3 [shape = 's32[1]{0}', space=sflag, size = 0x4, scoped, tag = 'scoped memory for tpu_custom_call.1']
    %11 = vsyncpa [#allocation3], 0
    // Predicated region
    $region2: #{tpu_custom_call.1} parent=1 // pred_check
      _
    $region3: #{tpu_custom_call.1} parent=1 // pred_check_branch
      %13 = sbr.rel (0) target = $region5
    $region4: #{tpu_custom_call.1} parent=1 // pred_region
      _
    $region5: #{tpu_custom_call.1} parent=1 // pred_fallthru
      _
    // Predicated region
    $region6: #{tpu_custom_call.1} parent=1 // pred_check
      _
    $region7: #{tpu_custom_call.1} parent=1 // pred_check_branch
      %15 = sbr.rel (0) target = $region9
    $region8: #{tpu_custom_call.1} parent=1 // pred_region
      _
    $region9: #{tpu_custom_call.1} parent=1 // pred_fallthru
      _
    // Predicated region
    $region10: #{tpu_custom_call.1} parent=1 // pred_check
      _
    $region11: #{tpu_custom_call.1} parent=1 // pred_check_branch
      %17 = sbr.rel (0) target = $region13
    $region12: #{tpu_custom_call.1} parent=1 // pred_region
      _
    $region13: #{tpu_custom_call.1} parent=1 // pred_fallthru
      _
    // Predicated region
    $region14: #{tpu_custom_call.1} parent=1 // pred_check
      _
    $region15: #{tpu_custom_call.1} parent=1 // pred_check_branch
      %19 = sbr.rel (0) target = $region17
    $region16: #{tpu_custom_call.1} parent=1 // pred_region
      _
    $region17: #{tpu_custom_call.1} parent=1 // pred_fallthru
      _
    // Predicated region
    $region18: #{tpu_custom_call.1} parent=1 // pred_check
      _
    $region19: #{tpu_custom_call.1} parent=1 // pred_check_branch
      %21 = sbr.rel (0) target = $region21
    $region20: #{tpu_custom_call.1} parent=1 // pred_region
      _
    $region21: #{tpu_custom_call.1} parent=1 // pred_fallthru
      _
    // Predicated region
    $region22: #{tpu_custom_call.1} parent=1 // pred_check
      _
    $region23: #{tpu_custom_call.1} parent=1 // pred_check_branch
      %23 = sbr.rel (0) target = $region25
    $region24: #{tpu_custom_call.1} parent=1 // pred_region
      _
    $region25: #{tpu_custom_call.1} parent=1 // pred_fallthru
      _
    %v25 = vld [vmem:[%s0] sm:$0xf]
    %v26 = vld [vmem:[%s0 + $0x4] sm:$0xf]
    %v27 = vld [vmem:[%s0 + $0x8] sm:$0xf]
    %v28 = vld [vmem:[%s0 + $0xc] sm:$0xf]
    %v29 = vld [vmem:[%s0 + $0x10] sm:$0xf]
    %v30 = vld [vmem:[%s0 + $0x14] sm:$0xf]
    %v31 = vld [vmem:[%s0 + $0x18] sm:$0xf]
    %v32 = vld [vmem:[%s0 + $0x1c] sm:$0xf]
    %v33 = vld [vmem:[%s0 + $0x20] sm:$0xf]
    %v34 = vld [vmem:[%s0 + $0x24] sm:$0xf]
    %v35 = vld [vmem:[%s0 + $0x28] sm:$0xf]
    %v36 = vld [vmem:[%s0 + $0x2c] sm:$0xf]
    %v37 = vld [vmem:[%s0 + $0x30] sm:$0xf]
    %v38 = vld [vmem:[%s0 + $0x34] sm:$0xf]
    %v39 = vld [vmem:[%s0 + $0x38] sm:$0xf]
    %v40 = vld [vmem:[%s0 + $0x3c] sm:$0xf]
    %v41 = vld [vmem:[%s0 + $0x40] sm:$0xf]
    %v42 = vld [vmem:[%s0 + $0x44] sm:$0xf]
    %v43 = vld [vmem:[%s0 + $0x48] sm:$0xf]
    %v44 = vld [vmem:[%s0 + $0x4c] sm:$0xf]
    %v45 = vld [vmem:[%s0 + $0x50] sm:$0xf]
    %v46 = vld [vmem:[%s0 + $0x54] sm:$0xf]
    %v47 = vld [vmem:[%s0 + $0x58] sm:$0xf]
    %v48 = vld [vmem:[%s0 + $0x5c] sm:$0xf]
    %v49 = vld [vmem:[%s0 + $0x60] sm:$0xf]
    %v50 = vld [vmem:[%s0 + $0x64] sm:$0xf]
    %v51 = vld [vmem:[%s0 + $0x68] sm:$0xf]
    %v52 = vld [vmem:[%s0 + $0x6c] sm:$0xf]
    %v53 = vld [vmem:[%s0 + $0x70] sm:$0xf]
    %v54 = vld [vmem:[%s0 + $0x74] sm:$0xf]
    %v55 = vld [vmem:[%s0 + $0x78] sm:$0xf]
    %v56 = vld [vmem:[%s0 + $0x7c] sm:$0xf]
    %v57 = vld [vmem:[%s0 + $0x80] sm:$0xf]
    %v58 = vld [vmem:[%s0 + $0x84] sm:$0xf]
    %v59 = vld [vmem:[%s0 + $0x88] sm:$0xf]
    %v60 = vld [vmem:[%s0 + $0x8c] sm:$0xf]
    %v61 = vld [vmem:[%s0 + $0x90] sm:$0xf]
    %v62 = vld [vmem:[%s0 + $0x94] sm:$0xf]
    %v63 = vld [vmem:[%s0 + $0x98] sm:$0xf]
    %v64 = vld [vmem:[%s0 + $0x9c] sm:$0xf]
    %v65 = vld [vmem:[%s0 + $0xa0] sm:$0xf]
    %v66 = vld [vmem:[%s0 + $0xa4] sm:$0xf]
    %v67 = vld [vmem:[%s0 + $0xa8] sm:$0xf]
    %v68 = vld [vmem:[%s0 + $0xac] sm:$0xf]
    %v69 = vld [vmem:[%s0 + $0xb0] sm:$0xf]
    %v70 = vld [vmem:[%s0 + $0xb4] sm:$0xf]
    %v71 = vld [vmem:[%s0 + $0xb8] sm:$0xf]
    %v72 = vld [vmem:[%s0 + $0xbc] sm:$0xf]
    %v73 = vld [vmem:[%s0 + $0xc0] sm:$0xf]
    %v74 = vld [vmem:[%s0 + $0xc4] sm:$0xf]
    %v75 = vld [vmem:[%s0 + $0xc8] sm:$0xf]
    %v76 = vld [vmem:[%s0 + $0xcc] sm:$0xf]
    %v77 = vld [vmem:[%s0 + $0xd0] sm:$0xf]
    %v78 = vld [vmem:[%s0 + $0xd4] sm:$0xf]
    %v79 = vld [vmem:[%s0 + $0xd8] sm:$0xf]
    %v80 = vld [vmem:[%s0 + $0xdc] sm:$0xf]
    %v81 = vld [vmem:[%s0 + $0xe0] sm:$0xf]
    %v82 = vld [vmem:[%s0 + $0xe4] sm:$0xf]
    %v83 = vld [vmem:[%s0 + $0xe8] sm:$0xf]
    %v84 = vld [vmem:[%s0 + $0xec] sm:$0xf]
    %v85 = vld [vmem:[%s0 + $0xf0] sm:$0xf]
    %v86 = vld [vmem:[%s0 + $0xf4] sm:$0xf]
    %v87 = vld [vmem:[%s0 + $0xf8] sm:$0xf]
    %v88 = vld [vmem:[%s0 + $0xfc] sm:$0xf]
    %v89 = vld [vmem:[%s0 + $0x100] sm:$0xf]
    %v90 = vld [vmem:[%s0 + $0x104] sm:$0xf]
    %v91 = vld [vmem:[%s0 + $0x108] sm:$0xf]
    %v92 = vld [vmem:[%s0 + $0x10c] sm:$0xf]
    %v93 = vld [vmem:[%s0 + $0x110] sm:$0xf]
    %v94 = vld [vmem:[%s0 + $0x114] sm:$0xf]
    %v95 = vld [vmem:[%s0 + $0x118] sm:$0xf]
    %v96 = vld [vmem:[%s0 + $0x11c] sm:$0xf]
    %v97 = vld [vmem:[%s0 + $0x120] sm:$0xf]
    %v98 = vld [vmem:[%s0 + $0x124] sm:$0xf]
    %v99 = vld [vmem:[%s0 + $0x128] sm:$0xf]
    %v100 = vld [vmem:[%s0 + $0x12c] sm:$0xf]
    %v101 = vld [vmem:[%s0 + $0x130] sm:$0xf]
    %v102 = vld [vmem:[%s0 + $0x134] sm:$0xf]
    %v103 = vld [vmem:[%s0 + $0x138] sm:$0xf]
    %v104 = vld [vmem:[%s0 + $0x13c] sm:$0xf]
    %v105 = vld [vmem:[%s0 + $0x140] sm:$0xf]
    %v106 = vld [vmem:[%s0 + $0x144] sm:$0xf]
    %v107 = vld [vmem:[%s0 + $0x148] sm:$0xf]
    %v108 = vld [vmem:[%s0 + $0x14c] sm:$0xf]
    %v109 = vld [vmem:[%s0 + $0x150] sm:$0xf]
    %v110 = vld [vmem:[%s0 + $0x154] sm:$0xf]
    %v111 = vunpack.c.l.bf16 %v25
    %v112 = vunpack.c.l.bf16 %v26
    %v113 = vunpack.c.l.bf16 %v27
    %v114 = vunpack.c.l.bf16 %v28
    %v115 = vunpack.c.l.bf16 %v29
    %v116 = vunpack.c.l.bf16 %v30
    %v117 = vunpack.c.l.bf16 %v31
    %v118 = vunpack.c.l.bf16 %v32
    %v119 = vunpack.c.l.bf16 %v33
    %v120 = vunpack.c.l.bf16 %v34
    %v121 = vunpack.c.l.bf16 %v35
    %v122 = vunpack.c.l.bf16 %v36
    %v123 = vunpack.c.l.bf16 %v37
    %v124 = vunpack.c.l.bf16 %v38
    %v125 = vunpack.c.l.bf16 %v39
    %v126 = vunpack.c.l.bf16 %v40
    %v127 = vunpack.c.l.bf16 %v41
    %v128 = vunpack.c.l.bf16 %v42
    %v129 = vunpack.c.l.bf16 %v43
    %v130 = vunpack.c.l.bf16 %v44
    %v131 = vunpack.c.l.bf16 %v45
    %v132 = vunpack.c.l.bf16 %v46
    %v133 = vunpack.c.l.bf16 %v47
    %v134 = vunpack.c.l.bf16 %v48
    %v135 = vunpack.c.l.bf16 %v49
    %v136 = vunpack.c.l.bf16 %v50
    %v137 = vunpack.c.l.bf16 %v51
    %v138 = vunpack.c.l.bf16 %v52
    %v139 = vunpack.c.l.bf16 %v53
    %v140 = vunpack.c.l.bf16 %v54
    %v141 = vunpack.c.l.bf16 %v55
    %v142 = vunpack.c.l.bf16 %v56
    %v143 = vunpack.c.l.bf16 %v57
    %v144 = vunpack.c.l.bf16 %v58
    %v145 = vunpack.c.l.bf16 %v59
    %v146 = vunpack.c.l.bf16 %v60
    %v147 = vunpack.c.l.bf16 %v61
    %v148 = vunpack.c.l.bf16 %v62
    %v149 = vunpack.c.l.bf16 %v63
    %v150 = vunpack.c.l.bf16 %v64
    %v151 = vunpack.c.l.bf16 %v65
    %v152 = vunpack.c.l.bf16 %v66
    %v153 = vunpack.c.l.bf16 %v67
    %v154 = vunpack.c.l.bf16 %v68
    %v155 = vunpack.c.l.bf16 %v69
    %v156 = vunpack.c.l.bf16 %v70
    %v157 = vunpack.c.l.bf16 %v71
    %v158 = vunpack.c.l.bf16 %v72
    %v159 = vunpack.c.l.bf16 %v73
    %v160 = vunpack.c.l.bf16 %v74
    %v161 = vunpack.c.l.bf16 %v75
    %v162 = vunpack.c.l.bf16 %v76
    %v163 = vunpack.c.l.bf16 %v77
    %v164 = vunpack.c.l.bf16 %v78
    %v165 = vunpack.c.l.bf16 %v79
    %v166 = vunpack.c.l.bf16 %v80
    %v167 = vunpack.c.l.bf16 %v81
    %v168 = vunpack.c.l.bf16 %v82
    %v169 = vunpack.c.l.bf16 %v83
    %v170 = vunpack.c.l.bf16 %v84
    %v171 = vunpack.c.l.bf16 %v85
    %v172 = vunpack.c.l.bf16 %v86
    %v173 = vunpack.c.l.bf16 %v87
    %v174 = vunpack.c.l.bf16 %v88
    %v175 = vunpack.c.l.bf16 %v89
    %v176 = vunpack.c.l.bf16 %v90
    %v177 = vunpack.c.l.bf16 %v91
    %v178 = vunpack.c.l.bf16 %v92
    %v179 = vunpack.c.l.bf16 %v93
    %v180 = vunpack.c.l.bf16 %v94
    %v181 = vunpack.c.l.bf16 %v95
    %v182 = vunpack.c.l.bf16 %v96
    %v183 = vunpack.c.l.bf16 %v97
    %v184 = vunpack.c.l.bf16 %v98
    %v185 = vunpack.c.l.bf16 %v99
    %v186 = vunpack.c.l.bf16 %v100
    %v187 = vunpack.c.l.bf16 %v101
    %v188 = vunpack.c.l.bf16 %v102
    %v189 = vunpack.c.l.bf16 %v103
    %v190 = vunpack.c.l.bf16 %v104
    %v191 = vunpack.c.l.bf16 %v105
    %v192 = vunpack.c.l.bf16 %v106
    %v193 = vunpack.c.l.bf16 %v107
    %v194 = vunpack.c.l.bf16 %v108
    %v195 = vunpack.c.l.bf16 %v109
    %v196 = vunpack.c.l.bf16 %v110
    %v197 = vpack.c.bf16 %v112, %v111
    %v198 = vpack.c.bf16 %v114, %v113
    %v199 = vpack.c.bf16 %v116, %v115
    %v200 = vpack.c.bf16 %v118, %v117
    %v201 = vpack.c.bf16 %v120, %v119
    %v202 = vpack.c.bf16 %v122, %v121
    %v203 = vpack.c.bf16 %v124, %v123
    %v204 = vpack.c.bf16 %v126, %v125
    %v205 = vpack.c.bf16 %v128, %v127
    %v206 = vpack.c.bf16 %v130, %v129
    %v207 = vpack.c.bf16 %v132, %v131
    %v208 = vpack.c.bf16 %v134, %v133
    %v209 = vpack.c.bf16 %v136, %v135
    %v210 = vpack.c.bf16 %v138, %v137
    %v211 = vpack.c.bf16 %v140, %v139
    %v212 = vpack.c.bf16 %v142, %v141
    %v213 = vpack.c.bf16 %v144, %v143
    %v214 = vpack.c.bf16 %v146, %v145
    %v215 = vpack.c.bf16 %v148, %v147
    %v216 = vpack.c.bf16 %v150, %v149
    %v217 = vpack.c.bf16 %v152, %v151
    %v218 = vpack.c.bf16 %v154, %v153
    %v219 = vpack.c.bf16 %v156, %v155
    %v220 = vpack.c.bf16 %v158, %v157
    %v221 = vpack.c.bf16 %v160, %v159
    %v222 = vpack.c.bf16 %v162, %v161
    %v223 = vpack.c.bf16 %v164, %v163
    %v224 = vpack.c.bf16 %v166, %v165
    %v225 = vpack.c.bf16 %v168, %v167
    %v226 = vpack.c.bf16 %v170, %v169
    %v227 = vpack.c.bf16 %v172, %v171
    %v228 = vpack.c.bf16 %v174, %v173
    %v229 = vpack.c.bf16 %v176, %v175
    %v230 = vpack.c.bf16 %v178, %v177
    %v231 = vpack.c.bf16 %v180, %v179
    %v232 = vpack.c.bf16 %v182, %v181
    %v233 = vpack.c.bf16 %v184, %v183
    %v234 = vpack.c.bf16 %v186, %v185
    %v235 = vpack.c.bf16 %v188, %v187
    %v236 = vpack.c.bf16 %v190, %v189
    %v237 = vpack.c.bf16 %v191, %v191
    %v238 = vld [vmem:[%s1] sm:$0x3]
    %v239 = vpack.c.bf16 %v192, %v191
    %s240 = scalar_lea.vmem %s1, 2
    %v241 = vld [vmem:[%s240] sm:$0x3]
    %vm242 = vsmask.f32 7424
    %v244 = vshrl.u32 %v197, 16
    %v246 = vshll.u32 %v197, 16
    %v248 = vrot.slane %v246, 1
    %v249 = vor.u32 %v244, %v248
    %v251 = vshll.u32 %v198, 16
    %v253 = vrot.slane %v251, 1
    %v254 = vsel %vm242, %v249, %v253
    %v255 = vshrl.u32 %v198, 16
    %v257 = vor.u32 %v255, %v253
    %v259 = vshll.u32 %v199, 16
    %v261 = vrot.slane %v259, 1
    %v262 = vsel %vm242, %v257, %v261
    %v263 = vshrl.u32 %v199, 16
    %v265 = vor.u32 %v263, %v261
    %v267 = vshll.u32 %v200, 16
    %v269 = vrot.slane %v267, 1
    %v270 = vsel %vm242, %v265, %v269
    %v271 = vshrl.u32 %v200, 16
    %v273 = vor.u32 %v271, %v269
    %v275 = vshll.u32 %v201, 16
    %v277 = vrot.slane %v275, 1
    %v278 = vsel %vm242, %v273, %v277
    %v279 = vshrl.u32 %v201, 16
    %v281 = vor.u32 %v279, %v277
    %v283 = vshll.u32 %v202, 16
    %v285 = vrot.slane %v283, 1
    %v286 = vsel %vm242, %v281, %v285
    %v287 = vshrl.u32 %v202, 16
    %v289 = vor.u32 %v287, %v285
    %v291 = vshll.u32 %v203, 16
    %v293 = vrot.slane %v291, 1
    %v294 = vsel %vm242, %v289, %v293
    %v295 = vshrl.u32 %v203, 16
    %v297 = vor.u32 %v295, %v293
    %v299 = vshll.u32 %v204, 16
    %v301 = vrot.slane %v299, 1
    %v302 = vsel %vm242, %v297, %v301
    %v303 = vshrl.u32 %v204, 16
    %v305 = vor.u32 %v303, %v301
    %v307 = vshll.u32 %v205, 16
    %v309 = vrot.slane %v307, 1
    %v310 = vsel %vm242, %v305, %v309
    %v311 = vshrl.u32 %v205, 16
    %v313 = vor.u32 %v311, %v309
    %v315 = vshll.u32 %v206, 16
    %v317 = vrot.slane %v315, 1
    %v318 = vsel %vm242, %v313, %v317
    %v319 = vshrl.u32 %v206, 16
    %v321 = vor.u32 %v319, %v317
    %v323 = vshll.u32 %v207, 16
    %v325 = vrot.slane %v323, 1
    %v326 = vsel %vm242, %v321, %v325
    %v327 = vshrl.u32 %v207, 16
    %v329 = vor.u32 %v327, %v325
    %v331 = vshll.u32 %v208, 16
    %v333 = vrot.slane %v331, 1
    %v334 = vsel %vm242, %v329, %v333
    %v335 = vshrl.u32 %v208, 16
    %v337 = vor.u32 %v335, %v333
    %v339 = vshll.u32 %v209, 16
    %v341 = vrot.slane %v339, 1
    %v342 = vsel %vm242, %v337, %v341
    %v343 = vshrl.u32 %v209, 16
    %v345 = vor.u32 %v343, %v341
    %v347 = vshll.u32 %v210, 16
    %v349 = vrot.slane %v347, 1
    %v350 = vsel %vm242, %v345, %v349
    %v351 = vshrl.u32 %v210, 16
    %v353 = vor.u32 %v351, %v349
    %v355 = vshll.u32 %v211, 16
    %v357 = vrot.slane %v355, 1
    %v358 = vsel %vm242, %v353, %v357
    %v359 = vshrl.u32 %v211, 16
    %v361 = vor.u32 %v359, %v357
    %v363 = vshll.u32 %v212, 16
    %v365 = vrot.slane %v363, 1
    %v366 = vsel %vm242, %v361, %v365
    %v367 = vshrl.u32 %v212, 16
    %v369 = vor.u32 %v367, %v365
    %v371 = vshll.u32 %v213, 16
    %v373 = vrot.slane %v371, 1
    %v374 = vsel %vm242, %v369, %v373
    %v375 = vshrl.u32 %v213, 16
    %v377 = vor.u32 %v375, %v373
    %v379 = vshll.u32 %v214, 16
    %v381 = vrot.slane %v379, 1
    %v382 = vsel %vm242, %v377, %v381
    %v383 = vshrl.u32 %v214, 16
    %v385 = vor.u32 %v383, %v381
    %v387 = vshll.u32 %v215, 16
    %v389 = vrot.slane %v387, 1
    %v390 = vsel %vm242, %v385, %v389
    %v391 = vshrl.u32 %v215, 16
    %v393 = vor.u32 %v391, %v389
    %v395 = vshll.u32 %v216, 16
    %v397 = vrot.slane %v395, 1
    %v398 = vsel %vm242, %v393, %v397
    %v399 = vshrl.u32 %v216, 16
    %v401 = vor.u32 %v399, %v397
    %v403 = vshll.u32 %v217, 16
    %v405 = vrot.slane %v403, 1
    %v406 = vsel %vm242, %v401, %v405
    %v407 = vshrl.u32 %v217, 16
    %v409 = vor.u32 %v407, %v405
    %v411 = vshll.u32 %v218, 16
    %v413 = vrot.slane %v411, 1
    %v414 = vsel %vm242, %v409, %v413
    %v415 = vshrl.u32 %v218, 16
    %v417 = vor.u32 %v415, %v413
    %v419 = vshll.u32 %v219, 16
    %v421 = vrot.slane %v419, 1
    %v422 = vsel %vm242, %v417, %v421
    %v423 = vshrl.u32 %v219, 16
    %v425 = vor.u32 %v423, %v421
    %v427 = vshll.u32 %v220, 16
    %v429 = vrot.slane %v427, 1
    %v430 = vsel %vm242, %v425, %v429
    %v431 = vshrl.u32 %v220, 16
    %v433 = vor.u32 %v431, %v429
    %v435 = vshll.u32 %v221, 16
    %v437 = vrot.slane %v435, 1
    %v438 = vsel %vm242, %v433, %v437
    %v439 = vshrl.u32 %v221, 16
    %v441 = vor.u32 %v439, %v437
    %v443 = vshll.u32 %v222, 16
    %v445 = vrot.slane %v443, 1
    %v446 = vsel %vm242, %v441, %v445
    %v447 = vshrl.u32 %v222, 16
    %v449 = vor.u32 %v447, %v445
    %v451 = vshll.u32 %v223, 16
    %v453 = vrot.slane %v451, 1
    %v454 = vsel %vm242, %v449, %v453
    %v455 = vshrl.u32 %v223, 16
    %v457 = vor.u32 %v455, %v453
    %v459 = vshll.u32 %v224, 16
    %v461 = vrot.slane %v459, 1
    %v462 = vsel %vm242, %v457, %v461
    %v463 = vshrl.u32 %v224, 16
    %v465 = vor.u32 %v463, %v461
    %v467 = vshll.u32 %v225, 16
    %v469 = vrot.slane %v467, 1
    %v470 = vsel %vm242, %v465, %v469
    %v471 = vshrl.u32 %v225, 16
    %v473 = vor.u32 %v471, %v469
    %v475 = vshll.u32 %v226, 16
    %v477 = vrot.slane %v475, 1
    %v478 = vsel %vm242, %v473, %v477
    %v479 = vshrl.u32 %v226, 16
    %v481 = vor.u32 %v479, %v477
    %v483 = vshll.u32 %v227, 16
    %v485 = vrot.slane %v483, 1
    %v486 = vsel %vm242, %v481, %v485
    %v487 = vshrl.u32 %v227, 16
    %v489 = vor.u32 %v487, %v485
    %v491 = vshll.u32 %v228, 16
    %v493 = vrot.slane %v491, 1
    %v494 = vsel %vm242, %v489, %v493
    %v495 = vshrl.u32 %v228, 16
    %v497 = vor.u32 %v495, %v493
    %v499 = vshll.u32 %v229, 16
    %v501 = vrot.slane %v499, 1
    %v502 = vsel %vm242, %v497, %v501
    %v503 = vshrl.u32 %v229, 16
    %v505 = vor.u32 %v503, %v501
    %v507 = vshll.u32 %v230, 16
    %v509 = vrot.slane %v507, 1
    %v510 = vsel %vm242, %v505, %v509
    %v511 = vshrl.u32 %v230, 16
    %v513 = vor.u32 %v511, %v509
    %v515 = vshll.u32 %v231, 16
    %v517 = vrot.slane %v515, 1
    %v518 = vsel %vm242, %v513, %v517
    %v519 = vshrl.u32 %v231, 16
    %v521 = vor.u32 %v519, %v517
    %v523 = vshll.u32 %v232, 16
    %v525 = vrot.slane %v523, 1
    %v526 = vsel %vm242, %v521, %v525
    %v527 = vshrl.u32 %v232, 16
    %v529 = vor.u32 %v527, %v525
    %v531 = vshll.u32 %v233, 16
    %v533 = vrot.slane %v531, 1
    %v534 = vsel %vm242, %v529, %v533
    %v535 = vshrl.u32 %v233, 16
    %v537 = vor.u32 %v535, %v533
    %v539 = vshll.u32 %v234, 16
    %v541 = vrot.slane %v539, 1
    %v542 = vsel %vm242, %v537, %v541
    %v543 = vshrl.u32 %v234, 16
    %v545 = vor.u32 %v543, %v541
    %v547 = vshll.u32 %v235, 16
    %v549 = vrot.slane %v547, 1
    %v550 = vsel %vm242, %v545, %v549
    %v551 = vshrl.u32 %v235, 16
    %v553 = vor.u32 %v551, %v549
    %v555 = vshll.u32 %v236, 16
    %v557 = vrot.slane %v555, 1
    %v558 = vsel %vm242, %v553, %v557
    %v559 = vshrl.u32 %v236, 16
    %v561 = vor.u32 %v559, %v557
    %v563 = vshll.u32 %v239, 16
    %v565 = vrot.slane %v563, 1
    %v566 = vsel %vm242, %v561, %v565
    %v567 = vshrl.u32 %v239, 16
    %v569 = vor.u32 %v567, %v565
    %vm570 = vcmask 31744
    %v572 = vsel %vm570, %v254, 0
    %v575 = vsel %vm570, %v262, 0
    %v578 = vsel %vm570, %v270, 0
    %v581 = vsel %vm570, %v278, 0
    %v584 = vsel %vm570, %v286, 0
    %v587 = vsel %vm570, %v294, 0
    %v590 = vsel %vm570, %v302, 0
    %v593 = vsel %vm570, %v310, 0
    %v596 = vsel %vm570, %v318, 0
    %v599 = vsel %vm570, %v326, 0
    %v602 = vsel %vm570, %v334, 0
    %v605 = vsel %vm570, %v342, 0
    %v608 = vsel %vm570, %v350, 0
    %v611 = vsel %vm570, %v358, 0
    %v614 = vsel %vm570, %v366, 0
    %v617 = vsel %vm570, %v374, 0
    %v620 = vsel %vm570, %v382, 0
    %v623 = vsel %vm570, %v390, 0
    %v626 = vsel %vm570, %v398, 0
    %v629 = vsel %vm570, %v406, 0
    %v632 = vsel %vm570, %v414, 0
    %v635 = vsel %vm570, %v422, 0
    %v638 = vsel %vm570, %v430, 0
    %v641 = vsel %vm570, %v438, 0
    %v644 = vsel %vm570, %v446, 0
    %v647 = vsel %vm570, %v454, 0
    %v650 = vsel %vm570, %v462, 0
    %v653 = vsel %vm570, %v470, 0
    %v656 = vsel %vm570, %v478, 0
    %v659 = vsel %vm570, %v486, 0
    %v662 = vsel %vm570, %v494, 0
    %v665 = vsel %vm570, %v502, 0
    %v668 = vsel %vm570, %v510, 0
    %v671 = vsel %vm570, %v518, 0
    %v674 = vsel %vm570, %v526, 0
    %v677 = vsel %vm570, %v534, 0
    %v680 = vsel %vm570, %v542, 0
    %v683 = vsel %vm570, %v550, 0
    %v686 = vsel %vm570, %v558, 0
    %v689 = vsel %vm570, %v566, 0
    %v692 = vsel %vm570, %v569, 0
    %vm694 = vcmask 1041408
    %v696 = vsel %vm694, %v241, 0
    %698 = vmatprep.subr.bf16.mxu0 0
    %699 = vmatpush1.bf16.msra.mxu0 %v696
    %700 = vmatprep.subr.bf16.mxu0 0
    %701 = vmatpush1.bf16.msra.mxu0 0
    %702 = vmatprep.subr.bf16.mxu0 0
    %703 = vmatpush1.bf16.msra.mxu0 0
    %704 = vmatprep.subr.bf16.mxu0 0
    %705 = vmatpush1.bf16.msra.mxu0 0
    %706 = vmatprep.subr.bf16.mxu0 0
    %707 = vmatpush1.bf16.msra.mxu0 0
    %708 = vmatprep.subr.bf16.mxu0 0
    %709 = vmatpush1.bf16.msra.mxu0 0
    %710 = vmatprep.subr.bf16.mxu0 0
    %711 = vmatpush1.bf16.msra.mxu0 0
    %712 = vmatprep.subr.bf16.mxu0 0
    %713 = vmatpush1.bf16.msra.mxu0 0
    %714 = vmatprep.subr.bf16.mxu0 0
    %715 = vmatpush1.bf16.msra.mxu0 0
    %716 = vmatprep.subr.bf16.mxu0 0
    %717 = vmatpush1.bf16.msra.mxu0 0
    %718 = vmatprep.subr.bf16.mxu0 0
    %719 = vmatpush1.bf16.msra.mxu0 0
    %720 = vmatprep.subr.bf16.mxu0 0
    %721 = vmatpush1.bf16.msra.mxu0 0
    %722 = vmatprep.subr.bf16.mxu0 0
    %723 = vmatpush1.bf16.msra.mxu0 0
    %724 = vmatprep.subr.bf16.mxu0 0
    %725 = vmatpush1.bf16.msra.mxu0 0
    %726 = vmatprep.subr.bf16.mxu0 0
    %727 = vmatpush1.bf16.msra.mxu0 0
    %728 = vmatprep.subr.bf16.mxu0 0
    %729 = vmatpush1.bf16.msra.mxu0 0
    %730 = vmatprep.mubr.bf16.mxu0 0
    %731 = vmatmul.mubr.bf16.gmra.mrb[0].mxu0 %v572
    %v732 = vpop.f32.mrb[0].mxu0
    %v733 = vadd.f32 0.0, %v732
    %v734 = vpop.f32.mrb[0].mxu0
    %v735 = vpop.f32.mrb[0].mxu0
    %v736 = vadd.f32 0.0, %v735
    %v737 = vpop.f32.mrb[0].mxu0
    %738 = vmatprep.mubr.bf16.mxu0 0
    %739 = vmatmul.mubr.bf16.gmra.mrb[0].mxu0 %v575
    %v740 = vpop.f32.mrb[0].mxu0
    %v741 = vadd.f32 0.0, %v740
    %v742 = vpop.f32.mrb[0].mxu0
    %v743 = vpop.f32.mrb[0].mxu0
    %v744 = vadd.f32 0.0, %v743
    %v745 = vpop.f32.mrb[0].mxu0
    %746 = vmatprep.mubr.bf16.mxu0 0
    %747 = vmatmul.mubr.bf16.gmra.mrb[0].mxu0 %v578
    %v748 = vpop.f32.mrb[0].mxu0
    %v749 = vadd.f32 0.0, %v748
    %v750 = vpop.f32.mrb[0].mxu0
    %v751 = vpop.f32.mrb[0].mxu0
    %v752 = vadd.f32 0.0, %v751
    %v753 = vpop.f32.mrb[0].mxu0
    %754 = vmatprep.mubr.bf16.mxu0 0
    %755 = vmatmul.mubr.bf16.gmra.mrb[0].mxu0 %v581
    %v756 = vpop.f32.mrb[0].mxu0
    %v757 = vadd.f32 0.0, %v756
    %v758 = vpop.f32.mrb[0].mxu0
    %v759 = vpop.f32.mrb[0].mxu0
    %v760 = vadd.f32 0.0, %v759
    %v761 = vpop.f32.mrb[0].mxu0
    %762 = vmatprep.mubr.bf16.mxu0 0
    %763 = vmatmul.mubr.bf16.gmra.mrb[0].mxu0 %v584
    %v764 = vpop.f32.mrb[0].mxu0
    %v765 = vadd.f32 0.0, %v764
    %v766 = vpop.f32.mrb[0].mxu0
    %v767 = vpop.f32.mrb[0].mxu0
    %v768 = vadd.f32 0.0, %v767
    %v769 = vpop.f32.mrb[0].mxu0
    %770 = vmatprep.mubr.bf16.mxu0 0
    %771 = vmatmul.mubr.bf16.gmra.mrb[0].mxu0 %v587
    %v772 = vpop.f32.mrb[0].mxu0
    %v773 = vadd.f32 0.0, %v772
    %v774 = vpop.f32.mrb[0].mxu0
    %v775 = vpop.f32.mrb[0].mxu0
    %v776 = vadd.f32 0.0, %v775
    %v777 = vpop.f32.mrb[0].mxu0
    %778 = vmatprep.mubr.bf16.mxu0 0
    %779 = vmatmul.mubr.bf16.gmra.mrb[0].mxu0 %v590
    %v780 = vpop.f32.mrb[0].mxu0
    %v781 = vadd.f32 0.0, %v780
    %v782 = vpop.f32.mrb[0].mxu0
    %v783 = vpop.f32.mrb[0].mxu0
    %v784 = vadd.f32 0.0, %v783
    %v785 = vpop.f32.mrb[0].mxu0
    %786 = vmatprep.mubr.bf16.mxu0 0
    %787 = vmatmul.mubr.bf16.gmra.mrb[0].mxu0 %v593
    %v788 = vpop.f32.mrb[0].mxu0
    %v789 = vadd.f32 0.0, %v788
    %v790 = vpop.f32.mrb[0].mxu0
    %v791 = vpop.f32.mrb[0].mxu0
    %v792 = vadd.f32 0.0, %v791
    %v793 = vpop.f32.mrb[0].mxu0
    %794 = vmatprep.mubr.bf16.mxu0 0
    %795 = vmatmul.mubr.bf16.gmra.mrb[0].mxu0 %v596
    %v796 = vpop.f32.mrb[0].mxu0
    %v797 = vadd.f32 0.0, %v796
    %v798 = vpop.f32.mrb[0].mxu0
    %v799 = vpop.f32.mrb[0].mxu0
    %v800 = vadd.f32 0.0, %v799
    %v801 = vpop.f32.mrb[0].mxu0
    %802 = vmatprep.mubr.bf16.mxu0 0
    %803 = vmatmul.mubr.bf16.gmra.mrb[0].mxu0 %v599
    %v804 = vpop.f32.mrb[0].mxu0
    %v805 = vadd.f32 0.0, %v804
    %v806 = vpop.f32.mrb[0].mxu0
    %v807 = vpop.f32.mrb[0].mxu0
    %v808 = vadd.f32 0.0, %v807
    %v809 = vpop.f32.mrb[0].mxu0
    %810 = vmatprep.mubr.bf16.mxu0 0
    %811 = vmatmul.mubr.bf16.gmra.mrb[0].mxu0 %v602
    %v812 = vpop.f32.mrb[0].mxu0
    %v813 = vadd.f32 0.0, %v812
    %v814 = vpop.f32.mrb[0].mxu0
    %v815 = vpop.f32.mrb[0].mxu0
    %v816 = vadd.f32 0.0, %v815
    %v817 = vpop.f32.mrb[0].mxu0
    %818 = vmatprep.mubr.bf16.mxu0 0
    %819 = vmatmul.mubr.bf16.gmra.mrb[0].mxu0 %v605
    %v820 = vpop.f32.mrb[0].mxu0
    %v821 = vadd.f32 0.0, %v820
    %v822 = vpop.f32.mrb[0].mxu0
    %v823 = vpop.f32.mrb[0].mxu0
    %v824 = vadd.f32 0.0, %v823
    %v825 = vpop.f32.mrb[0].mxu0
    %826 = vmatprep.mubr.bf16.mxu0 0
    %827 = vmatmul.mubr.bf16.gmra.mrb[0].mxu0 %v608
    %v828 = vpop.f32.mrb[0].mxu0
    %v829 = vadd.f32 0.0, %v828
    %v830 = vpop.f32.mrb[0].mxu0
    %v831 = vpop.f32.mrb[0].mxu0
    %v832 = vadd.f32 0.0, %v831
    %v833 = vpop.f32.mrb[0].mxu0
    %834 = vmatprep.mubr.bf16.mxu0 0
    %835 = vmatmul.mubr.bf16.gmra.mrb[0].mxu0 %v611
    %v836 = vpop.f32.mrb[0].mxu0
    %v837 = vadd.f32 0.0, %v836
    %v838 = vpop.f32.mrb[0].mxu0
    %v839 = vpop.f32.mrb[0].mxu0
    %v840 = vadd.f32 0.0, %v839
    %v841 = vpop.f32.mrb[0].mxu0
    %842 = vmatprep.mubr.bf16.mxu0 0
    %843 = vmatmul.mubr.bf16.gmra.mrb[0].mxu0 %v614
    %v844 = vpop.f32.mrb[0].mxu0
    %v845 = vadd.f32 0.0, %v844
    %v846 = vpop.f32.mrb[0].mxu0
    %v847 = vpop.f32.mrb[0].mxu0
    %v848 = vadd.f32 0.0, %v847
    %v849 = vpop.f32.mrb[0].mxu0
    %850 = vmatprep.mubr.bf16.mxu0 0
    %851 = vmatmul.mubr.bf16.gmra.mrb[0].mxu0 %v617
    %v852 = vpop.f32.mrb[0].mxu0
    %v853 = vadd.f32 0.0, %v852
    %v854 = vpop.f32.mrb[0].mxu0
    %v855 = vpop.f32.mrb[0].mxu0
    %v856 = vadd.f32 0.0, %v855
    %v857 = vpop.f32.mrb[0].mxu0
    %858 = vmatprep.mubr.bf16.mxu0 0
    %859 = vmatmul.mubr.bf16.gmra.mrb[0].mxu0 %v620
    %v860 = vpop.f32.mrb[0].mxu0
    %v861 = vadd.f32 0.0, %v860
    %v862 = vpop.f32.mrb[0].mxu0
    %v863 = vpop.f32.mrb[0].mxu0
    %v864 = vadd.f32 0.0, %v863
    %v865 = vpop.f32.mrb[0].mxu0
    %866 = vmatprep.mubr.bf16.mxu0 0
    %867 = vmatmul.mubr.bf16.gmra.mrb[0].mxu0 %v623
    %v868 = vpop.f32.mrb[0].mxu0
    %v869 = vadd.f32 0.0, %v868
    %v870 = vpop.f32.mrb[0].mxu0
    %v871 = vpop.f32.mrb[0].mxu0
    %v872 = vadd.f32 0.0, %v871
    %v873 = vpop.f32.mrb[0].mxu0
    %874 = vmatprep.mubr.bf16.mxu0 0
    %875 = vmatmul.mubr.bf16.gmra.mrb[0].mxu0 %v626
    %v876 = vpop.f32.mrb[0].mxu0
    %v877 = vadd.f32 0.0, %v876
    %v878 = vpop.f32.mrb[0].mxu0
    %v879 = vpop.f32.mrb[0].mxu0
    %v880 = vadd.f32 0.0, %v879
    %v881 = vpop.f32.mrb[0].mxu0
    %882 = vmatprep.mubr.bf16.mxu0 0
    %883 = vmatmul.mubr.bf16.gmra.mrb[0].mxu0 %v629
    %v884 = vpop.f32.mrb[0].mxu0
    %v885 = vadd.f32 0.0, %v884
    %v886 = vpop.f32.mrb[0].mxu0
    %v887 = vpop.f32.mrb[0].mxu0
    %v888 = vadd.f32 0.0, %v887
    %v889 = vpop.f32.mrb[0].mxu0
    %890 = vmatprep.mubr.bf16.mxu0 0
    %891 = vmatmul.mubr.bf16.gmra.mrb[0].mxu0 %v632
    %v892 = vpop.f32.mrb[0].mxu0
    %v893 = vadd.f32 0.0, %v892
    %v894 = vpop.f32.mrb[0].mxu0
    %v895 = vpop.f32.mrb[0].mxu0
    %v896 = vadd.f32 0.0, %v895
    %v897 = vpop.f32.mrb[0].mxu0
    %898 = vmatprep.mubr.bf16.mxu0 0
    %899 = vmatmul.mubr.bf16.gmra.mrb[0].mxu0 %v635
    %v900 = vpop.f32.mrb[0].mxu0
    %v901 = vadd.f32 0.0, %v900
    %v902 = vpop.f32.mrb[0].mxu0
    %v903 = vpop.f32.mrb[0].mxu0
    %v904 = vadd.f32 0.0, %v903
    %v905 = vpop.f32.mrb[0].mxu0
    %906 = vmatprep.mubr.bf16.mxu0 0
    %907 = vmatmul.mubr.bf16.gmra.mrb[0].mxu0 %v638
    %v908 = vpop.f32.mrb[0].mxu0
    %v909 = vadd.f32 0.0, %v908
    %v910 = vpop.f32.mrb[0].mxu0
    %v911 = vpop.f32.mrb[0].mxu0
    %v912 = vadd.f32 0.0, %v911
    %v913 = vpop.f32.mrb[0].mxu0
    %914 = vmatprep.mubr.bf16.mxu0 0
    %915 = vmatmul.mubr.bf16.gmra.mrb[0].mxu0 %v641
    %v916 = vpop.f32.mrb[0].mxu0
    %v917 = vadd.f32 0.0, %v916
    %v918 = vpop.f32.mrb[0].mxu0
    %v919 = vpop.f32.mrb[0].mxu0
    %v920 = vadd.f32 0.0, %v919
    %v921 = vpop.f32.mrb[0].mxu0
    %922 = vmatprep.mubr.bf16.mxu0 0
    %923 = vmatmul.mubr.bf16.gmra.mrb[0].mxu0 %v644
    %v924 = vpop.f32.mrb[0].mxu0
    %v925 = vadd.f32 0.0, %v924
    %v926 = vpop.f32.mrb[0].mxu0
    %v927 = vpop.f32.mrb[0].mxu0
    %v928 = vadd.f32 0.0, %v927
    %v929 = vpop.f32.mrb[0].mxu0
    %930 = vmatprep.mubr.bf16.mxu0 0
    %931 = vmatmul.mubr.bf16.gmra.mrb[0].mxu0 %v647
    %v932 = vpop.f32.mrb[0].mxu0
    %v933 = vadd.f32 0.0, %v932
    %v934 = vpop.f32.mrb[0].mxu0
    %v935 = vpop.f32.mrb[0].mxu0
    %v936 = vadd.f32 0.0, %v935
    %v937 = vpop.f32.mrb[0].mxu0
    %938 = vmatprep.mubr.bf16.mxu0 0
    %939 = vmatmul.mubr.bf16.gmra.mrb[0].mxu0 %v650
    %v940 = vpop.f32.mrb[0].mxu0
    %v941 = vadd.f32 0.0, %v940
    %v942 = vpop.f32.mrb[0].mxu0
    %v943 = vpop.f32.mrb[0].mxu0
    %v944 = vadd.f32 0.0, %v943
    %v945 = vpop.f32.mrb[0].mxu0
    %946 = vmatprep.mubr.bf16.mxu0 0
    %947 = vmatmul.mubr.bf16.gmra.mrb[0].mxu0 %v653
    %v948 = vpop.f32.mrb[0].mxu0
    %v949 = vadd.f32 0.0, %v948
    %v950 = vpop.f32.mrb[0].mxu0
    %v951 = vpop.f32.mrb[0].mxu0
    %v952 = vadd.f32 0.0, %v951
    %v953 = vpop.f32.mrb[0].mxu0
    %954 = vmatprep.mubr.bf16.mxu0 0
    %955 = vmatmul.mubr.bf16.gmra.mrb[0].mxu0 %v656
    %v956 = vpop.f32.mrb[0].mxu0
    %v957 = vadd.f32 0.0, %v956
    %v958 = vpop.f32.mrb[0].mxu0
    %v959 = vpop.f32.mrb[0].mxu0
    %v960 = vadd.f32 0.0, %v959
    %v961 = vpop.f32.mrb[0].mxu0
    %962 = vmatprep.mubr.bf16.mxu0 0
    %963 = vmatmul.mubr.bf16.gmra.mrb[0].mxu0 %v659
    %v964 = vpop.f32.mrb[0].mxu0
    %v965 = vadd.f32 0.0, %v964
    %v966 = vpop.f32.mrb[0].mxu0
    %v967 = vpop.f32.mrb[0].mxu0
    %v968 = vadd.f32 0.0, %v967
    %v969 = vpop.f32.mrb[0].mxu0
    %970 = vmatprep.mubr.bf16.mxu0 0
    %971 = vmatmul.mubr.bf16.gmra.mrb[0].mxu0 %v662
    %v972 = vpop.f32.mrb[0].mxu0
    %v973 = vadd.f32 0.0, %v972
    %v974 = vpop.f32.mrb[0].mxu0
    %v975 = vpop.f32.mrb[0].mxu0
    %v976 = vadd.f32 0.0, %v975
    %v977 = vpop.f32.mrb[0].mxu0
    %978 = vmatprep.mubr.bf16.mxu0 0
    %979 = vmatmul.mubr.bf16.gmra.mrb[0].mxu0 %v665
    %v980 = vpop.f32.mrb[0].mxu0
    %v981 = vadd.f32 0.0, %v980
    %v982 = vpop.f32.mrb[0].mxu0
    %v983 = vpop.f32.mrb[0].mxu0
    %v984 = vadd.f32 0.0, %v983
    %v985 = vpop.f32.mrb[0].mxu0
    %986 = vmatprep.mubr.bf16.mxu0 0
    %987 = vmatmul.mubr.bf16.gmra.mrb[0].mxu0 %v668
    %v988 = vpop.f32.mrb[0].mxu0
    %v989 = vadd.f32 0.0, %v988
    %v990 = vpop.f32.mrb[0].mxu0
    %v991 = vpop.f32.mrb[0].mxu0
    %v992 = vadd.f32 0.0, %v991
    %v993 = vpop.f32.mrb[0].mxu0
    %994 = vmatprep.mubr.bf16.mxu0 0
    %995 = vmatmul.mubr.bf16.gmra.mrb[0].mxu0 %v671
    %v996 = vpop.f32.mrb[0].mxu0
    %v997 = vadd.f32 0.0, %v996
    %v998 = vpop.f32.mrb[0].mxu0
    %v999 = vpop.f32.mrb[0].mxu0
    %v1000 = vadd.f32 0.0, %v999
    %v1001 = vpop.f32.mrb[0].mxu0
    %1002 = vmatprep.mubr.bf16.mxu0 0
    %1003 = vmatmul.mubr.bf16.gmra.mrb[0].mxu0 %v674
    %v1004 = vpop.f32.mrb[0].mxu0
    %v1005 = vadd.f32 0.0, %v1004
    %v1006 = vpop.f32.mrb[0].mxu0
    %v1007 = vpop.f32.mrb[0].mxu0
    %v1008 = vadd.f32 0.0, %v1007
    %v1009 = vpop.f32.mrb[0].mxu0
    %1010 = vmatprep.mubr.bf16.mxu0 0
    %1011 = vmatmul.mubr.bf16.gmra.mrb[0].mxu0 %v677
    %v1012 = vpop.f32.mrb[0].mxu0
    %v1013 = vadd.f32 0.0, %v1012
    %v1014 = vpop.f32.mrb[0].mxu0
    %v1015 = vpop.f32.mrb[0].mxu0
    %v1016 = vadd.f32 0.0, %v1015
    %v1017 = vpop.f32.mrb[0].mxu0
    %1018 = vmatprep.mubr.bf16.mxu0 0
    %1019 = vmatmul.mubr.bf16.gmra.mrb[0].mxu0 %v680
    %v1020 = vpop.f32.mrb[0].mxu0
    %v1021 = vadd.f32 0.0, %v1020
    %v1022 = vpop.f32.mrb[0].mxu0
    %v1023 = vpop.f32.mrb[0].mxu0
    %v1024 = vadd.f32 0.0, %v1023
    %v1025 = vpop.f32.mrb[0].mxu0
    %1026 = vmatprep.mubr.bf16.mxu0 0
    %1027 = vmatmul.mubr.bf16.gmra.mrb[0].mxu0 %v683
    %v1028 = vpop.f32.mrb[0].mxu0
    %v1029 = vadd.f32 0.0, %v1028
    %v1030 = vpop.f32.mrb[0].mxu0
    %v1031 = vpop.f32.mrb[0].mxu0
    %v1032 = vadd.f32 0.0, %v1031
    %v1033 = vpop.f32.mrb[0].mxu0
    %1034 = vmatprep.mubr.bf16.mxu0 0
    %1035 = vmatmul.mubr.bf16.gmra.mrb[0].mxu0 %v686
    %v1036 = vpop.f32.mrb[0].mxu0
    %v1037 = vadd.f32 0.0, %v1036
    %v1038 = vpop.f32.mrb[0].mxu0
    %v1039 = vpop.f32.mrb[0].mxu0
    %v1040 = vadd.f32 0.0, %v1039
    %v1041 = vpop.f32.mrb[0].mxu0
    %1042 = vmatprep.mubr.bf16.mxu0 0
    %1043 = vmatmul.mubr.bf16.gmra.mrb[0].mxu0 %v689
    %v1044 = vpop.f32.mrb[0].mxu0
    %v1045 = vadd.f32 0.0, %v1044
    %v1046 = vpop.f32.mrb[0].mxu0
    %v1047 = vpop.f32.mrb[0].mxu0
    %v1048 = vadd.f32 0.0, %v1047
    %v1049 = vpop.f32.mrb[0].mxu0
    %1050 = vmatprep.mubr.bf16.mxu0 0
    %1051 = vmatmul.mubr.bf16.gmra.mrb[0].mxu0 %v692
    %v1052 = vpop.f32.mrb[0].mxu0
    %v1053 = vadd.f32 0.0, %v1052
    %v1054 = vpop.f32.mrb[0].mxu0
    %v1055 = vpop.f32.mrb[0].mxu0
    %v1056 = vpop.f32.mrb[0].mxu0
    %1057 = vdwg.mxu0
    %v1058 = vsel %vm570, %v197, 0
    %v1060 = vsel %vm570, %v198, 0
    %v1062 = vsel %vm570, %v199, 0
    %v1064 = vsel %vm570, %v200, 0
    %v1066 = vsel %vm570, %v201, 0
    %v1068 = vsel %vm570, %v202, 0
    %v1070 = vsel %vm570, %v203, 0
    %v1072 = vsel %vm570, %v204, 0
    %v1074 = vsel %vm570, %v205, 0
    %v1076 = vsel %vm570, %v206, 0
    %v1078 = vsel %vm570, %v207, 0
    %v1080 = vsel %vm570, %v208, 0
    %v1082 = vsel %vm570, %v209, 0
    %v1084 = vsel %vm570, %v210, 0
    %v1086 = vsel %vm570, %v211, 0
    %v1088 = vsel %vm570, %v212, 0
    %v1090 = vsel %vm570, %v213, 0
    %v1092 = vsel %vm570, %v214, 0
    %v1094 = vsel %vm570, %v215, 0
    %v1096 = vsel %vm570, %v216, 0
    %v1098 = vsel %vm570, %v217, 0
    %v1100 = vsel %vm570, %v218, 0
    %v1102 = vsel %vm570, %v219, 0
    %v1104 = vsel %vm570, %v220, 0
    %v1106 = vsel %vm570, %v221, 0
    %v1108 = vsel %vm570, %v222, 0
    %v1110 = vsel %vm570, %v223, 0
    %v1112 = vsel %vm570, %v224, 0
    %v1114 = vsel %vm570, %v225, 0
    %v1116 = vsel %vm570, %v226, 0
    %v1118 = vsel %vm570, %v227, 0
    %v1120 = vsel %vm570, %v228, 0
    %v1122 = vsel %vm570, %v229, 0
    %v1124 = vsel %vm570, %v230, 0
    %v1126 = vsel %vm570, %v231, 0
    %v1128 = vsel %vm570, %v232, 0
    %v1130 = vsel %vm570, %v233, 0
    %v1132 = vsel %vm570, %v234, 0
    %v1134 = vsel %vm570, %v235, 0
    %v1136 = vsel %vm570, %v236, 0
    %v1139 = vsel %vm570, %v237, 0
    %v1142 = vsel %vm694, %v238, 0
    %1144 = vmatprep.subr.bf16.mxu0 0
    %1145 = vmatpush1.bf16.msra.mxu0 %v1142
    %1146 = vmatprep.subr.bf16.mxu0 0
    %1147 = vmatpush1.bf16.msra.mxu0 0
    %1148 = vmatprep.subr.bf16.mxu0 0
    %1149 = vmatpush1.bf16.msra.mxu0 0
    %1150 = vmatprep.subr.bf16.mxu0 0
    %1151 = vmatpush1.bf16.msra.mxu0 0
    %1152 = vmatprep.subr.bf16.mxu0 0
    %1153 = vmatpush1.bf16.msra.mxu0 0
    %1154 = vmatprep.subr.bf16.mxu0 0
    %1155 = vmatpush1.bf16.msra.mxu0 0
    %1156 = vmatprep.subr.bf16.mxu0 0
    %1157 = vmatpush1.bf16.msra.mxu0 0
    %1158 = vmatprep.subr.bf16.mxu0 0
    %1159 = vmatpush1.bf16.msra.mxu0 0
    %1160 = vmatprep.subr.bf16.mxu0 0
    %1161 = vmatpush1.bf16.msra.mxu0 0
    %1162 = vmatprep.subr.bf16.mxu0 0
    %1163 = vmatpush1.bf16.msra.mxu0 0
    %1164 = vmatprep.subr.bf16.mxu0 0
    %1165 = vmatpush1.bf16.msra.mxu0 0
    %1166 = vmatprep.subr.bf16.mxu0 0
    %1167 = vmatpush1.bf16.msra.mxu0 0
    %1168 = vmatprep.subr.bf16.mxu0 0
    %1169 = vmatpush1.bf16.msra.mxu0 0
    %1170 = vmatprep.subr.bf16.mxu0 0
    %1171 = vmatpush1.bf16.msra.mxu0 0
    %1172 = vmatprep.subr.bf16.mxu0 0
    %1173 = vmatpush1.bf16.msra.mxu0 0
    %1174 = vmatprep.subr.bf16.mxu0 0
    %1175 = vmatpush1.bf16.msra.mxu0 0
    %1176 = vmatprep.mubr.bf16.mxu0 0
    %1177 = vmatmul.mubr.bf16.gmra.mrb[0].mxu0 %v1058
    %v1178 = vpop.f32.mrb[0].mxu0
    %v1179 = vadd.f32 %v733, %v1178
    %v1180 = vpop.f32.mrb[0].mxu0
    %v1181 = vpop.f32.mrb[0].mxu0
    %v1182 = vadd.f32 %v736, %v1181
    %v1183 = vpop.f32.mrb[0].mxu0
    %1184 = vmatprep.mubr.bf16.mxu0 0
    %1185 = vmatmul.mubr.bf16.gmra.mrb[0].mxu0 %v1060
    %v1186 = vpop.f32.mrb[0].mxu0
    %v1187 = vadd.f32 %v741, %v1186
    %v1188 = vpop.f32.mrb[0].mxu0
    %v1189 = vpop.f32.mrb[0].mxu0
    %v1190 = vadd.f32 %v744, %v1189
    %v1191 = vpop.f32.mrb[0].mxu0
    %1192 = vmatprep.mubr.bf16.mxu0 0
    %1193 = vmatmul.mubr.bf16.gmra.mrb[0].mxu0 %v1062
    %v1194 = vpop.f32.mrb[0].mxu0
    %v1195 = vadd.f32 %v749, %v1194
    %v1196 = vpop.f32.mrb[0].mxu0
    %v1197 = vpop.f32.mrb[0].mxu0
    %v1198 = vadd.f32 %v752, %v1197
    %v1199 = vpop.f32.mrb[0].mxu0
    %1200 = vmatprep.mubr.bf16.mxu0 0
    %1201 = vmatmul.mubr.bf16.gmra.mrb[0].mxu0 %v1064
    %v1202 = vpop.f32.mrb[0].mxu0
    %v1203 = vadd.f32 %v757, %v1202
    %v1204 = vpop.f32.mrb[0].mxu0
    %v1205 = vpop.f32.mrb[0].mxu0
    %v1206 = vadd.f32 %v760, %v1205
    %v1207 = vpop.f32.mrb[0].mxu0
    %1208 = vmatprep.mubr.bf16.mxu0 0
    %1209 = vmatmul.mubr.bf16.gmra.mrb[0].mxu0 %v1066
    %v1210 = vpop.f32.mrb[0].mxu0
    %v1211 = vadd.f32 %v765, %v1210
    %v1212 = vpop.f32.mrb[0].mxu0
    %v1213 = vpop.f32.mrb[0].mxu0
    %v1214 = vadd.f32 %v768, %v1213
    %v1215 = vpop.f32.mrb[0].mxu0
    %1216 = vmatprep.mubr.bf16.mxu0 0
    %1217 = vmatmul.mubr.bf16.gmra.mrb[0].mxu0 %v1068
    %v1218 = vpop.f32.mrb[0].mxu0
    %v1219 = vadd.f32 %v773, %v1218
    %v1220 = vpop.f32.mrb[0].mxu0
    %v1221 = vpop.f32.mrb[0].mxu0
    %v1222 = vadd.f32 %v776, %v1221
    %v1223 = vpop.f32.mrb[0].mxu0
    %1224 = vmatprep.mubr.bf16.mxu0 0
    %1225 = vmatmul.mubr.bf16.gmra.mrb[0].mxu0 %v1070
    %v1226 = vpop.f32.mrb[0].mxu0
    %v1227 = vadd.f32 %v781, %v1226
    %v1228 = vpop.f32.mrb[0].mxu0
    %v1229 = vpop.f32.mrb[0].mxu0
    %v1230 = vadd.f32 %v784, %v1229
    %v1231 = vpop.f32.mrb[0].mxu0
    %1232 = vmatprep.mubr.bf16.mxu0 0
    %1233 = vmatmul.mubr.bf16.gmra.mrb[0].mxu0 %v1072
    %v1234 = vpop.f32.mrb[0].mxu0
    %v1235 = vadd.f32 %v789, %v1234
    %v1236 = vpop.f32.mrb[0].mxu0
    %v1237 = vpop.f32.mrb[0].mxu0
    %v1238 = vadd.f32 %v792, %v1237
    %v1239 = vpop.f32.mrb[0].mxu0
    %1240 = vmatprep.mubr.bf16.mxu0 0
    %1241 = vmatmul.mubr.bf16.gmra.mrb[0].mxu0 %v1074
    %v1242 = vpop.f32.mrb[0].mxu0
    %v1243 = vadd.f32 %v797, %v1242
    %v1244 = vpop.f32.mrb[0].mxu0
    %v1245 = vpop.f32.mrb[0].mxu0
    %v1246 = vadd.f32 %v800, %v1245
    %v1247 = vpop.f32.mrb[0].mxu0
    %1248 = vmatprep.mubr.bf16.mxu0 0
    %1249 = vmatmul.mubr.bf16.gmra.mrb[0].mxu0 %v1076
    %v1250 = vpop.f32.mrb[0].mxu0
    %v1251 = vadd.f32 %v805, %v1250
    %v1252 = vpop.f32.mrb[0].mxu0
    %v1253 = vpop.f32.mrb[0].mxu0
    %v1254 = vadd.f32 %v808, %v1253
    %v1255 = vpop.f32.mrb[0].mxu0
    %1256 = vmatprep.mubr.bf16.mxu0 0
    %1257 = vmatmul.mubr.bf16.gmra.mrb[0].mxu0 %v1078
    %v1258 = vpop.f32.mrb[0].mxu0
    %v1259 = vadd.f32 %v813, %v1258
    %v1260 = vpop.f32.mrb[0].mxu0
    %v1261 = vpop.f32.mrb[0].mxu0
    %v1262 = vadd.f32 %v816, %v1261
    %v1263 = vpop.f32.mrb[0].mxu0
    %1264 = vmatprep.mubr.bf16.mxu0 0
    %1265 = vmatmul.mubr.bf16.gmra.mrb[0].mxu0 %v1080
    %v1266 = vpop.f32.mrb[0].mxu0
    %v1267 = vadd.f32 %v821, %v1266
    %v1268 = vpop.f32.mrb[0].mxu0
    %v1269 = vpop.f32.mrb[0].mxu0
    %v1270 = vadd.f32 %v824, %v1269
    %v1271 = vpop.f32.mrb[0].mxu0
    %1272 = vmatprep.mubr.bf16.mxu0 0
    %1273 = vmatmul.mubr.bf16.gmra.mrb[0].mxu0 %v1082
    %v1274 = vpop.f32.mrb[0].mxu0
    %v1275 = vadd.f32 %v829, %v1274
    %v1276 = vpop.f32.mrb[0].mxu0
    %v1277 = vpop.f32.mrb[0].mxu0
    %v1278 = vadd.f32 %v832, %v1277
    %v1279 = vpop.f32.mrb[0].mxu0
    %1280 = vmatprep.mubr.bf16.mxu0 0
    %1281 = vmatmul.mubr.bf16.gmra.mrb[0].mxu0 %v1084
    %v1282 = vpop.f32.mrb[0].mxu0
    %v1283 = vadd.f32 %v837, %v1282
    %v1284 = vpop.f32.mrb[0].mxu0
    %v1285 = vpop.f32.mrb[0].mxu0
    %v1286 = vadd.f32 %v840, %v1285
    %v1287 = vpop.f32.mrb[0].mxu0
    %1288 = vmatprep.mubr.bf16.mxu0 0
    %1289 = vmatmul.mubr.bf16.gmra.mrb[0].mxu0 %v1086
    %v1290 = vpop.f32.mrb[0].mxu0
    %v1291 = vadd.f32 %v845, %v1290
    %v1292 = vpop.f32.mrb[0].mxu0
    %v1293 = vpop.f32.mrb[0].mxu0
    %v1294 = vadd.f32 %v848, %v1293
    %v1295 = vpop.f32.mrb[0].mxu0
    %1296 = vmatprep.mubr.bf16.mxu0 0
    %1297 = vmatmul.mubr.bf16.gmra.mrb[0].mxu0 %v1088
    %v1298 = vpop.f32.mrb[0].mxu0
    %v1299 = vadd.f32 %v853, %v1298
    %v1300 = vpop.f32.mrb[0].mxu0
    %v1301 = vpop.f32.mrb[0].mxu0
    %v1302 = vadd.f32 %v856, %v1301
    %v1303 = vpop.f32.mrb[0].mxu0
    %1304 = vmatprep.mubr.bf16.mxu0 0
    %1305 = vmatmul.mubr.bf16.gmra.mrb[0].mxu0 %v1090
    %v1306 = vpop.f32.mrb[0].mxu0
    %v1307 = vadd.f32 %v861, %v1306
    %v1308 = vpop.f32.mrb[0].mxu0
    %v1309 = vpop.f32.mrb[0].mxu0
    %v1310 = vadd.f32 %v864, %v1309
    %v1311 = vpop.f32.mrb[0].mxu0
    %1312 = vmatprep.mubr.bf16.mxu0 0
    %1313 = vmatmul.mubr.bf16.gmra.mrb[0].mxu0 %v1092
    %v1314 = vpop.f32.mrb[0].mxu0
    %v1315 = vadd.f32 %v869, %v1314
    %v1316 = vpop.f32.mrb[0].mxu0
    %v1317 = vpop.f32.mrb[0].mxu0
    %v1318 = vadd.f32 %v872, %v1317
    %v1319 = vpop.f32.mrb[0].mxu0
    %1320 = vmatprep.mubr.bf16.mxu0 0
    %1321 = vmatmul.mubr.bf16.gmra.mrb[0].mxu0 %v1094
    %v1322 = vpop.f32.mrb[0].mxu0
    %v1323 = vadd.f32 %v877, %v1322
    %v1324 = vpop.f32.mrb[0].mxu0
    %v1325 = vpop.f32.mrb[0].mxu0
    %v1326 = vadd.f32 %v880, %v1325
    %v1327 = vpop.f32.mrb[0].mxu0
    %1328 = vmatprep.mubr.bf16.mxu0 0
    %1329 = vmatmul.mubr.bf16.gmra.mrb[0].mxu0 %v1096
    %v1330 = vpop.f32.mrb[0].mxu0
    %v1331 = vadd.f32 %v885, %v1330
    %v1332 = vpop.f32.mrb[0].mxu0
    %v1333 = vpop.f32.mrb[0].mxu0
    %v1334 = vadd.f32 %v888, %v1333
    %v1335 = vpop.f32.mrb[0].mxu0
    %1336 = vmatprep.mubr.bf16.mxu0 0
    %1337 = vmatmul.mubr.bf16.gmra.mrb[0].mxu0 %v1098
    %v1338 = vpop.f32.mrb[0].mxu0
    %v1339 = vadd.f32 %v893, %v1338
    %v1340 = vpop.f32.mrb[0].mxu0
    %v1341 = vpop.f32.mrb[0].mxu0
    %v1342 = vadd.f32 %v896, %v1341
    %v1343 = vpop.f32.mrb[0].mxu0
    %1344 = vmatprep.mubr.bf16.mxu0 0
    %1345 = vmatmul.mubr.bf16.gmra.mrb[0].mxu0 %v1100
    %v1346 = vpop.f32.mrb[0].mxu0
    %v1347 = vadd.f32 %v901, %v1346
    %v1348 = vpop.f32.mrb[0].mxu0
    %v1349 = vpop.f32.mrb[0].mxu0
    %v1350 = vadd.f32 %v904, %v1349
    %v1351 = vpop.f32.mrb[0].mxu0
    %1352 = vmatprep.mubr.bf16.mxu0 0
    %1353 = vmatmul.mubr.bf16.gmra.mrb[0].mxu0 %v1102
    %v1354 = vpop.f32.mrb[0].mxu0
    %v1355 = vadd.f32 %v909, %v1354
    %v1356 = vpop.f32.mrb[0].mxu0
    %v1357 = vpop.f32.mrb[0].mxu0
    %v1358 = vadd.f32 %v912, %v1357
    %v1359 = vpop.f32.mrb[0].mxu0
    %1360 = vmatprep.mubr.bf16.mxu0 0
    %1361 = vmatmul.mubr.bf16.gmra.mrb[0].mxu0 %v1104
    %v1362 = vpop.f32.mrb[0].mxu0
    %v1363 = vadd.f32 %v917, %v1362
    %v1364 = vpop.f32.mrb[0].mxu0
    %v1365 = vpop.f32.mrb[0].mxu0
    %v1366 = vadd.f32 %v920, %v1365
    %v1367 = vpop.f32.mrb[0].mxu0
    %1368 = vmatprep.mubr.bf16.mxu0 0
    %1369 = vmatmul.mubr.bf16.gmra.mrb[0].mxu0 %v1106
    %v1370 = vpop.f32.mrb[0].mxu0
    %v1371 = vadd.f32 %v925, %v1370
    %v1372 = vpop.f32.mrb[0].mxu0
    %v1373 = vpop.f32.mrb[0].mxu0
    %v1374 = vadd.f32 %v928, %v1373
    %v1375 = vpop.f32.mrb[0].mxu0
    %1376 = vmatprep.mubr.bf16.mxu0 0
    %1377 = vmatmul.mubr.bf16.gmra.mrb[0].mxu0 %v1108
    %v1378 = vpop.f32.mrb[0].mxu0
    %v1379 = vadd.f32 %v933, %v1378
    %v1380 = vpop.f32.mrb[0].mxu0
    %v1381 = vpop.f32.mrb[0].mxu0
    %v1382 = vadd.f32 %v936, %v1381
    %v1383 = vpop.f32.mrb[0].mxu0
    %1384 = vmatprep.mubr.bf16.mxu0 0
    %1385 = vmatmul.mubr.bf16.gmra.mrb[0].mxu0 %v1110
    %v1386 = vpop.f32.mrb[0].mxu0
    %v1387 = vadd.f32 %v941, %v1386
    %v1388 = vpop.f32.mrb[0].mxu0
    %v1389 = vpop.f32.mrb[0].mxu0
    %v1390 = vadd.f32 %v944, %v1389
    %v1391 = vpop.f32.mrb[0].mxu0
    %1392 = vmatprep.mubr.bf16.mxu0 0
    %1393 = vmatmul.mubr.bf16.gmra.mrb[0].mxu0 %v1112
    %v1394 = vpop.f32.mrb[0].mxu0
    %v1395 = vadd.f32 %v949, %v1394
    %v1396 = vpop.f32.mrb[0].mxu0
    %v1397 = vpop.f32.mrb[0].mxu0
    %v1398 = vadd.f32 %v952, %v1397
    %v1399 = vpop.f32.mrb[0].mxu0
    %1400 = vmatprep.mubr.bf16.mxu0 0
    %1401 = vmatmul.mubr.bf16.gmra.mrb[0].mxu0 %v1114
    %v1402 = vpop.f32.mrb[0].mxu0
    %v1403 = vadd.f32 %v957, %v1402
    %v1404 = vpop.f32.mrb[0].mxu0
    %v1405 = vpop.f32.mrb[0].mxu0
    %v1406 = vadd.f32 %v960, %v1405
    %v1407 = vpop.f32.mrb[0].mxu0
    %1408 = vmatprep.mubr.bf16.mxu0 0
    %1409 = vmatmul.mubr.bf16.gmra.mrb[0].mxu0 %v1116
    %v1410 = vpop.f32.mrb[0].mxu0
    %v1411 = vadd.f32 %v965, %v1410
    %v1412 = vpop.f32.mrb[0].mxu0
    %v1413 = vpop.f32.mrb[0].mxu0
    %v1414 = vadd.f32 %v968, %v1413
    %v1415 = vpop.f32.mrb[0].mxu0
    %1416 = vmatprep.mubr.bf16.mxu0 0
    %1417 = vmatmul.mubr.bf16.gmra.mrb[0].mxu0 %v1118
    %v1418 = vpop.f32.mrb[0].mxu0
    %v1419 = vadd.f32 %v973, %v1418
    %v1420 = vpop.f32.mrb[0].mxu0
    %v1421 = vpop.f32.mrb[0].mxu0
    %v1422 = vadd.f32 %v976, %v1421
    %v1423 = vpop.f32.mrb[0].mxu0
    %1424 = vmatprep.mubr.bf16.mxu0 0
    %1425 = vmatmul.mubr.bf16.gmra.mrb[0].mxu0 %v1120
    %v1426 = vpop.f32.mrb[0].mxu0
    %v1427 = vadd.f32 %v981, %v1426
    %v1428 = vpop.f32.mrb[0].mxu0
    %v1429 = vpop.f32.mrb[0].mxu0
    %v1430 = vadd.f32 %v984, %v1429
    %v1431 = vpop.f32.mrb[0].mxu0
    %1432 = vmatprep.mubr.bf16.mxu0 0
    %1433 = vmatmul.mubr.bf16.gmra.mrb[0].mxu0 %v1122
    %v1434 = vpop.f32.mrb[0].mxu0
    %v1435 = vadd.f32 %v989, %v1434
    %v1436 = vpop.f32.mrb[0].mxu0
    %v1437 = vpop.f32.mrb[0].mxu0
    %v1438 = vadd.f32 %v992, %v1437
    %v1439 = vpop.f32.mrb[0].mxu0
    %1440 = vmatprep.mubr.bf16.mxu0 0
    %1441 = vmatmul.mubr.bf16.gmra.mrb[0].mxu0 %v1124
    %v1442 = vpop.f32.mrb[0].mxu0
    %v1443 = vadd.f32 %v997, %v1442
    %v1444 = vpop.f32.mrb[0].mxu0
    %v1445 = vpop.f32.mrb[0].mxu0
    %v1446 = vadd.f32 %v1000, %v1445
    %v1447 = vpop.f32.mrb[0].mxu0
    %1448 = vmatprep.mubr.bf16.mxu0 0
    %1449 = vmatmul.mubr.bf16.gmra.mrb[0].mxu0 %v1126
    %v1450 = vpop.f32.mrb[0].mxu0
    %v1451 = vadd.f32 %v1005, %v1450
    %v1452 = vpop.f32.mrb[0].mxu0
    %v1453 = vpop.f32.mrb[0].mxu0
    %v1454 = vadd.f32 %v1008, %v1453
    %v1455 = vpop.f32.mrb[0].mxu0
    %1456 = vmatprep.mubr.bf16.mxu0 0
    %1457 = vmatmul.mubr.bf16.gmra.mrb[0].mxu0 %v1128
    %v1458 = vpop.f32.mrb[0].mxu0
    %v1459 = vadd.f32 %v1013, %v1458
    %v1460 = vpop.f32.mrb[0].mxu0
    %v1461 = vpop.f32.mrb[0].mxu0
    %v1462 = vadd.f32 %v1016, %v1461
    %v1463 = vpop.f32.mrb[0].mxu0
    %1464 = vmatprep.mubr.bf16.mxu0 0
    %1465 = vmatmul.mubr.bf16.gmra.mrb[0].mxu0 %v1130
    %v1466 = vpop.f32.mrb[0].mxu0
    %v1467 = vadd.f32 %v1021, %v1466
    %v1468 = vpop.f32.mrb[0].mxu0
    %v1469 = vpop.f32.mrb[0].mxu0
    %v1470 = vadd.f32 %v1024, %v1469
    %v1471 = vpop.f32.mrb[0].mxu0
    %1472 = vmatprep.mubr.bf16.mxu0 0
    %1473 = vmatmul.mubr.bf16.gmra.mrb[0].mxu0 %v1132
    %v1474 = vpop.f32.mrb[0].mxu0
    %v1475 = vadd.f32 %v1029, %v1474
    %v1476 = vpop.f32.mrb[0].mxu0
    %v1477 = vpop.f32.mrb[0].mxu0
    %v1478 = vadd.f32 %v1032, %v1477
    %v1479 = vpop.f32.mrb[0].mxu0
    %1480 = vmatprep.mubr.bf16.mxu0 0
    %1481 = vmatmul.mubr.bf16.gmra.mrb[0].mxu0 %v1134
    %v1482 = vpop.f32.mrb[0].mxu0
    %v1483 = vadd.f32 %v1037, %v1482
    %v1484 = vpop.f32.mrb[0].mxu0
    %v1485 = vpop.f32.mrb[0].mxu0
    %v1486 = vadd.f32 %v1040, %v1485
    %v1487 = vpop.f32.mrb[0].mxu0
    %1488 = vmatprep.mubr.bf16.mxu0 0
    %1489 = vmatmul.mubr.bf16.gmra.mrb[0].mxu0 %v1136
    %v1490 = vpop.f32.mrb[0].mxu0
    %v1491 = vadd.f32 %v1045, %v1490
    %v1492 = vpop.f32.mrb[0].mxu0
    %v1493 = vpop.f32.mrb[0].mxu0
    %v1494 = vadd.f32 %v1048, %v1493
    %v1495 = vpop.f32.mrb[0].mxu0
    %1496 = vmatprep.mubr.bf16.mxu0 0
    %1497 = vmatmul.mubr.bf16.gmra.mrb[0].mxu0 %v1139
    %v1498 = vpop.f32.mrb[0].mxu0
    %v1499 = vadd.f32 %v1053, %v1498
    %v1500 = vpop.f32.mrb[0].mxu0
    %v1501 = vpop.f32.mrb[0].mxu0
    %v1502 = vpop.f32.mrb[0].mxu0
    %1503 = vdwg.mxu0
    %s1504 = scalar_lea.vmem %s1, 4
    %v1505 = vld [vmem:[%s1504] sm:$0x3]
    %vm1547 = vcmask 1046528
    %v1548 = vrot.slane %v197, 1
    %v1549 = vrot.slane %v198, 1
    %v1550 = vsel %vm1547, %v1548, %v1549
    %v1551 = vrot.slane %v199, 1
    %v1552 = vsel %vm1547, %v1549, %v1551
    %v1553 = vrot.slane %v200, 1
    %v1554 = vsel %vm1547, %v1551, %v1553
    %v1555 = vrot.slane %v201, 1
    %v1556 = vsel %vm1547, %v1553, %v1555
    %v1557 = vrot.slane %v202, 1
    %v1558 = vsel %vm1547, %v1555, %v1557
    %v1559 = vrot.slane %v203, 1
    %v1560 = vsel %vm1547, %v1557, %v1559
    %v1561 = vrot.slane %v204, 1
    %v1562 = vsel %vm1547, %v1559, %v1561
    %v1563 = vrot.slane %v205, 1
    %v1564 = vsel %vm1547, %v1561, %v1563
    %v1565 = vrot.slane %v206, 1
    %v1566 = vsel %vm1547, %v1563, %v1565
    %v1567 = vrot.slane %v207, 1
    %v1568 = vsel %vm1547, %v1565, %v1567
    %v1569 = vrot.slane %v208, 1
    %v1570 = vsel %vm1547, %v1567, %v1569
    %v1571 = vrot.slane %v209, 1
    %v1572 = vsel %vm1547, %v1569, %v1571
    %v1573 = vrot.slane %v210, 1
    %v1574 = vsel %vm1547, %v1571, %v1573
    %v1575 = vrot.slane %v211, 1
    %v1576 = vsel %vm1547, %v1573, %v1575
    %v1577 = vrot.slane %v212, 1
    %v1578 = vsel %vm1547, %v1575, %v1577
    %v1579 = vrot.slane %v213, 1
    %v1580 = vsel %vm1547, %v1577, %v1579
    %v1581 = vrot.slane %v214, 1
    %v1582 = vsel %vm1547, %v1579, %v1581
    %v1583 = vrot.slane %v215, 1
    %v1584 = vsel %vm1547, %v1581, %v1583
    %v1585 = vrot.slane %v216, 1
    %v1586 = vsel %vm1547, %v1583, %v1585
    %v1587 = vrot.slane %v217, 1
    %v1588 = vsel %vm1547, %v1585, %v1587
    %v1589 = vrot.slane %v218, 1
    %v1590 = vsel %vm1547, %v1587, %v1589
    %v1591 = vrot.slane %v219, 1
    %v1592 = vsel %vm1547, %v1589, %v1591
    %v1593 = vrot.slane %v220, 1
    %v1594 = vsel %vm1547, %v1591, %v1593
    %v1595 = vrot.slane %v221, 1
    %v1596 = vsel %vm1547, %v1593, %v1595
    %v1597 = vrot.slane %v222, 1
    %v1598 = vsel %vm1547, %v1595, %v1597
    %v1599 = vrot.slane %v223, 1
    %v1600 = vsel %vm1547, %v1597, %v1599
    %v1601 = vrot.slane %v224, 1
    %v1602 = vsel %vm1547, %v1599, %v1601
    %v1603 = vrot.slane %v225, 1
    %v1604 = vsel %vm1547, %v1601, %v1603
    %v1605 = vrot.slane %v226, 1
    %v1606 = vsel %vm1547, %v1603, %v1605
    %v1607 = vrot.slane %v227, 1
    %v1608 = vsel %vm1547, %v1605, %v1607
    %v1609 = vrot.slane %v228, 1
    %v1610 = vsel %vm1547, %v1607, %v1609
    %v1611 = vrot.slane %v229, 1
    %v1612 = vsel %vm1547, %v1609, %v1611
    %v1613 = vrot.slane %v230, 1
    %v1614 = vsel %vm1547, %v1611, %v1613
    %v1615 = vrot.slane %v231, 1
    %v1616 = vsel %vm1547, %v1613, %v1615
    %v1617 = vrot.slane %v232, 1
    %v1618 = vsel %vm1547, %v1615, %v1617
    %v1619 = vrot.slane %v233, 1
    %v1620 = vsel %vm1547, %v1617, %v1619
    %v1621 = vrot.slane %v234, 1
    %v1622 = vsel %vm1547, %v1619, %v1621
    %v1623 = vrot.slane %v235, 1
    %v1624 = vsel %vm1547, %v1621, %v1623
    %v1625 = vrot.slane %v236, 1
    %v1626 = vsel %vm1547, %v1623, %v1625
    %v1627 = vrot.slane %v239, 1
    %v1628 = vsel %vm1547, %v1625, %v1627
    %v1630 = vsel %vm570, %v1550, 0
    %v1633 = vsel %vm570, %v1552, 0
    %v1636 = vsel %vm570, %v1554, 0
    %v1639 = vsel %vm570, %v1556, 0
    %v1642 = vsel %vm570, %v1558, 0
    %v1645 = vsel %vm570, %v1560, 0
    %v1648 = vsel %vm570, %v1562, 0
    %v1651 = vsel %vm570, %v1564, 0
    %v1654 = vsel %vm570, %v1566, 0
    %v1657 = vsel %vm570, %v1568, 0
    %v1660 = vsel %vm570, %v1570, 0
    %v1663 = vsel %vm570, %v1572, 0
    %v1666 = vsel %vm570, %v1574, 0
    %v1669 = vsel %vm570, %v1576, 0
    %v1672 = vsel %vm570, %v1578, 0
    %v1675 = vsel %vm570, %v1580, 0
    %v1678 = vsel %vm570, %v1582, 0
    %v1681 = vsel %vm570, %v1584, 0
    %v1684 = vsel %vm570, %v1586, 0
    %v1687 = vsel %vm570, %v1588, 0
    %v1690 = vsel %vm570, %v1590, 0
    %v1693 = vsel %vm570, %v1592, 0
    %v1696 = vsel %vm570, %v1594, 0
    %v1699 = vsel %vm570, %v1596, 0
    %v1702 = vsel %vm570, %v1598, 0
    %v1705 = vsel %vm570, %v1600, 0
    %v1708 = vsel %vm570, %v1602, 0
    %v1711 = vsel %vm570, %v1604, 0
    %v1714 = vsel %vm570, %v1606, 0
    %v1717 = vsel %vm570, %v1608, 0
    %v1720 = vsel %vm570, %v1610, 0
    %v1723 = vsel %vm570, %v1612, 0
    %v1726 = vsel %vm570, %v1614, 0
    %v1729 = vsel %vm570, %v1616, 0
    %v1732 = vsel %vm570, %v1618, 0
    %v1735 = vsel %vm570, %v1620, 0
    %v1738 = vsel %vm570, %v1622, 0
    %v1741 = vsel %vm570, %v1624, 0
    %v1744 = vsel %vm570, %v1626, 0
    %v1747 = vsel %vm570, %v1628, 0
    %v1750 = vsel %vm570, %v1627, 0
    %v1753 = vsel %vm694, %v1505, 0
    %1755 = vmatprep.subr.bf16.mxu0 0
    %1756 = vmatpush1.bf16.msra.mxu0 %v1753
    %1757 = vmatprep.subr.bf16.mxu0 0
    %1758 = vmatpush1.bf16.msra.mxu0 0
    %1759 = vmatprep.subr.bf16.mxu0 0
    %1760 = vmatpush1.bf16.msra.mxu0 0
    %1761 = vmatprep.subr.bf16.mxu0 0
    %1762 = vmatpush1.bf16.msra.mxu0 0
    %1763 = vmatprep.subr.bf16.mxu0 0
    %1764 = vmatpush1.bf16.msra.mxu0 0
    %1765 = vmatprep.subr.bf16.mxu0 0
    %1766 = vmatpush1.bf16.msra.mxu0 0
    %1767 = vmatprep.subr.bf16.mxu0 0
    %1768 = vmatpush1.bf16.msra.mxu0 0
    %1769 = vmatprep.subr.bf16.mxu0 0
    %1770 = vmatpush1.bf16.msra.mxu0 0
    %1771 = vmatprep.subr.bf16.mxu0 0
    %1772 = vmatpush1.bf16.msra.mxu0 0
    %1773 = vmatprep.subr.bf16.mxu0 0
    %1774 = vmatpush1.bf16.msra.mxu0 0
    %1775 = vmatprep.subr.bf16.mxu0 0
    %1776 = vmatpush1.bf16.msra.mxu0 0
    %1777 = vmatprep.subr.bf16.mxu0 0
    %1778 = vmatpush1.bf16.msra.mxu0 0
    %1779 = vmatprep.subr.bf16.mxu0 0
    %1780 = vmatpush1.bf16.msra.mxu0 0
    %1781 = vmatprep.subr.bf16.mxu0 0
    %1782 = vmatpush1.bf16.msra.mxu0 0
    %1783 = vmatprep.subr.bf16.mxu0 0
    %1784 = vmatpush1.bf16.msra.mxu0 0
    %1785 = vmatprep.subr.bf16.mxu0 0
    %1786 = vmatpush1.bf16.msra.mxu0 0
    %1787 = vmatprep.mubr.bf16.mxu0 0
    %1788 = vmatmul.mubr.bf16.gmra.mrb[0].mxu0 %v1630
    %v1789 = vpop.f32.mrb[0].mxu0
    %v1790 = vadd.f32 0.0, %v1789
    %v1791 = vpop.f32.mrb[0].mxu0
    %v1792 = vpop.f32.mrb[0].mxu0
    %v1793 = vadd.f32 0.0, %v1792
    %v1794 = vpop.f32.mrb[0].mxu0
    %1795 = vmatprep.mubr.bf16.mxu0 0
    %1796 = vmatmul.mubr.bf16.gmra.mrb[0].mxu0 %v1633
    %v1797 = vpop.f32.mrb[0].mxu0
    %v1798 = vadd.f32 0.0, %v1797
    %v1799 = vpop.f32.mrb[0].mxu0
    %v1800 = vpop.f32.mrb[0].mxu0
    %v1801 = vadd.f32 0.0, %v1800
    %v1802 = vpop.f32.mrb[0].mxu0
    %1803 = vmatprep.mubr.bf16.mxu0 0
    %1804 = vmatmul.mubr.bf16.gmra.mrb[0].mxu0 %v1636
    %v1805 = vpop.f32.mrb[0].mxu0
    %v1806 = vadd.f32 0.0, %v1805
    %v1807 = vpop.f32.mrb[0].mxu0
    %v1808 = vpop.f32.mrb[0].mxu0
    %v1809 = vadd.f32 0.0, %v1808
    %v1810 = vpop.f32.mrb[0].mxu0
    %1811 = vmatprep.mubr.bf16.mxu0 0
    %1812 = vmatmul.mubr.bf16.gmra.mrb[0].mxu0 %v1639
    %v1813 = vpop.f32.mrb[0].mxu0
    %v1814 = vadd.f32 0.0, %v1813
    %v1815 = vpop.f32.mrb[0].mxu0
    %v1816 = vpop.f32.mrb[0].mxu0
    %v1817 = vadd.f32 0.0, %v1816
    %v1818 = vpop.f32.mrb[0].mxu0
    %1819 = vmatprep.mubr.bf16.mxu0 0
    %1820 = vmatmul.mubr.bf16.gmra.mrb[0].mxu0 %v1642
    %v1821 = vpop.f32.mrb[0].mxu0
    %v1822 = vadd.f32 0.0, %v1821
    %v1823 = vpop.f32.mrb[0].mxu0
    %v1824 = vpop.f32.mrb[0].mxu0
    %v1825 = vadd.f32 0.0, %v1824
    %v1826 = vpop.f32.mrb[0].mxu0
    %1827 = vmatprep.mubr.bf16.mxu0 0
    %1828 = vmatmul.mubr.bf16.gmra.mrb[0].mxu0 %v1645
    %v1829 = vpop.f32.mrb[0].mxu0
    %v1830 = vadd.f32 0.0, %v1829
    %v1831 = vpop.f32.mrb[0].mxu0
    %v1832 = vpop.f32.mrb[0].mxu0
    %v1833 = vadd.f32 0.0, %v1832
    %v1834 = vpop.f32.mrb[0].mxu0
    %1835 = vmatprep.mubr.bf16.mxu0 0
    %1836 = vmatmul.mubr.bf16.gmra.mrb[0].mxu0 %v1648
    %v1837 = vpop.f32.mrb[0].mxu0
    %v1838 = vadd.f32 0.0, %v1837
    %v1839 = vpop.f32.mrb[0].mxu0
    %v1840 = vpop.f32.mrb[0].mxu0
    %v1841 = vadd.f32 0.0, %v1840
    %v1842 = vpop.f32.mrb[0].mxu0
    %1843 = vmatprep.mubr.bf16.mxu0 0
    %1844 = vmatmul.mubr.bf16.gmra.mrb[0].mxu0 %v1651
    %v1845 = vpop.f32.mrb[0].mxu0
    %v1846 = vadd.f32 0.0, %v1845
    %v1847 = vpop.f32.mrb[0].mxu0
    %v1848 = vpop.f32.mrb[0].mxu0
    %v1849 = vadd.f32 0.0, %v1848
    %v1850 = vpop.f32.mrb[0].mxu0
    %1851 = vmatprep.mubr.bf16.mxu0 0
    %1852 = vmatmul.mubr.bf16.gmra.mrb[0].mxu0 %v1654
    %v1853 = vpop.f32.mrb[0].mxu0
    %v1854 = vadd.f32 0.0, %v1853
    %v1855 = vpop.f32.mrb[0].mxu0
    %v1856 = vpop.f32.mrb[0].mxu0
    %v1857 = vadd.f32 0.0, %v1856
    %v1858 = vpop.f32.mrb[0].mxu0
    %1859 = vmatprep.mubr.bf16.mxu0 0
    %1860 = vmatmul.mubr.bf16.gmra.mrb[0].mxu0 %v1657
    %v1861 = vpop.f32.mrb[0].mxu0
    %v1862 = vadd.f32 0.0, %v1861
    %v1863 = vpop.f32.mrb[0].mxu0
    %v1864 = vpop.f32.mrb[0].mxu0
    %v1865 = vadd.f32 0.0, %v1864
    %v1866 = vpop.f32.mrb[0].mxu0
    %1867 = vmatprep.mubr.bf16.mxu0 0
    %1868 = vmatmul.mubr.bf16.gmra.mrb[0].mxu0 %v1660
    %v1869 = vpop.f32.mrb[0].mxu0
    %v1870 = vadd.f32 0.0, %v1869
    %v1871 = vpop.f32.mrb[0].mxu0
    %v1872 = vpop.f32.mrb[0].mxu0
    %v1873 = vadd.f32 0.0, %v1872
    %v1874 = vpop.f32.mrb[0].mxu0
    %1875 = vmatprep.mubr.bf16.mxu0 0
    %1876 = vmatmul.mubr.bf16.gmra.mrb[0].mxu0 %v1663
    %v1877 = vpop.f32.mrb[0].mxu0
    %v1878 = vadd.f32 0.0, %v1877
    %v1879 = vpop.f32.mrb[0].mxu0
    %v1880 = vpop.f32.mrb[0].mxu0
    %v1881 = vadd.f32 0.0, %v1880
    %v1882 = vpop.f32.mrb[0].mxu0
    %1883 = vmatprep.mubr.bf16.mxu0 0
    %1884 = vmatmul.mubr.bf16.gmra.mrb[0].mxu0 %v1666
    %v1885 = vpop.f32.mrb[0].mxu0
    %v1886 = vadd.f32 0.0, %v1885
    %v1887 = vpop.f32.mrb[0].mxu0
    %v1888 = vpop.f32.mrb[0].mxu0
    %v1889 = vadd.f32 0.0, %v1888
    %v1890 = vpop.f32.mrb[0].mxu0
    %1891 = vmatprep.mubr.bf16.mxu0 0
    %1892 = vmatmul.mubr.bf16.gmra.mrb[0].mxu0 %v1669
    %v1893 = vpop.f32.mrb[0].mxu0
    %v1894 = vadd.f32 0.0, %v1893
    %v1895 = vpop.f32.mrb[0].mxu0
    %v1896 = vpop.f32.mrb[0].mxu0
    %v1897 = vadd.f32 0.0, %v1896
    %v1898 = vpop.f32.mrb[0].mxu0
    %1899 = vmatprep.mubr.bf16.mxu0 0
    %1900 = vmatmul.mubr.bf16.gmra.mrb[0].mxu0 %v1672
    %v1901 = vpop.f32.mrb[0].mxu0
    %v1902 = vadd.f32 0.0, %v1901
    %v1903 = vpop.f32.mrb[0].mxu0
    %v1904 = vpop.f32.mrb[0].mxu0
    %v1905 = vadd.f32 0.0, %v1904
    %v1906 = vpop.f32.mrb[0].mxu0
    %1907 = vmatprep.mubr.bf16.mxu0 0
    %1908 = vmatmul.mubr.bf16.gmra.mrb[0].mxu0 %v1675
    %v1909 = vpop.f32.mrb[0].mxu0
    %v1910 = vadd.f32 0.0, %v1909
    %v1911 = vpop.f32.mrb[0].mxu0
    %v1912 = vpop.f32.mrb[0].mxu0
    %v1913 = vadd.f32 0.0, %v1912
    %v1914 = vpop.f32.mrb[0].mxu0
    %1915 = vmatprep.mubr.bf16.mxu0 0
    %1916 = vmatmul.mubr.bf16.gmra.mrb[0].mxu0 %v1678
    %v1917 = vpop.f32.mrb[0].mxu0
    %v1918 = vadd.f32 0.0, %v1917
    %v1919 = vpop.f32.mrb[0].mxu0
    %v1920 = vpop.f32.mrb[0].mxu0
    %v1921 = vadd.f32 0.0, %v1920
    %v1922 = vpop.f32.mrb[0].mxu0
    %1923 = vmatprep.mubr.bf16.mxu0 0
    %1924 = vmatmul.mubr.bf16.gmra.mrb[0].mxu0 %v1681
    %v1925 = vpop.f32.mrb[0].mxu0
    %v1926 = vadd.f32 0.0, %v1925
    %v1927 = vpop.f32.mrb[0].mxu0
    %v1928 = vpop.f32.mrb[0].mxu0
    %v1929 = vadd.f32 0.0, %v1928
    %v1930 = vpop.f32.mrb[0].mxu0
    %1931 = vmatprep.mubr.bf16.mxu0 0
    %1932 = vmatmul.mubr.bf16.gmra.mrb[0].mxu0 %v1684
    %v1933 = vpop.f32.mrb[0].mxu0
    %v1934 = vadd.f32 0.0, %v1933
    %v1935 = vpop.f32.mrb[0].mxu0
    %v1936 = vpop.f32.mrb[0].mxu0
    %v1937 = vadd.f32 0.0, %v1936
    %v1938 = vpop.f32.mrb[0].mxu0
    %1939 = vmatprep.mubr.bf16.mxu0 0
    %1940 = vmatmul.mubr.bf16.gmra.mrb[0].mxu0 %v1687
    %v1941 = vpop.f32.mrb[0].mxu0
    %v1942 = vadd.f32 0.0, %v1941
    %v1943 = vpop.f32.mrb[0].mxu0
    %v1944 = vpop.f32.mrb[0].mxu0
    %v1945 = vadd.f32 0.0, %v1944
    %v1946 = vpop.f32.mrb[0].mxu0
    %1947 = vmatprep.mubr.bf16.mxu0 0
    %1948 = vmatmul.mubr.bf16.gmra.mrb[0].mxu0 %v1690
    %v1949 = vpop.f32.mrb[0].mxu0
    %v1950 = vadd.f32 0.0, %v1949
    %v1951 = vpop.f32.mrb[0].mxu0
    %v1952 = vpop.f32.mrb[0].mxu0
    %v1953 = vadd.f32 0.0, %v1952
    %v1954 = vpop.f32.mrb[0].mxu0
    %1955 = vmatprep.mubr.bf16.mxu0 0
    %1956 = vmatmul.mubr.bf16.gmra.mrb[0].mxu0 %v1693
    %v1957 = vpop.f32.mrb[0].mxu0
    %v1958 = vadd.f32 0.0, %v1957
    %v1959 = vpop.f32.mrb[0].mxu0
    %v1960 = vpop.f32.mrb[0].mxu0
    %v1961 = vadd.f32 0.0, %v1960
    %v1962 = vpop.f32.mrb[0].mxu0
    %1963 = vmatprep.mubr.bf16.mxu0 0
    %1964 = vmatmul.mubr.bf16.gmra.mrb[0].mxu0 %v1696
    %v1965 = vpop.f32.mrb[0].mxu0
    %v1966 = vadd.f32 0.0, %v1965
    %v1967 = vpop.f32.mrb[0].mxu0
    %v1968 = vpop.f32.mrb[0].mxu0
    %v1969 = vadd.f32 0.0, %v1968
    %v1970 = vpop.f32.mrb[0].mxu0
    %1971 = vmatprep.mubr.bf16.mxu0 0
    %1972 = vmatmul.mubr.bf16.gmra.mrb[0].mxu0 %v1699
    %v1973 = vpop.f32.mrb[0].mxu0
    %v1974 = vadd.f32 0.0, %v1973
    %v1975 = vpop.f32.mrb[0].mxu0
    %v1976 = vpop.f32.mrb[0].mxu0
    %v1977 = vadd.f32 0.0, %v1976
    %v1978 = vpop.f32.mrb[0].mxu0
    %1979 = vmatprep.mubr.bf16.mxu0 0
    %1980 = vmatmul.mubr.bf16.gmra.mrb[0].mxu0 %v1702
    %v1981 = vpop.f32.mrb[0].mxu0
    %v1982 = vadd.f32 0.0, %v1981
    %v1983 = vpop.f32.mrb[0].mxu0
    %v1984 = vpop.f32.mrb[0].mxu0
    %v1985 = vadd.f32 0.0, %v1984
    %v1986 = vpop.f32.mrb[0].mxu0
    %1987 = vmatprep.mubr.bf16.mxu0 0
    %1988 = vmatmul.mubr.bf16.gmra.mrb[0].mxu0 %v1705
    %v1989 = vpop.f32.mrb[0].mxu0
    %v1990 = vadd.f32 0.0, %v1989
    %v1991 = vpop.f32.mrb[0].mxu0
    %v1992 = vpop.f32.mrb[0].mxu0
    %v1993 = vadd.f32 0.0, %v1992
    %v1994 = vpop.f32.mrb[0].mxu0
    %1995 = vmatprep.mubr.bf16.mxu0 0
    %1996 = vmatmul.mubr.bf16.gmra.mrb[0].mxu0 %v1708
    %v1997 = vpop.f32.mrb[0].mxu0
    %v1998 = vadd.f32 0.0, %v1997
    %v1999 = vpop.f32.mrb[0].mxu0
    %v2000 = vpop.f32.mrb[0].mxu0
    %v2001 = vadd.f32 0.0, %v2000
    %v2002 = vpop.f32.mrb[0].mxu0
    %2003 = vmatprep.mubr.bf16.mxu0 0
    %2004 = vmatmul.mubr.bf16.gmra.mrb[0].mxu0 %v1711
    %v2005 = vpop.f32.mrb[0].mxu0
    %v2006 = vadd.f32 0.0, %v2005
    %v2007 = vpop.f32.mrb[0].mxu0
    %v2008 = vpop.f32.mrb[0].mxu0
    %v2009 = vadd.f32 0.0, %v2008
    %v2010 = vpop.f32.mrb[0].mxu0
    %2011 = vmatprep.mubr.bf16.mxu0 0
    %2012 = vmatmul.mubr.bf16.gmra.mrb[0].mxu0 %v1714
    %v2013 = vpop.f32.mrb[0].mxu0
    %v2014 = vadd.f32 0.0, %v2013
    %v2015 = vpop.f32.mrb[0].mxu0
    %v2016 = vpop.f32.mrb[0].mxu0
    %v2017 = vadd.f32 0.0, %v2016
    %v2018 = vpop.f32.mrb[0].mxu0
    %2019 = vmatprep.mubr.bf16.mxu0 0
    %2020 = vmatmul.mubr.bf16.gmra.mrb[0].mxu0 %v1717
    %v2021 = vpop.f32.mrb[0].mxu0
    %v2022 = vadd.f32 0.0, %v2021
    %v2023 = vpop.f32.mrb[0].mxu0
    %v2024 = vpop.f32.mrb[0].mxu0
    %v2025 = vadd.f32 0.0, %v2024
    %v2026 = vpop.f32.mrb[0].mxu0
    %2027 = vmatprep.mubr.bf16.mxu0 0
    %2028 = vmatmul.mubr.bf16.gmra.mrb[0].mxu0 %v1720
    %v2029 = vpop.f32.mrb[0].mxu0
    %v2030 = vadd.f32 0.0, %v2029
    %v2031 = vpop.f32.mrb[0].mxu0
    %v2032 = vpop.f32.mrb[0].mxu0
    %v2033 = vadd.f32 0.0, %v2032
    %v2034 = vpop.f32.mrb[0].mxu0
    %2035 = vmatprep.mubr.bf16.mxu0 0
    %2036 = vmatmul.mubr.bf16.gmra.mrb[0].mxu0 %v1723
    %v2037 = vpop.f32.mrb[0].mxu0
    %v2038 = vadd.f32 0.0, %v2037
    %v2039 = vpop.f32.mrb[0].mxu0
    %v2040 = vpop.f32.mrb[0].mxu0
    %v2041 = vadd.f32 0.0, %v2040
    %v2042 = vpop.f32.mrb[0].mxu0
    %2043 = vmatprep.mubr.bf16.mxu0 0
    %2044 = vmatmul.mubr.bf16.gmra.mrb[0].mxu0 %v1726
    %v2045 = vpop.f32.mrb[0].mxu0
    %v2046 = vadd.f32 0.0, %v2045
    %v2047 = vpop.f32.mrb[0].mxu0
    %v2048 = vpop.f32.mrb[0].mxu0
    %v2049 = vadd.f32 0.0, %v2048
    %v2050 = vpop.f32.mrb[0].mxu0
    %2051 = vmatprep.mubr.bf16.mxu0 0
    %2052 = vmatmul.mubr.bf16.gmra.mrb[0].mxu0 %v1729
    %v2053 = vpop.f32.mrb[0].mxu0
    %v2054 = vadd.f32 0.0, %v2053
    %v2055 = vpop.f32.mrb[0].mxu0
    %v2056 = vpop.f32.mrb[0].mxu0
    %v2057 = vadd.f32 0.0, %v2056
    %v2058 = vpop.f32.mrb[0].mxu0
    %2059 = vmatprep.mubr.bf16.mxu0 0
    %2060 = vmatmul.mubr.bf16.gmra.mrb[0].mxu0 %v1732
    %v2061 = vpop.f32.mrb[0].mxu0
    %v2062 = vadd.f32 0.0, %v2061
    %v2063 = vpop.f32.mrb[0].mxu0
    %v2064 = vpop.f32.mrb[0].mxu0
    %v2065 = vadd.f32 0.0, %v2064
    %v2066 = vpop.f32.mrb[0].mxu0
    %2067 = vmatprep.mubr.bf16.mxu0 0
    %2068 = vmatmul.mubr.bf16.gmra.mrb[0].mxu0 %v1735
    %v2069 = vpop.f32.mrb[0].mxu0
    %v2070 = vadd.f32 0.0, %v2069
    %v2071 = vpop.f32.mrb[0].mxu0
    %v2072 = vpop.f32.mrb[0].mxu0
    %v2073 = vadd.f32 0.0, %v2072
    %v2074 = vpop.f32.mrb[0].mxu0
    %2075 = vmatprep.mubr.bf16.mxu0 0
    %2076 = vmatmul.mubr.bf16.gmra.mrb[0].mxu0 %v1738
    %v2077 = vpop.f32.mrb[0].mxu0
    %v2078 = vadd.f32 0.0, %v2077
    %v2079 = vpop.f32.mrb[0].mxu0
    %v2080 = vpop.f32.mrb[0].mxu0
    %v2081 = vadd.f32 0.0, %v2080
    %v2082 = vpop.f32.mrb[0].mxu0
    %2083 = vmatprep.mubr.bf16.mxu0 0
    %2084 = vmatmul.mubr.bf16.gmra.mrb[0].mxu0 %v1741
    %v2085 = vpop.f32.mrb[0].mxu0
    %v2086 = vadd.f32 0.0, %v2085
    %v2087 = vpop.f32.mrb[0].mxu0
    %v2088 = vpop.f32.mrb[0].mxu0
    %v2089 = vadd.f32 0.0, %v2088
    %v2090 = vpop.f32.mrb[0].mxu0
    %2091 = vmatprep.mubr.bf16.mxu0 0
    %2092 = vmatmul.mubr.bf16.gmra.mrb[0].mxu0 %v1744
    %v2093 = vpop.f32.mrb[0].mxu0
    %v2094 = vadd.f32 0.0, %v2093
    %v2095 = vpop.f32.mrb[0].mxu0
    %v2096 = vpop.f32.mrb[0].mxu0
    %v2097 = vadd.f32 0.0, %v2096
    %v2098 = vpop.f32.mrb[0].mxu0
    %2099 = vmatprep.mubr.bf16.mxu0 0
    %2100 = vmatmul.mubr.bf16.gmra.mrb[0].mxu0 %v1747
    %v2101 = vpop.f32.mrb[0].mxu0
    %v2102 = vadd.f32 0.0, %v2101
    %v2103 = vpop.f32.mrb[0].mxu0
    %v2104 = vpop.f32.mrb[0].mxu0
    %v2105 = vadd.f32 0.0, %v2104
    %v2106 = vpop.f32.mrb[0].mxu0
    %2107 = vmatprep.mubr.bf16.mxu0 0
    %2108 = vmatmul.mubr.bf16.gmra.mrb[0].mxu0 %v1750
    %v2109 = vpop.f32.mrb[0].mxu0
    %v2110 = vadd.f32 0.0, %v2109
    %v2111 = vpop.f32.mrb[0].mxu0
    %v2112 = vpop.f32.mrb[0].mxu0
    %v2113 = vpop.f32.mrb[0].mxu0
    %2114 = vdwg.mxu0
    %v2115 = vadd.f32 %v1179, %v1790
    %v2116 = vadd.f32 %v1182, %v1793
    %v2117 = vadd.f32 %v1187, %v1798
    %v2118 = vadd.f32 %v1190, %v1801
    %v2119 = vadd.f32 %v1195, %v1806
    %v2120 = vadd.f32 %v1198, %v1809
    %v2121 = vadd.f32 %v1203, %v1814
    %v2122 = vadd.f32 %v1206, %v1817
    %v2123 = vadd.f32 %v1211, %v1822
    %v2124 = vadd.f32 %v1214, %v1825
    %v2125 = vadd.f32 %v1219, %v1830
    %v2126 = vadd.f32 %v1222, %v1833
    %v2127 = vadd.f32 %v1227, %v1838
    %v2128 = vadd.f32 %v1230, %v1841
    %v2129 = vadd.f32 %v1235, %v1846
    %v2130 = vadd.f32 %v1238, %v1849
    %v2131 = vadd.f32 %v1243, %v1854
    %v2132 = vadd.f32 %v1246, %v1857
    %v2133 = vadd.f32 %v1251, %v1862
    %v2134 = vadd.f32 %v1254, %v1865
    %v2135 = vadd.f32 %v1259, %v1870
    %v2136 = vadd.f32 %v1262, %v1873
    %v2137 = vadd.f32 %v1267, %v1878
    %v2138 = vadd.f32 %v1270, %v1881
    %v2139 = vadd.f32 %v1275, %v1886
    %v2140 = vadd.f32 %v1278, %v1889
    %v2141 = vadd.f32 %v1283, %v1894
    %v2142 = vadd.f32 %v1286, %v1897
    %v2143 = vadd.f32 %v1291, %v1902
    %v2144 = vadd.f32 %v1294, %v1905
    %v2145 = vadd.f32 %v1299, %v1910
    %v2146 = vadd.f32 %v1302, %v1913
    %v2147 = vadd.f32 %v1307, %v1918
    %v2148 = vadd.f32 %v1310, %v1921
    %v2149 = vadd.f32 %v1315, %v1926
    %v2150 = vadd.f32 %v1318, %v1929
    %v2151 = vadd.f32 %v1323, %v1934
    %v2152 = vadd.f32 %v1326, %v1937
    %v2153 = vadd.f32 %v1331, %v1942
    %v2154 = vadd.f32 %v1334, %v1945
    %v2155 = vadd.f32 %v1339, %v1950
    %v2156 = vadd.f32 %v1342, %v1953
    %v2157 = vadd.f32 %v1347, %v1958
    %v2158 = vadd.f32 %v1350, %v1961
    %v2159 = vadd.f32 %v1355, %v1966
    %v2160 = vadd.f32 %v1358, %v1969
    %v2161 = vadd.f32 %v1363, %v1974
    %v2162 = vadd.f32 %v1366, %v1977
    %v2163 = vadd.f32 %v1371, %v1982
    %v2164 = vadd.f32 %v1374, %v1985
    %v2165 = vadd.f32 %v1379, %v1990
    %v2166 = vadd.f32 %v1382, %v1993
    %v2167 = vadd.f32 %v1387, %v1998
    %v2168 = vadd.f32 %v1390, %v2001
    %v2169 = vadd.f32 %v1395, %v2006
    %v2170 = vadd.f32 %v1398, %v2009
    %v2171 = vadd.f32 %v1403, %v2014
    %v2172 = vadd.f32 %v1406, %v2017
    %v2173 = vadd.f32 %v1411, %v2022
    %v2174 = vadd.f32 %v1414, %v2025
    %v2175 = vadd.f32 %v1419, %v2030
    %v2176 = vadd.f32 %v1422, %v2033
    %v2177 = vadd.f32 %v1427, %v2038
    %v2178 = vadd.f32 %v1430, %v2041
    %v2179 = vadd.f32 %v1435, %v2046
    %v2180 = vadd.f32 %v1438, %v2049
    %v2181 = vadd.f32 %v1443, %v2054
    %v2182 = vadd.f32 %v1446, %v2057
    %v2183 = vadd.f32 %v1451, %v2062
    %v2184 = vadd.f32 %v1454, %v2065
    %v2185 = vadd.f32 %v1459, %v2070
    %v2186 = vadd.f32 %v1462, %v2073
    %v2187 = vadd.f32 %v1467, %v2078
    %v2188 = vadd.f32 %v1470, %v2081
    %v2189 = vadd.f32 %v1475, %v2086
    %v2190 = vadd.f32 %v1478, %v2089
    %v2191 = vadd.f32 %v1483, %v2094
    %v2192 = vadd.f32 %v1486, %v2097
    %v2193 = vadd.f32 %v1491, %v2102
    %v2194 = vadd.f32 %v1494, %v2105
    %v2195 = vadd.f32 %v1499, %v2110
    %v2196 = vpack.c.bf16 %v194, %v193
    %s2197 = scalar_lea.vmem %s1, 6
    %v2198 = vld [vmem:[%s2197] sm:$0x3]
    %v2200 = vrot.slane %v2196, 1
    %v2201 = vsel %vm1547, %v1627, %v2200
    %v2203 = vsel %vm570, %v2201, 0
    %v2206 = vsel %vm570, %v2200, 0
    %v2209 = vsel %vm694, %v2198, 0
    %2211 = vmatprep.subr.bf16.mxu0 0
    %2212 = vmatpush1.bf16.msra.mxu0 %v2209
    %2213 = vmatprep.subr.bf16.mxu0 0
    %2214 = vmatpush1.bf16.msra.mxu0 0
    %2215 = vmatprep.subr.bf16.mxu0 0
    %2216 = vmatpush1.bf16.msra.mxu0 0
    %2217 = vmatprep.subr.bf16.mxu0 0
    %2218 = vmatpush1.bf16.msra.mxu0 0
    %2219 = vmatprep.subr.bf16.mxu0 0
    %2220 = vmatpush1.bf16.msra.mxu0 0
    %2221 = vmatprep.subr.bf16.mxu0 0
    %2222 = vmatpush1.bf16.msra.mxu0 0
    %2223 = vmatprep.subr.bf16.mxu0 0
    %2224 = vmatpush1.bf16.msra.mxu0 0
    %2225 = vmatprep.subr.bf16.mxu0 0
    %2226 = vmatpush1.bf16.msra.mxu0 0
    %2227 = vmatprep.subr.bf16.mxu0 0
    %2228 = vmatpush1.bf16.msra.mxu0 0
    %2229 = vmatprep.subr.bf16.mxu0 0
    %2230 = vmatpush1.bf16.msra.mxu0 0
    %2231 = vmatprep.subr.bf16.mxu0 0
    %2232 = vmatpush1.bf16.msra.mxu0 0
    %2233 = vmatprep.subr.bf16.mxu0 0
    %2234 = vmatpush1.bf16.msra.mxu0 0
    %2235 = vmatprep.subr.bf16.mxu0 0
    %2236 = vmatpush1.bf16.msra.mxu0 0
    %2237 = vmatprep.subr.bf16.mxu0 0
    %2238 = vmatpush1.bf16.msra.mxu0 0
    %2239 = vmatprep.subr.bf16.mxu0 0
    %2240 = vmatpush1.bf16.msra.mxu0 0
    %2241 = vmatprep.subr.bf16.mxu0 0
    %2242 = vmatpush1.bf16.msra.mxu0 0
    %2243 = vmatprep.mubr.bf16.mxu0 0
    %2244 = vmatmul.mubr.bf16.gmra.mrb[0].mxu0 %v1633
    %v2245 = vpop.f32.mrb[0].mxu0
    %v2246 = vadd.f32 0.0, %v2245
    %v2247 = vpop.f32.mrb[0].mxu0
    %v2248 = vpop.f32.mrb[0].mxu0
    %v2249 = vadd.f32 0.0, %v2248
    %v2250 = vpop.f32.mrb[0].mxu0
    %2251 = vmatprep.mubr.bf16.mxu0 0
    %2252 = vmatmul.mubr.bf16.gmra.mrb[0].mxu0 %v1636
    %v2253 = vpop.f32.mrb[0].mxu0
    %v2254 = vadd.f32 0.0, %v2253
    %v2255 = vpop.f32.mrb[0].mxu0
    %v2256 = vpop.f32.mrb[0].mxu0
    %v2257 = vadd.f32 0.0, %v2256
    %v2258 = vpop.f32.mrb[0].mxu0
    %2259 = vmatprep.mubr.bf16.mxu0 0
    %2260 = vmatmul.mubr.bf16.gmra.mrb[0].mxu0 %v1639
    %v2261 = vpop.f32.mrb[0].mxu0
    %v2262 = vadd.f32 0.0, %v2261
    %v2263 = vpop.f32.mrb[0].mxu0
    %v2264 = vpop.f32.mrb[0].mxu0
    %v2265 = vadd.f32 0.0, %v2264
    %v2266 = vpop.f32.mrb[0].mxu0
    %2267 = vmatprep.mubr.bf16.mxu0 0
    %2268 = vmatmul.mubr.bf16.gmra.mrb[0].mxu0 %v1642
    %v2269 = vpop.f32.mrb[0].mxu0
    %v2270 = vadd.f32 0.0, %v2269
    %v2271 = vpop.f32.mrb[0].mxu0
    %v2272 = vpop.f32.mrb[0].mxu0
    %v2273 = vadd.f32 0.0, %v2272
    %v2274 = vpop.f32.mrb[0].mxu0
    %2275 = vmatprep.mubr.bf16.mxu0 0
    %2276 = vmatmul.mubr.bf16.gmra.mrb[0].mxu0 %v1645
    %v2277 = vpop.f32.mrb[0].mxu0
    %v2278 = vadd.f32 0.0, %v2277
    %v2279 = vpop.f32.mrb[0].mxu0
    %v2280 = vpop.f32.mrb[0].mxu0
    %v2281 = vadd.f32 0.0, %v2280
    %v2282 = vpop.f32.mrb[0].mxu0
    %2283 = vmatprep.mubr.bf16.mxu0 0
    %2284 = vmatmul.mubr.bf16.gmra.mrb[0].mxu0 %v1648
    %v2285 = vpop.f32.mrb[0].mxu0
    %v2286 = vadd.f32 0.0, %v2285
    %v2287 = vpop.f32.mrb[0].mxu0
    %v2288 = vpop.f32.mrb[0].mxu0
    %v2289 = vadd.f32 0.0, %v2288
    %v2290 = vpop.f32.mrb[0].mxu0
    %2291 = vmatprep.mubr.bf16.mxu0 0
    %2292 = vmatmul.mubr.bf16.gmra.mrb[0].mxu0 %v1651
    %v2293 = vpop.f32.mrb[0].mxu0
    %v2294 = vadd.f32 0.0, %v2293
    %v2295 = vpop.f32.mrb[0].mxu0
    %v2296 = vpop.f32.mrb[0].mxu0
    %v2297 = vadd.f32 0.0, %v2296
    %v2298 = vpop.f32.mrb[0].mxu0
    %2299 = vmatprep.mubr.bf16.mxu0 0
    %2300 = vmatmul.mubr.bf16.gmra.mrb[0].mxu0 %v1654
    %v2301 = vpop.f32.mrb[0].mxu0
    %v2302 = vadd.f32 0.0, %v2301
    %v2303 = vpop.f32.mrb[0].mxu0
    %v2304 = vpop.f32.mrb[0].mxu0
    %v2305 = vadd.f32 0.0, %v2304
    %v2306 = vpop.f32.mrb[0].mxu0
    %2307 = vmatprep.mubr.bf16.mxu0 0
    %2308 = vmatmul.mubr.bf16.gmra.mrb[0].mxu0 %v1657
    %v2309 = vpop.f32.mrb[0].mxu0
    %v2310 = vadd.f32 0.0, %v2309
    %v2311 = vpop.f32.mrb[0].mxu0
    %v2312 = vpop.f32.mrb[0].mxu0
    %v2313 = vadd.f32 0.0, %v2312
    %v2314 = vpop.f32.mrb[0].mxu0
    %2315 = vmatprep.mubr.bf16.mxu0 0
    %2316 = vmatmul.mubr.bf16.gmra.mrb[0].mxu0 %v1660
    %v2317 = vpop.f32.mrb[0].mxu0
    %v2318 = vadd.f32 0.0, %v2317
    %v2319 = vpop.f32.mrb[0].mxu0
    %v2320 = vpop.f32.mrb[0].mxu0
    %v2321 = vadd.f32 0.0, %v2320
    %v2322 = vpop.f32.mrb[0].mxu0
    %2323 = vmatprep.mubr.bf16.mxu0 0
    %2324 = vmatmul.mubr.bf16.gmra.mrb[0].mxu0 %v1663
    %v2325 = vpop.f32.mrb[0].mxu0
    %v2326 = vadd.f32 0.0, %v2325
    %v2327 = vpop.f32.mrb[0].mxu0
    %v2328 = vpop.f32.mrb[0].mxu0
    %v2329 = vadd.f32 0.0, %v2328
    %v2330 = vpop.f32.mrb[0].mxu0
    %2331 = vmatprep.mubr.bf16.mxu0 0
    %2332 = vmatmul.mubr.bf16.gmra.mrb[0].mxu0 %v1666
    %v2333 = vpop.f32.mrb[0].mxu0
    %v2334 = vadd.f32 0.0, %v2333
    %v2335 = vpop.f32.mrb[0].mxu0
    %v2336 = vpop.f32.mrb[0].mxu0
    %v2337 = vadd.f32 0.0, %v2336
    %v2338 = vpop.f32.mrb[0].mxu0
    %2339 = vmatprep.mubr.bf16.mxu0 0
    %2340 = vmatmul.mubr.bf16.gmra.mrb[0].mxu0 %v1669
    %v2341 = vpop.f32.mrb[0].mxu0
    %v2342 = vadd.f32 0.0, %v2341
    %v2343 = vpop.f32.mrb[0].mxu0
    %v2344 = vpop.f32.mrb[0].mxu0
    %v2345 = vadd.f32 0.0, %v2344
    %v2346 = vpop.f32.mrb[0].mxu0
    %2347 = vmatprep.mubr.bf16.mxu0 0
    %2348 = vmatmul.mubr.bf16.gmra.mrb[0].mxu0 %v1672
    %v2349 = vpop.f32.mrb[0].mxu0
    %v2350 = vadd.f32 0.0, %v2349
    %v2351 = vpop.f32.mrb[0].mxu0
    %v2352 = vpop.f32.mrb[0].mxu0
    %v2353 = vadd.f32 0.0, %v2352
    %v2354 = vpop.f32.mrb[0].mxu0
    %2355 = vmatprep.mubr.bf16.mxu0 0
    %2356 = vmatmul.mubr.bf16.gmra.mrb[0].mxu0 %v1675
    %v2357 = vpop.f32.mrb[0].mxu0
    %v2358 = vadd.f32 0.0, %v2357
    %v2359 = vpop.f32.mrb[0].mxu0
    %v2360 = vpop.f32.mrb[0].mxu0
    %v2361 = vadd.f32 0.0, %v2360
    %v2362 = vpop.f32.mrb[0].mxu0
    %2363 = vmatprep.mubr.bf16.mxu0 0
    %2364 = vmatmul.mubr.bf16.gmra.mrb[0].mxu0 %v1678
    %v2365 = vpop.f32.mrb[0].mxu0
    %v2366 = vadd.f32 0.0, %v2365
    %v2367 = vpop.f32.mrb[0].mxu0
    %v2368 = vpop.f32.mrb[0].mxu0
    %v2369 = vadd.f32 0.0, %v2368
    %v2370 = vpop.f32.mrb[0].mxu0
    %2371 = vmatprep.mubr.bf16.mxu0 0
    %2372 = vmatmul.mubr.bf16.gmra.mrb[0].mxu0 %v1681
    %v2373 = vpop.f32.mrb[0].mxu0
    %v2374 = vadd.f32 0.0, %v2373
    %v2375 = vpop.f32.mrb[0].mxu0
    %v2376 = vpop.f32.mrb[0].mxu0
    %v2377 = vadd.f32 0.0, %v2376
    %v2378 = vpop.f32.mrb[0].mxu0
    %2379 = vmatprep.mubr.bf16.mxu0 0
    %2380 = vmatmul.mubr.bf16.gmra.mrb[0].mxu0 %v1684
    %v2381 = vpop.f32.mrb[0].mxu0
    %v2382 = vadd.f32 0.0, %v2381
    %v2383 = vpop.f32.mrb[0].mxu0
    %v2384 = vpop.f32.mrb[0].mxu0
    %v2385 = vadd.f32 0.0, %v2384
    %v2386 = vpop.f32.mrb[0].mxu0
    %2387 = vmatprep.mubr.bf16.mxu0 0
    %2388 = vmatmul.mubr.bf16.gmra.mrb[0].mxu0 %v1687
    %v2389 = vpop.f32.mrb[0].mxu0
    %v2390 = vadd.f32 0.0, %v2389
    %v2391 = vpop.f32.mrb[0].mxu0
    %v2392 = vpop.f32.mrb[0].mxu0
    %v2393 = vadd.f32 0.0, %v2392
    %v2394 = vpop.f32.mrb[0].mxu0
    %2395 = vmatprep.mubr.bf16.mxu0 0
    %2396 = vmatmul.mubr.bf16.gmra.mrb[0].mxu0 %v1690
    %v2397 = vpop.f32.mrb[0].mxu0
    %v2398 = vadd.f32 0.0, %v2397
    %v2399 = vpop.f32.mrb[0].mxu0
    %v2400 = vpop.f32.mrb[0].mxu0
    %v2401 = vadd.f32 0.0, %v2400
    %v2402 = vpop.f32.mrb[0].mxu0
    %2403 = vmatprep.mubr.bf16.mxu0 0
    %2404 = vmatmul.mubr.bf16.gmra.mrb[0].mxu0 %v1693
    %v2405 = vpop.f32.mrb[0].mxu0
    %v2406 = vadd.f32 0.0, %v2405
    %v2407 = vpop.f32.mrb[0].mxu0
    %v2408 = vpop.f32.mrb[0].mxu0
    %v2409 = vadd.f32 0.0, %v2408
    %v2410 = vpop.f32.mrb[0].mxu0
    %2411 = vmatprep.mubr.bf16.mxu0 0
    %2412 = vmatmul.mubr.bf16.gmra.mrb[0].mxu0 %v1696
    %v2413 = vpop.f32.mrb[0].mxu0
    %v2414 = vadd.f32 0.0, %v2413
    %v2415 = vpop.f32.mrb[0].mxu0
    %v2416 = vpop.f32.mrb[0].mxu0
    %v2417 = vadd.f32 0.0, %v2416
    %v2418 = vpop.f32.mrb[0].mxu0
    %2419 = vmatprep.mubr.bf16.mxu0 0
    %2420 = vmatmul.mubr.bf16.gmra.mrb[0].mxu0 %v1699
    %v2421 = vpop.f32.mrb[0].mxu0
    %v2422 = vadd.f32 0.0, %v2421
    %v2423 = vpop.f32.mrb[0].mxu0
    %v2424 = vpop.f32.mrb[0].mxu0
    %v2425 = vadd.f32 0.0, %v2424
    %v2426 = vpop.f32.mrb[0].mxu0
    %2427 = vmatprep.mubr.bf16.mxu0 0
    %2428 = vmatmul.mubr.bf16.gmra.mrb[0].mxu0 %v1702
    %v2429 = vpop.f32.mrb[0].mxu0
    %v2430 = vadd.f32 0.0, %v2429
    %v2431 = vpop.f32.mrb[0].mxu0
    %v2432 = vpop.f32.mrb[0].mxu0
    %v2433 = vadd.f32 0.0, %v2432
    %v2434 = vpop.f32.mrb[0].mxu0
    %2435 = vmatprep.mubr.bf16.mxu0 0
    %2436 = vmatmul.mubr.bf16.gmra.mrb[0].mxu0 %v1705
    %v2437 = vpop.f32.mrb[0].mxu0
    %v2438 = vadd.f32 0.0, %v2437
    %v2439 = vpop.f32.mrb[0].mxu0
    %v2440 = vpop.f32.mrb[0].mxu0
    %v2441 = vadd.f32 0.0, %v2440
    %v2442 = vpop.f32.mrb[0].mxu0
    %2443 = vmatprep.mubr.bf16.mxu0 0
    %2444 = vmatmul.mubr.bf16.gmra.mrb[0].mxu0 %v1708
    %v2445 = vpop.f32.mrb[0].mxu0
    %v2446 = vadd.f32 0.0, %v2445
    %v2447 = vpop.f32.mrb[0].mxu0
    %v2448 = vpop.f32.mrb[0].mxu0
    %v2449 = vadd.f32 0.0, %v2448
    %v2450 = vpop.f32.mrb[0].mxu0
    %2451 = vmatprep.mubr.bf16.mxu0 0
    %2452 = vmatmul.mubr.bf16.gmra.mrb[0].mxu0 %v1711
    %v2453 = vpop.f32.mrb[0].mxu0
    %v2454 = vadd.f32 0.0, %v2453
    %v2455 = vpop.f32.mrb[0].mxu0
    %v2456 = vpop.f32.mrb[0].mxu0
    %v2457 = vadd.f32 0.0, %v2456
    %v2458 = vpop.f32.mrb[0].mxu0
    %2459 = vmatprep.mubr.bf16.mxu0 0
    %2460 = vmatmul.mubr.bf16.gmra.mrb[0].mxu0 %v1714
    %v2461 = vpop.f32.mrb[0].mxu0
    %v2462 = vadd.f32 0.0, %v2461
    %v2463 = vpop.f32.mrb[0].mxu0
    %v2464 = vpop.f32.mrb[0].mxu0
    %v2465 = vadd.f32 0.0, %v2464
    %v2466 = vpop.f32.mrb[0].mxu0
    %2467 = vmatprep.mubr.bf16.mxu0 0
    %2468 = vmatmul.mubr.bf16.gmra.mrb[0].mxu0 %v1717
    %v2469 = vpop.f32.mrb[0].mxu0
    %v2470 = vadd.f32 0.0, %v2469
    %v2471 = vpop.f32.mrb[0].mxu0
    %v2472 = vpop.f32.mrb[0].mxu0
    %v2473 = vadd.f32 0.0, %v2472
    %v2474 = vpop.f32.mrb[0].mxu0
    %2475 = vmatprep.mubr.bf16.mxu0 0
    %2476 = vmatmul.mubr.bf16.gmra.mrb[0].mxu0 %v1720
    %v2477 = vpop.f32.mrb[0].mxu0
    %v2478 = vadd.f32 0.0, %v2477
    %v2479 = vpop.f32.mrb[0].mxu0
    %v2480 = vpop.f32.mrb[0].mxu0
    %v2481 = vadd.f32 0.0, %v2480
    %v2482 = vpop.f32.mrb[0].mxu0
    %2483 = vmatprep.mubr.bf16.mxu0 0
    %2484 = vmatmul.mubr.bf16.gmra.mrb[0].mxu0 %v1723
    %v2485 = vpop.f32.mrb[0].mxu0
    %v2486 = vadd.f32 0.0, %v2485
    %v2487 = vpop.f32.mrb[0].mxu0
    %v2488 = vpop.f32.mrb[0].mxu0
    %v2489 = vadd.f32 0.0, %v2488
    %v2490 = vpop.f32.mrb[0].mxu0
    %2491 = vmatprep.mubr.bf16.mxu0 0
    %2492 = vmatmul.mubr.bf16.gmra.mrb[0].mxu0 %v1726
    %v2493 = vpop.f32.mrb[0].mxu0
    %v2494 = vadd.f32 0.0, %v2493
    %v2495 = vpop.f32.mrb[0].mxu0
    %v2496 = vpop.f32.mrb[0].mxu0
    %v2497 = vadd.f32 0.0, %v2496
    %v2498 = vpop.f32.mrb[0].mxu0
    %2499 = vmatprep.mubr.bf16.mxu0 0
    %2500 = vmatmul.mubr.bf16.gmra.mrb[0].mxu0 %v1729
    %v2501 = vpop.f32.mrb[0].mxu0
    %v2502 = vadd.f32 0.0, %v2501
    %v2503 = vpop.f32.mrb[0].mxu0
    %v2504 = vpop.f32.mrb[0].mxu0
    %v2505 = vadd.f32 0.0, %v2504
    %v2506 = vpop.f32.mrb[0].mxu0
    %2507 = vmatprep.mubr.bf16.mxu0 0
    %2508 = vmatmul.mubr.bf16.gmra.mrb[0].mxu0 %v1732
    %v2509 = vpop.f32.mrb[0].mxu0
    %v2510 = vadd.f32 0.0, %v2509
    %v2511 = vpop.f32.mrb[0].mxu0
    %v2512 = vpop.f32.mrb[0].mxu0
    %v2513 = vadd.f32 0.0, %v2512
    %v2514 = vpop.f32.mrb[0].mxu0
    %2515 = vmatprep.mubr.bf16.mxu0 0
    %2516 = vmatmul.mubr.bf16.gmra.mrb[0].mxu0 %v1735
    %v2517 = vpop.f32.mrb[0].mxu0
    %v2518 = vadd.f32 0.0, %v2517
    %v2519 = vpop.f32.mrb[0].mxu0
    %v2520 = vpop.f32.mrb[0].mxu0
    %v2521 = vadd.f32 0.0, %v2520
    %v2522 = vpop.f32.mrb[0].mxu0
    %2523 = vmatprep.mubr.bf16.mxu0 0
    %2524 = vmatmul.mubr.bf16.gmra.mrb[0].mxu0 %v1738
    %v2525 = vpop.f32.mrb[0].mxu0
    %v2526 = vadd.f32 0.0, %v2525
    %v2527 = vpop.f32.mrb[0].mxu0
    %v2528 = vpop.f32.mrb[0].mxu0
    %v2529 = vadd.f32 0.0, %v2528
    %v2530 = vpop.f32.mrb[0].mxu0
    %2531 = vmatprep.mubr.bf16.mxu0 0
    %2532 = vmatmul.mubr.bf16.gmra.mrb[0].mxu0 %v1741
    %v2533 = vpop.f32.mrb[0].mxu0
    %v2534 = vadd.f32 0.0, %v2533
    %v2535 = vpop.f32.mrb[0].mxu0
    %v2536 = vpop.f32.mrb[0].mxu0
    %v2537 = vadd.f32 0.0, %v2536
    %v2538 = vpop.f32.mrb[0].mxu0
    %2539 = vmatprep.mubr.bf16.mxu0 0
    %2540 = vmatmul.mubr.bf16.gmra.mrb[0].mxu0 %v1744
    %v2541 = vpop.f32.mrb[0].mxu0
    %v2542 = vadd.f32 0.0, %v2541
    %v2543 = vpop.f32.mrb[0].mxu0
    %v2544 = vpop.f32.mrb[0].mxu0
    %v2545 = vadd.f32 0.0, %v2544
    %v2546 = vpop.f32.mrb[0].mxu0
    %2547 = vmatprep.mubr.bf16.mxu0 0
    %2548 = vmatmul.mubr.bf16.gmra.mrb[0].mxu0 %v1747
    %v2549 = vpop.f32.mrb[0].mxu0
    %v2550 = vadd.f32 0.0, %v2549
    %v2551 = vpop.f32.mrb[0].mxu0
    %v2552 = vpop.f32.mrb[0].mxu0
    %v2553 = vadd.f32 0.0, %v2552
    %v2554 = vpop.f32.mrb[0].mxu0
    %2555 = vmatprep.mubr.bf16.mxu0 0
    %2556 = vmatmul.mubr.bf16.gmra.mrb[0].mxu0 %v2203
    %v2557 = vpop.f32.mrb[0].mxu0
    %v2558 = vadd.f32 0.0, %v2557
    %v2559 = vpop.f32.mrb[0].mxu0
    %v2560 = vpop.f32.mrb[0].mxu0
    %v2561 = vadd.f32 0.0, %v2560
    %v2562 = vpop.f32.mrb[0].mxu0
    %2563 = vmatprep.mubr.bf16.mxu0 0
    %2564 = vmatmul.mubr.bf16.gmra.mrb[0].mxu0 %v2206
    %v2565 = vpop.f32.mrb[0].mxu0
    %v2566 = vadd.f32 0.0, %v2565
    %v2567 = vpop.f32.mrb[0].mxu0
    %v2568 = vpop.f32.mrb[0].mxu0
    %v2569 = vpop.f32.mrb[0].mxu0
    %2570 = vdwg.mxu0
    %v2571 = vadd.f32 %v2115, %v2246
    %v2572 = vadd.f32 %v2116, %v2249
    %v2573 = vadd.f32 %v2117, %v2254
    %v2574 = vadd.f32 %v2118, %v2257
    %v2575 = vadd.f32 %v2119, %v2262
    %v2576 = vadd.f32 %v2120, %v2265
    %v2577 = vadd.f32 %v2121, %v2270
    %v2578 = vadd.f32 %v2122, %v2273
    %v2579 = vadd.f32 %v2123, %v2278
    %v2580 = vadd.f32 %v2124, %v2281
    %v2581 = vadd.f32 %v2125, %v2286
    %v2582 = vadd.f32 %v2126, %v2289
    %v2583 = vadd.f32 %v2127, %v2294
    %v2584 = vadd.f32 %v2128, %v2297
    %v2585 = vadd.f32 %v2129, %v2302
    %v2586 = vadd.f32 %v2130, %v2305
    %v2587 = vadd.f32 %v2131, %v2310
    %v2588 = vadd.f32 %v2132, %v2313
    %v2589 = vadd.f32 %v2133, %v2318
    %v2590 = vadd.f32 %v2134, %v2321
    %v2591 = vadd.f32 %v2135, %v2326
    %v2592 = vadd.f32 %v2136, %v2329
    %v2593 = vadd.f32 %v2137, %v2334
    %v2594 = vadd.f32 %v2138, %v2337
    %v2595 = vadd.f32 %v2139, %v2342
    %v2596 = vadd.f32 %v2140, %v2345
    %v2597 = vadd.f32 %v2141, %v2350
    %v2598 = vadd.f32 %v2142, %v2353
    %v2599 = vadd.f32 %v2143, %v2358
    %v2600 = vadd.f32 %v2144, %v2361
    %v2601 = vadd.f32 %v2145, %v2366
    %v2602 = vadd.f32 %v2146, %v2369
    %v2603 = vadd.f32 %v2147, %v2374
    %v2604 = vadd.f32 %v2148, %v2377
    %v2605 = vadd.f32 %v2149, %v2382
    %v2606 = vadd.f32 %v2150, %v2385
    %v2607 = vadd.f32 %v2151, %v2390
    %v2608 = vadd.f32 %v2152, %v2393
    %v2609 = vadd.f32 %v2153, %v2398
    %v2610 = vadd.f32 %v2154, %v2401
    %v2611 = vadd.f32 %v2155, %v2406
    %v2612 = vadd.f32 %v2156, %v2409
    %v2613 = vadd.f32 %v2157, %v2414
    %v2614 = vadd.f32 %v2158, %v2417
    %v2615 = vadd.f32 %v2159, %v2422
    %v2616 = vadd.f32 %v2160, %v2425
    %v2617 = vadd.f32 %v2161, %v2430
    %v2618 = vadd.f32 %v2162, %v2433
    %v2619 = vadd.f32 %v2163, %v2438
    %v2620 = vadd.f32 %v2164, %v2441
    %v2621 = vadd.f32 %v2165, %v2446
    %v2622 = vadd.f32 %v2166, %v2449
    %v2623 = vadd.f32 %v2167, %v2454
    %v2624 = vadd.f32 %v2168, %v2457
    %v2625 = vadd.f32 %v2169, %v2462
    %v2626 = vadd.f32 %v2170, %v2465
    %v2627 = vadd.f32 %v2171, %v2470
    %v2628 = vadd.f32 %v2172, %v2473
    %v2629 = vadd.f32 %v2173, %v2478
    %v2630 = vadd.f32 %v2174, %v2481
    %v2631 = vadd.f32 %v2175, %v2486
    %v2632 = vadd.f32 %v2176, %v2489
    %v2633 = vadd.f32 %v2177, %v2494
    %v2634 = vadd.f32 %v2178, %v2497
    %v2635 = vadd.f32 %v2179, %v2502
    %v2636 = vadd.f32 %v2180, %v2505
    %v2637 = vadd.f32 %v2181, %v2510
    %v2638 = vadd.f32 %v2182, %v2513
    %v2639 = vadd.f32 %v2183, %v2518
    %v2640 = vadd.f32 %v2184, %v2521
    %v2641 = vadd.f32 %v2185, %v2526
    %v2642 = vadd.f32 %v2186, %v2529
    %v2643 = vadd.f32 %v2187, %v2534
    %v2644 = vadd.f32 %v2188, %v2537
    %v2645 = vadd.f32 %v2189, %v2542
    %v2646 = vadd.f32 %v2190, %v2545
    %v2647 = vadd.f32 %v2191, %v2550
    %v2648 = vadd.f32 %v2192, %v2553
    %v2649 = vadd.f32 %v2193, %v2558
    %v2650 = vadd.f32 %v2194, %v2561
    %v2651 = vadd.f32 %v2195, %v2566
    %s2652 = scalar_lea.vmem %s1, 8
    %v2653 = vld [vmem:[%s2652] sm:$0x3]
    %vm2654 = vsmask.f32 6400
    %v2655 = vrot.slane %v255, 1
    %v2656 = vrot.slane %v251, 2
    %v2657 = vor.u32 %v2655, %v2656
    %v2658 = vrot.slane %v263, 1
    %v2659 = vrot.slane %v259, 2
    %v2660 = vor.u32 %v2658, %v2659
    %v2661 = vsel %vm2654, %v2657, %v2660
    %v2662 = vrot.slane %v271, 1
    %v2663 = vrot.slane %v267, 2
    %v2664 = vor.u32 %v2662, %v2663
    %v2665 = vsel %vm2654, %v2660, %v2664
    %v2666 = vrot.slane %v279, 1
    %v2667 = vrot.slane %v275, 2
    %v2668 = vor.u32 %v2666, %v2667
    %v2669 = vsel %vm2654, %v2664, %v2668
    %v2670 = vrot.slane %v287, 1
    %v2671 = vrot.slane %v283, 2
    %v2672 = vor.u32 %v2670, %v2671
    %v2673 = vsel %vm2654, %v2668, %v2672
    %v2674 = vrot.slane %v295, 1
    %v2675 = vrot.slane %v291, 2
    %v2676 = vor.u32 %v2674, %v2675
    %v2677 = vsel %vm2654, %v2672, %v2676
    %v2678 = vrot.slane %v303, 1
    %v2679 = vrot.slane %v299, 2
    %v2680 = vor.u32 %v2678, %v2679
    %v2681 = vsel %vm2654, %v2676, %v2680
    %v2682 = vrot.slane %v311, 1
    %v2683 = vrot.slane %v307, 2
    %v2684 = vor.u32 %v2682, %v2683
    %v2685 = vsel %vm2654, %v2680, %v2684
    %v2686 = vrot.slane %v319, 1
    %v2687 = vrot.slane %v315, 2
    %v2688 = vor.u32 %v2686, %v2687
    %v2689 = vsel %vm2654, %v2684, %v2688
    %v2690 = vrot.slane %v327, 1
    %v2691 = vrot.slane %v323, 2
    %v2692 = vor.u32 %v2690, %v2691
    %v2693 = vsel %vm2654, %v2688, %v2692
    %v2694 = vrot.slane %v335, 1
    %v2695 = vrot.slane %v331, 2
    %v2696 = vor.u32 %v2694, %v2695
    %v2697 = vsel %vm2654, %v2692, %v2696
    %v2698 = vrot.slane %v343, 1
    %v2699 = vrot.slane %v339, 2
    %v2700 = vor.u32 %v2698, %v2699
    %v2701 = vsel %vm2654, %v2696, %v2700
    %v2702 = vrot.slane %v351, 1
    %v2703 = vrot.slane %v347, 2
    %v2704 = vor.u32 %v2702, %v2703
    %v2705 = vsel %vm2654, %v2700, %v2704
    %v2706 = vrot.slane %v359, 1
    %v2707 = vrot.slane %v355, 2
    %v2708 = vor.u32 %v2706, %v2707
    %v2709 = vsel %vm2654, %v2704, %v2708
    %v2710 = vrot.slane %v367, 1
    %v2711 = vrot.slane %v363, 2
    %v2712 = vor.u32 %v2710, %v2711
    %v2713 = vsel %vm2654, %v2708, %v2712
    %v2714 = vrot.slane %v375, 1
    %v2715 = vrot.slane %v371, 2
    %v2716 = vor.u32 %v2714, %v2715
    %v2717 = vsel %vm2654, %v2712, %v2716
    %v2718 = vrot.slane %v383, 1
    %v2719 = vrot.slane %v379, 2
    %v2720 = vor.u32 %v2718, %v2719
    %v2721 = vsel %vm2654, %v2716, %v2720
    %v2722 = vrot.slane %v391, 1
    %v2723 = vrot.slane %v387, 2
    %v2724 = vor.u32 %v2722, %v2723
    %v2725 = vsel %vm2654, %v2720, %v2724
    %v2726 = vrot.slane %v399, 1
    %v2727 = vrot.slane %v395, 2
    %v2728 = vor.u32 %v2726, %v2727
    %v2729 = vsel %vm2654, %v2724, %v2728
    %v2730 = vrot.slane %v407, 1
    %v2731 = vrot.slane %v403, 2
    %v2732 = vor.u32 %v2730, %v2731
    %v2733 = vsel %vm2654, %v2728, %v2732
    %v2734 = vrot.slane %v415, 1
    %v2735 = vrot.slane %v411, 2
    %v2736 = vor.u32 %v2734, %v2735
    %v2737 = vsel %vm2654, %v2732, %v2736
    %v2738 = vrot.slane %v423, 1
    %v2739 = vrot.slane %v419, 2
    %v2740 = vor.u32 %v2738, %v2739
    %v2741 = vsel %vm2654, %v2736, %v2740
    %v2742 = vrot.slane %v431, 1
    %v2743 = vrot.slane %v427, 2
    %v2744 = vor.u32 %v2742, %v2743
    %v2745 = vsel %vm2654, %v2740, %v2744
    %v2746 = vrot.slane %v439, 1
    %v2747 = vrot.slane %v435, 2
    %v2748 = vor.u32 %v2746, %v2747
    %v2749 = vsel %vm2654, %v2744, %v2748
    %v2750 = vrot.slane %v447, 1
    %v2751 = vrot.slane %v443, 2
    %v2752 = vor.u32 %v2750, %v2751
    %v2753 = vsel %vm2654, %v2748, %v2752
    %v2754 = vrot.slane %v455, 1
    %v2755 = vrot.slane %v451, 2
    %v2756 = vor.u32 %v2754, %v2755
    %v2757 = vsel %vm2654, %v2752, %v2756
    %v2758 = vrot.slane %v463, 1
    %v2759 = vrot.slane %v459, 2
    %v2760 = vor.u32 %v2758, %v2759
    %v2761 = vsel %vm2654, %v2756, %v2760
    %v2762 = vrot.slane %v471, 1
    %v2763 = vrot.slane %v467, 2
    %v2764 = vor.u32 %v2762, %v2763
    %v2765 = vsel %vm2654, %v2760, %v2764
    %v2766 = vrot.slane %v479, 1
    %v2767 = vrot.slane %v475, 2
    %v2768 = vor.u32 %v2766, %v2767
    %v2769 = vsel %vm2654, %v2764, %v2768
    %v2770 = vrot.slane %v487, 1
    %v2771 = vrot.slane %v483, 2
    %v2772 = vor.u32 %v2770, %v2771
    %v2773 = vsel %vm2654, %v2768, %v2772
    %v2774 = vrot.slane %v495, 1
    %v2775 = vrot.slane %v491, 2
    %v2776 = vor.u32 %v2774, %v2775
    %v2777 = vsel %vm2654, %v2772, %v2776
    %v2778 = vrot.slane %v503, 1
    %v2779 = vrot.slane %v499, 2
    %v2780 = vor.u32 %v2778, %v2779
    %v2781 = vsel %vm2654, %v2776, %v2780
    %v2782 = vrot.slane %v511, 1
    %v2783 = vrot.slane %v507, 2
    %v2784 = vor.u32 %v2782, %v2783
    %v2785 = vsel %vm2654, %v2780, %v2784
    %v2786 = vrot.slane %v519, 1
    %v2787 = vrot.slane %v515, 2
    %v2788 = vor.u32 %v2786, %v2787
    %v2789 = vsel %vm2654, %v2784, %v2788
    %v2790 = vrot.slane %v527, 1
    %v2791 = vrot.slane %v523, 2
    %v2792 = vor.u32 %v2790, %v2791
    %v2793 = vsel %vm2654, %v2788, %v2792
    %v2794 = vrot.slane %v535, 1
    %v2795 = vrot.slane %v531, 2
    %v2796 = vor.u32 %v2794, %v2795
    %v2797 = vsel %vm2654, %v2792, %v2796
    %v2798 = vrot.slane %v543, 1
    %v2799 = vrot.slane %v539, 2
    %v2800 = vor.u32 %v2798, %v2799
    %v2801 = vsel %vm2654, %v2796, %v2800
    %v2802 = vrot.slane %v551, 1
    %v2803 = vrot.slane %v547, 2
    %v2804 = vor.u32 %v2802, %v2803
    %v2805 = vsel %vm2654, %v2800, %v2804
    %v2806 = vrot.slane %v559, 1
    %v2807 = vrot.slane %v555, 2
    %v2808 = vor.u32 %v2806, %v2807
    %v2809 = vsel %vm2654, %v2804, %v2808
    %v2810 = vrot.slane %v567, 1
    %v2811 = vrot.slane %v563, 2
    %v2812 = vor.u32 %v2810, %v2811
    %v2813 = vsel %vm2654, %v2808, %v2812
    %v2815 = vshrl.u32 %v2196, 16
    %v2817 = vrot.slane %v2815, 1
    %v2818 = vshll.u32 %v2196, 16
    %v2820 = vrot.slane %v2818, 2
    %v2821 = vor.u32 %v2817, %v2820
    %v2822 = vsel %vm2654, %v2812, %v2821
    %v2824 = vsel %vm570, %v2661, 0
    %v2827 = vsel %vm570, %v2665, 0
    %v2830 = vsel %vm570, %v2669, 0
    %v2833 = vsel %vm570, %v2673, 0
    %v2836 = vsel %vm570, %v2677, 0
    %v2839 = vsel %vm570, %v2681, 0
    %v2842 = vsel %vm570, %v2685, 0
    %v2845 = vsel %vm570, %v2689, 0
    %v2848 = vsel %vm570, %v2693, 0
    %v2851 = vsel %vm570, %v2697, 0
    %v2854 = vsel %vm570, %v2701, 0
    %v2857 = vsel %vm570, %v2705, 0
    %v2860 = vsel %vm570, %v2709, 0
    %v2863 = vsel %vm570, %v2713, 0
    %v2866 = vsel %vm570, %v2717, 0
    %v2869 = vsel %vm570, %v2721, 0
    %v2872 = vsel %vm570, %v2725, 0
    %v2875 = vsel %vm570, %v2729, 0
    %v2878 = vsel %vm570, %v2733, 0
    %v2881 = vsel %vm570, %v2737, 0
    %v2884 = vsel %vm570, %v2741, 0
    %v2887 = vsel %vm570, %v2745, 0
    %v2890 = vsel %vm570, %v2749, 0
    %v2893 = vsel %vm570, %v2753, 0
    %v2896 = vsel %vm570, %v2757, 0
    %v2899 = vsel %vm570, %v2761, 0
    %v2902 = vsel %vm570, %v2765, 0
    %v2905 = vsel %vm570, %v2769, 0
    %v2908 = vsel %vm570, %v2773, 0
    %v2911 = vsel %vm570, %v2777, 0
    %v2914 = vsel %vm570, %v2781, 0
    %v2917 = vsel %vm570, %v2785, 0
    %v2920 = vsel %vm570, %v2789, 0
    %v2923 = vsel %vm570, %v2793, 0
    %v2926 = vsel %vm570, %v2797, 0
    %v2929 = vsel %vm570, %v2801, 0
    %v2932 = vsel %vm570, %v2805, 0
    %v2935 = vsel %vm570, %v2809, 0
    %v2938 = vsel %vm570, %v2813, 0
    %v2941 = vsel %vm570, %v2822, 0
    %v2944 = vsel %vm570, %v2821, 0
    %v2947 = vsel %vm694, %v2653, 0
    %2949 = vmatprep.subr.bf16.mxu0 0
    %2950 = vmatpush1.bf16.msra.mxu0 %v2947
    %2951 = vmatprep.subr.bf16.mxu0 0
    %2952 = vmatpush1.bf16.msra.mxu0 0
    %2953 = vmatprep.subr.bf16.mxu0 0
    %2954 = vmatpush1.bf16.msra.mxu0 0
    %2955 = vmatprep.subr.bf16.mxu0 0
    %2956 = vmatpush1.bf16.msra.mxu0 0
    %2957 = vmatprep.subr.bf16.mxu0 0
    %2958 = vmatpush1.bf16.msra.mxu0 0
    %2959 = vmatprep.subr.bf16.mxu0 0
    %2960 = vmatpush1.bf16.msra.mxu0 0
    %2961 = vmatprep.subr.bf16.mxu0 0
    %2962 = vmatpush1.bf16.msra.mxu0 0
    %2963 = vmatprep.subr.bf16.mxu0 0
    %2964 = vmatpush1.bf16.msra.mxu0 0
    %2965 = vmatprep.subr.bf16.mxu0 0
    %2966 = vmatpush1.bf16.msra.mxu0 0
    %2967 = vmatprep.subr.bf16.mxu0 0
    %2968 = vmatpush1.bf16.msra.mxu0 0
    %2969 = vmatprep.subr.bf16.mxu0 0
    %2970 = vmatpush1.bf16.msra.mxu0 0
    %2971 = vmatprep.subr.bf16.mxu0 0
    %2972 = vmatpush1.bf16.msra.mxu0 0
    %2973 = vmatprep.subr.bf16.mxu0 0
    %2974 = vmatpush1.bf16.msra.mxu0 0
    %2975 = vmatprep.subr.bf16.mxu0 0
    %2976 = vmatpush1.bf16.msra.mxu0 0
    %2977 = vmatprep.subr.bf16.mxu0 0
    %2978 = vmatpush1.bf16.msra.mxu0 0
    %2979 = vmatprep.subr.bf16.mxu0 0
    %2980 = vmatpush1.bf16.msra.mxu0 0
    %2981 = vmatprep.mubr.bf16.mxu0 0
    %2982 = vmatmul.mubr.bf16.gmra.mrb[0].mxu0 %v2824
    %v2983 = vpop.f32.mrb[0].mxu0
    %v2984 = vadd.f32 0.0, %v2983
    %v2985 = vpop.f32.mrb[0].mxu0
    %v2986 = vpop.f32.mrb[0].mxu0
    %v2987 = vadd.f32 0.0, %v2986
    %v2988 = vpop.f32.mrb[0].mxu0
    %2989 = vmatprep.mubr.bf16.mxu0 0
    %2990 = vmatmul.mubr.bf16.gmra.mrb[0].mxu0 %v2827
    %v2991 = vpop.f32.mrb[0].mxu0
    %v2992 = vadd.f32 0.0, %v2991
    %v2993 = vpop.f32.mrb[0].mxu0
    %v2994 = vpop.f32.mrb[0].mxu0
    %v2995 = vadd.f32 0.0, %v2994
    %v2996 = vpop.f32.mrb[0].mxu0
    %2997 = vmatprep.mubr.bf16.mxu0 0
    %2998 = vmatmul.mubr.bf16.gmra.mrb[0].mxu0 %v2830
    %v2999 = vpop.f32.mrb[0].mxu0
    %v3000 = vadd.f32 0.0, %v2999
    %v3001 = vpop.f32.mrb[0].mxu0
    %v3002 = vpop.f32.mrb[0].mxu0
    %v3003 = vadd.f32 0.0, %v3002
    %v3004 = vpop.f32.mrb[0].mxu0
    %3005 = vmatprep.mubr.bf16.mxu0 0
    %3006 = vmatmul.mubr.bf16.gmra.mrb[0].mxu0 %v2833
    %v3007 = vpop.f32.mrb[0].mxu0
    %v3008 = vadd.f32 0.0, %v3007
    %v3009 = vpop.f32.mrb[0].mxu0
    %v3010 = vpop.f32.mrb[0].mxu0
    %v3011 = vadd.f32 0.0, %v3010
    %v3012 = vpop.f32.mrb[0].mxu0
    %3013 = vmatprep.mubr.bf16.mxu0 0
    %3014 = vmatmul.mubr.bf16.gmra.mrb[0].mxu0 %v2836
    %v3015 = vpop.f32.mrb[0].mxu0
    %v3016 = vadd.f32 0.0, %v3015
    %v3017 = vpop.f32.mrb[0].mxu0
    %v3018 = vpop.f32.mrb[0].mxu0
    %v3019 = vadd.f32 0.0, %v3018
    %v3020 = vpop.f32.mrb[0].mxu0
    %3021 = vmatprep.mubr.bf16.mxu0 0
    %3022 = vmatmul.mubr.bf16.gmra.mrb[0].mxu0 %v2839
    %v3023 = vpop.f32.mrb[0].mxu0
    %v3024 = vadd.f32 0.0, %v3023
    %v3025 = vpop.f32.mrb[0].mxu0
    %v3026 = vpop.f32.mrb[0].mxu0
    %v3027 = vadd.f32 0.0, %v3026
    %v3028 = vpop.f32.mrb[0].mxu0
    %3029 = vmatprep.mubr.bf16.mxu0 0
    %3030 = vmatmul.mubr.bf16.gmra.mrb[0].mxu0 %v2842
    %v3031 = vpop.f32.mrb[0].mxu0
    %v3032 = vadd.f32 0.0, %v3031
    %v3033 = vpop.f32.mrb[0].mxu0
    %v3034 = vpop.f32.mrb[0].mxu0
    %v3035 = vadd.f32 0.0, %v3034
    %v3036 = vpop.f32.mrb[0].mxu0
    %3037 = vmatprep.mubr.bf16.mxu0 0
    %3038 = vmatmul.mubr.bf16.gmra.mrb[0].mxu0 %v2845
    %v3039 = vpop.f32.mrb[0].mxu0
    %v3040 = vadd.f32 0.0, %v3039
    %v3041 = vpop.f32.mrb[0].mxu0
    %v3042 = vpop.f32.mrb[0].mxu0
    %v3043 = vadd.f32 0.0, %v3042
    %v3044 = vpop.f32.mrb[0].mxu0
    %3045 = vmatprep.mubr.bf16.mxu0 0
    %3046 = vmatmul.mubr.bf16.gmra.mrb[0].mxu0 %v2848
    %v3047 = vpop.f32.mrb[0].mxu0
    %v3048 = vadd.f32 0.0, %v3047
    %v3049 = vpop.f32.mrb[0].mxu0
    %v3050 = vpop.f32.mrb[0].mxu0
    %v3051 = vadd.f32 0.0, %v3050
    %v3052 = vpop.f32.mrb[0].mxu0
    %3053 = vmatprep.mubr.bf16.mxu0 0
    %3054 = vmatmul.mubr.bf16.gmra.mrb[0].mxu0 %v2851
    %v3055 = vpop.f32.mrb[0].mxu0
    %v3056 = vadd.f32 0.0, %v3055
    %v3057 = vpop.f32.mrb[0].mxu0
    %v3058 = vpop.f32.mrb[0].mxu0
    %v3059 = vadd.f32 0.0, %v3058
    %v3060 = vpop.f32.mrb[0].mxu0
    %3061 = vmatprep.mubr.bf16.mxu0 0
    %3062 = vmatmul.mubr.bf16.gmra.mrb[0].mxu0 %v2854
    %v3063 = vpop.f32.mrb[0].mxu0
    %v3064 = vadd.f32 0.0, %v3063
    %v3065 = vpop.f32.mrb[0].mxu0
    %v3066 = vpop.f32.mrb[0].mxu0
    %v3067 = vadd.f32 0.0, %v3066
    %v3068 = vpop.f32.mrb[0].mxu0
    %3069 = vmatprep.mubr.bf16.mxu0 0
    %3070 = vmatmul.mubr.bf16.gmra.mrb[0].mxu0 %v2857
    %v3071 = vpop.f32.mrb[0].mxu0
    %v3072 = vadd.f32 0.0, %v3071
    %v3073 = vpop.f32.mrb[0].mxu0
    %v3074 = vpop.f32.mrb[0].mxu0
    %v3075 = vadd.f32 0.0, %v3074
    %v3076 = vpop.f32.mrb[0].mxu0
    %3077 = vmatprep.mubr.bf16.mxu0 0
    %3078 = vmatmul.mubr.bf16.gmra.mrb[0].mxu0 %v2860
    %v3079 = vpop.f32.mrb[0].mxu0
    %v3080 = vadd.f32 0.0, %v3079
    %v3081 = vpop.f32.mrb[0].mxu0
    %v3082 = vpop.f32.mrb[0].mxu0
    %v3083 = vadd.f32 0.0, %v3082
    %v3084 = vpop.f32.mrb[0].mxu0
    %3085 = vmatprep.mubr.bf16.mxu0 0
    %3086 = vmatmul.mubr.bf16.gmra.mrb[0].mxu0 %v2863
    %v3087 = vpop.f32.mrb[0].mxu0
    %v3088 = vadd.f32 0.0, %v3087
    %v3089 = vpop.f32.mrb[0].mxu0
    %v3090 = vpop.f32.mrb[0].mxu0
    %v3091 = vadd.f32 0.0, %v3090
    %v3092 = vpop.f32.mrb[0].mxu0
    %3093 = vmatprep.mubr.bf16.mxu0 0
    %3094 = vmatmul.mubr.bf16.gmra.mrb[0].mxu0 %v2866
    %v3095 = vpop.f32.mrb[0].mxu0
    %v3096 = vadd.f32 0.0, %v3095
    %v3097 = vpop.f32.mrb[0].mxu0
    %v3098 = vpop.f32.mrb[0].mxu0
    %v3099 = vadd.f32 0.0, %v3098
    %v3100 = vpop.f32.mrb[0].mxu0
    %3101 = vmatprep.mubr.bf16.mxu0 0
    %3102 = vmatmul.mubr.bf16.gmra.mrb[0].mxu0 %v2869
    %v3103 = vpop.f32.mrb[0].mxu0
    %v3104 = vadd.f32 0.0, %v3103
    %v3105 = vpop.f32.mrb[0].mxu0
    %v3106 = vpop.f32.mrb[0].mxu0
    %v3107 = vadd.f32 0.0, %v3106
    %v3108 = vpop.f32.mrb[0].mxu0
    %3109 = vmatprep.mubr.bf16.mxu0 0
    %3110 = vmatmul.mubr.bf16.gmra.mrb[0].mxu0 %v2872
    %v3111 = vpop.f32.mrb[0].mxu0
    %v3112 = vadd.f32 0.0, %v3111
    %v3113 = vpop.f32.mrb[0].mxu0
    %v3114 = vpop.f32.mrb[0].mxu0
    %v3115 = vadd.f32 0.0, %v3114
    %v3116 = vpop.f32.mrb[0].mxu0
    %3117 = vmatprep.mubr.bf16.mxu0 0
    %3118 = vmatmul.mubr.bf16.gmra.mrb[0].mxu0 %v2875
    %v3119 = vpop.f32.mrb[0].mxu0
    %v3120 = vadd.f32 0.0, %v3119
    %v3121 = vpop.f32.mrb[0].mxu0
    %v3122 = vpop.f32.mrb[0].mxu0
    %v3123 = vadd.f32 0.0, %v3122
    %v3124 = vpop.f32.mrb[0].mxu0
    %3125 = vmatprep.mubr.bf16.mxu0 0
    %3126 = vmatmul.mubr.bf16.gmra.mrb[0].mxu0 %v2878
    %v3127 = vpop.f32.mrb[0].mxu0
    %v3128 = vadd.f32 0.0, %v3127
    %v3129 = vpop.f32.mrb[0].mxu0
    %v3130 = vpop.f32.mrb[0].mxu0
    %v3131 = vadd.f32 0.0, %v3130
    %v3132 = vpop.f32.mrb[0].mxu0
    %3133 = vmatprep.mubr.bf16.mxu0 0
    %3134 = vmatmul.mubr.bf16.gmra.mrb[0].mxu0 %v2881
    %v3135 = vpop.f32.mrb[0].mxu0
    %v3136 = vadd.f32 0.0, %v3135
    %v3137 = vpop.f32.mrb[0].mxu0
    %v3138 = vpop.f32.mrb[0].mxu0
    %v3139 = vadd.f32 0.0, %v3138
    %v3140 = vpop.f32.mrb[0].mxu0
    %3141 = vmatprep.mubr.bf16.mxu0 0
    %3142 = vmatmul.mubr.bf16.gmra.mrb[0].mxu0 %v2884
    %v3143 = vpop.f32.mrb[0].mxu0
    %v3144 = vadd.f32 0.0, %v3143
    %v3145 = vpop.f32.mrb[0].mxu0
    %v3146 = vpop.f32.mrb[0].mxu0
    %v3147 = vadd.f32 0.0, %v3146
    %v3148 = vpop.f32.mrb[0].mxu0
    %3149 = vmatprep.mubr.bf16.mxu0 0
    %3150 = vmatmul.mubr.bf16.gmra.mrb[0].mxu0 %v2887
    %v3151 = vpop.f32.mrb[0].mxu0
    %v3152 = vadd.f32 0.0, %v3151
    %v3153 = vpop.f32.mrb[0].mxu0
    %v3154 = vpop.f32.mrb[0].mxu0
    %v3155 = vadd.f32 0.0, %v3154
    %v3156 = vpop.f32.mrb[0].mxu0
    %3157 = vmatprep.mubr.bf16.mxu0 0
    %3158 = vmatmul.mubr.bf16.gmra.mrb[0].mxu0 %v2890
    %v3159 = vpop.f32.mrb[0].mxu0
    %v3160 = vadd.f32 0.0, %v3159
    %v3161 = vpop.f32.mrb[0].mxu0
    %v3162 = vpop.f32.mrb[0].mxu0
    %v3163 = vadd.f32 0.0, %v3162
    %v3164 = vpop.f32.mrb[0].mxu0
    %3165 = vmatprep.mubr.bf16.mxu0 0
    %3166 = vmatmul.mubr.bf16.gmra.mrb[0].mxu0 %v2893
    %v3167 = vpop.f32.mrb[0].mxu0
    %v3168 = vadd.f32 0.0, %v3167
    %v3169 = vpop.f32.mrb[0].mxu0
    %v3170 = vpop.f32.mrb[0].mxu0
    %v3171 = vadd.f32 0.0, %v3170
    %v3172 = vpop.f32.mrb[0].mxu0
    %3173 = vmatprep.mubr.bf16.mxu0 0
    %3174 = vmatmul.mubr.bf16.gmra.mrb[0].mxu0 %v2896
    %v3175 = vpop.f32.mrb[0].mxu0
    %v3176 = vadd.f32 0.0, %v3175
    %v3177 = vpop.f32.mrb[0].mxu0
    %v3178 = vpop.f32.mrb[0].mxu0
    %v3179 = vadd.f32 0.0, %v3178
    %v3180 = vpop.f32.mrb[0].mxu0
    %3181 = vmatprep.mubr.bf16.mxu0 0
    %3182 = vmatmul.mubr.bf16.gmra.mrb[0].mxu0 %v2899
    %v3183 = vpop.f32.mrb[0].mxu0
    %v3184 = vadd.f32 0.0, %v3183
    %v3185 = vpop.f32.mrb[0].mxu0
    %v3186 = vpop.f32.mrb[0].mxu0
    %v3187 = vadd.f32 0.0, %v3186
    %v3188 = vpop.f32.mrb[0].mxu0
    %3189 = vmatprep.mubr.bf16.mxu0 0
    %3190 = vmatmul.mubr.bf16.gmra.mrb[0].mxu0 %v2902
    %v3191 = vpop.f32.mrb[0].mxu0
    %v3192 = vadd.f32 0.0, %v3191
    %v3193 = vpop.f32.mrb[0].mxu0
    %v3194 = vpop.f32.mrb[0].mxu0
    %v3195 = vadd.f32 0.0, %v3194
    %v3196 = vpop.f32.mrb[0].mxu0
    %3197 = vmatprep.mubr.bf16.mxu0 0
    %3198 = vmatmul.mubr.bf16.gmra.mrb[0].mxu0 %v2905
    %v3199 = vpop.f32.mrb[0].mxu0
    %v3200 = vadd.f32 0.0, %v3199
    %v3201 = vpop.f32.mrb[0].mxu0
    %v3202 = vpop.f32.mrb[0].mxu0
    %v3203 = vadd.f32 0.0, %v3202
    %v3204 = vpop.f32.mrb[0].mxu0
    %3205 = vmatprep.mubr.bf16.mxu0 0
    %3206 = vmatmul.mubr.bf16.gmra.mrb[0].mxu0 %v2908
    %v3207 = vpop.f32.mrb[0].mxu0
    %v3208 = vadd.f32 0.0, %v3207
    %v3209 = vpop.f32.mrb[0].mxu0
    %v3210 = vpop.f32.mrb[0].mxu0
    %v3211 = vadd.f32 0.0, %v3210
    %v3212 = vpop.f32.mrb[0].mxu0
    %3213 = vmatprep.mubr.bf16.mxu0 0
    %3214 = vmatmul.mubr.bf16.gmra.mrb[0].mxu0 %v2911
    %v3215 = vpop.f32.mrb[0].mxu0
    %v3216 = vadd.f32 0.0, %v3215
    %v3217 = vpop.f32.mrb[0].mxu0
    %v3218 = vpop.f32.mrb[0].mxu0
    %v3219 = vadd.f32 0.0, %v3218
    %v3220 = vpop.f32.mrb[0].mxu0
    %3221 = vmatprep.mubr.bf16.mxu0 0
    %3222 = vmatmul.mubr.bf16.gmra.mrb[0].mxu0 %v2914
    %v3223 = vpop.f32.mrb[0].mxu0
    %v3224 = vadd.f32 0.0, %v3223
    %v3225 = vpop.f32.mrb[0].mxu0
    %v3226 = vpop.f32.mrb[0].mxu0
    %v3227 = vadd.f32 0.0, %v3226
    %v3228 = vpop.f32.mrb[0].mxu0
    %3229 = vmatprep.mubr.bf16.mxu0 0
    %3230 = vmatmul.mubr.bf16.gmra.mrb[0].mxu0 %v2917
    %v3231 = vpop.f32.mrb[0].mxu0
    %v3232 = vadd.f32 0.0, %v3231
    %v3233 = vpop.f32.mrb[0].mxu0
    %v3234 = vpop.f32.mrb[0].mxu0
    %v3235 = vadd.f32 0.0, %v3234
    %v3236 = vpop.f32.mrb[0].mxu0
    %3237 = vmatprep.mubr.bf16.mxu0 0
    %3238 = vmatmul.mubr.bf16.gmra.mrb[0].mxu0 %v2920
    %v3239 = vpop.f32.mrb[0].mxu0
    %v3240 = vadd.f32 0.0, %v3239
    %v3241 = vpop.f32.mrb[0].mxu0
    %v3242 = vpop.f32.mrb[0].mxu0
    %v3243 = vadd.f32 0.0, %v3242
    %v3244 = vpop.f32.mrb[0].mxu0
    %3245 = vmatprep.mubr.bf16.mxu0 0
    %3246 = vmatmul.mubr.bf16.gmra.mrb[0].mxu0 %v2923
    %v3247 = vpop.f32.mrb[0].mxu0
    %v3248 = vadd.f32 0.0, %v3247
    %v3249 = vpop.f32.mrb[0].mxu0
    %v3250 = vpop.f32.mrb[0].mxu0
    %v3251 = vadd.f32 0.0, %v3250
    %v3252 = vpop.f32.mrb[0].mxu0
    %3253 = vmatprep.mubr.bf16.mxu0 0
    %3254 = vmatmul.mubr.bf16.gmra.mrb[0].mxu0 %v2926
    %v3255 = vpop.f32.mrb[0].mxu0
    %v3256 = vadd.f32 0.0, %v3255
    %v3257 = vpop.f32.mrb[0].mxu0
    %v3258 = vpop.f32.mrb[0].mxu0
    %v3259 = vadd.f32 0.0, %v3258
    %v3260 = vpop.f32.mrb[0].mxu0
    %3261 = vmatprep.mubr.bf16.mxu0 0
    %3262 = vmatmul.mubr.bf16.gmra.mrb[0].mxu0 %v2929
    %v3263 = vpop.f32.mrb[0].mxu0
    %v3264 = vadd.f32 0.0, %v3263
    %v3265 = vpop.f32.mrb[0].mxu0
    %v3266 = vpop.f32.mrb[0].mxu0
    %v3267 = vadd.f32 0.0, %v3266
    %v3268 = vpop.f32.mrb[0].mxu0
    %3269 = vmatprep.mubr.bf16.mxu0 0
    %3270 = vmatmul.mubr.bf16.gmra.mrb[0].mxu0 %v2932
    %v3271 = vpop.f32.mrb[0].mxu0
    %v3272 = vadd.f32 0.0, %v3271
    %v3273 = vpop.f32.mrb[0].mxu0
    %v3274 = vpop.f32.mrb[0].mxu0
    %v3275 = vadd.f32 0.0, %v3274
    %v3276 = vpop.f32.mrb[0].mxu0
    %3277 = vmatprep.mubr.bf16.mxu0 0
    %3278 = vmatmul.mubr.bf16.gmra.mrb[0].mxu0 %v2935
    %v3279 = vpop.f32.mrb[0].mxu0
    %v3280 = vadd.f32 0.0, %v3279
    %v3281 = vpop.f32.mrb[0].mxu0
    %v3282 = vpop.f32.mrb[0].mxu0
    %v3283 = vadd.f32 0.0, %v3282
    %v3284 = vpop.f32.mrb[0].mxu0
    %3285 = vmatprep.mubr.bf16.mxu0 0
    %3286 = vmatmul.mubr.bf16.gmra.mrb[0].mxu0 %v2938
    %v3287 = vpop.f32.mrb[0].mxu0
    %v3288 = vadd.f32 0.0, %v3287
    %v3289 = vpop.f32.mrb[0].mxu0
    %v3290 = vpop.f32.mrb[0].mxu0
    %v3291 = vadd.f32 0.0, %v3290
    %v3292 = vpop.f32.mrb[0].mxu0
    %3293 = vmatprep.mubr.bf16.mxu0 0
    %3294 = vmatmul.mubr.bf16.gmra.mrb[0].mxu0 %v2941
    %v3295 = vpop.f32.mrb[0].mxu0
    %v3296 = vadd.f32 0.0, %v3295
    %v3297 = vpop.f32.mrb[0].mxu0
    %v3298 = vpop.f32.mrb[0].mxu0
    %v3299 = vadd.f32 0.0, %v3298
    %v3300 = vpop.f32.mrb[0].mxu0
    %3301 = vmatprep.mubr.bf16.mxu0 0
    %3302 = vmatmul.mubr.bf16.gmra.mrb[0].mxu0 %v2944
    %v3303 = vpop.f32.mrb[0].mxu0
    %v3304 = vadd.f32 0.0, %v3303
    %v3305 = vpop.f32.mrb[0].mxu0
    %v3306 = vpop.f32.mrb[0].mxu0
    %v3307 = vpop.f32.mrb[0].mxu0
    %3308 = vdwg.mxu0
    %v3309 = vadd.f32 %v2571, %v2984
    %v3310 = vadd.f32 %v2572, %v2987
    %v3311 = vadd.f32 %v2573, %v2992
    %v3312 = vadd.f32 %v2574, %v2995
    %v3313 = vadd.f32 %v2575, %v3000
    %v3314 = vadd.f32 %v2576, %v3003
    %v3315 = vadd.f32 %v2577, %v3008
    %v3316 = vadd.f32 %v2578, %v3011
    %v3317 = vadd.f32 %v2579, %v3016
    %v3318 = vadd.f32 %v2580, %v3019
    %v3319 = vadd.f32 %v2581, %v3024
    %v3320 = vadd.f32 %v2582, %v3027
    %v3321 = vadd.f32 %v2583, %v3032
    %v3322 = vadd.f32 %v2584, %v3035
    %v3323 = vadd.f32 %v2585, %v3040
    %v3324 = vadd.f32 %v2586, %v3043
    %v3325 = vadd.f32 %v2587, %v3048
    %v3326 = vadd.f32 %v2588, %v3051
    %v3327 = vadd.f32 %v2589, %v3056
    %v3328 = vadd.f32 %v2590, %v3059
    %v3329 = vadd.f32 %v2591, %v3064
    %v3330 = vadd.f32 %v2592, %v3067
    %v3331 = vadd.f32 %v2593, %v3072
    %v3332 = vadd.f32 %v2594, %v3075
    %v3333 = vadd.f32 %v2595, %v3080
    %v3334 = vadd.f32 %v2596, %v3083
    %v3335 = vadd.f32 %v2597, %v3088
    %v3336 = vadd.f32 %v2598, %v3091
    %v3337 = vadd.f32 %v2599, %v3096
    %v3338 = vadd.f32 %v2600, %v3099
    %v3339 = vadd.f32 %v2601, %v3104
    %v3340 = vadd.f32 %v2602, %v3107
    %v3341 = vadd.f32 %v2603, %v3112
    %v3342 = vadd.f32 %v2604, %v3115
    %v3343 = vadd.f32 %v2605, %v3120
    %v3344 = vadd.f32 %v2606, %v3123
    %v3345 = vadd.f32 %v2607, %v3128
    %v3346 = vadd.f32 %v2608, %v3131
    %v3347 = vadd.f32 %v2609, %v3136
    %v3348 = vadd.f32 %v2610, %v3139
    %v3349 = vadd.f32 %v2611, %v3144
    %v3350 = vadd.f32 %v2612, %v3147
    %v3351 = vadd.f32 %v2613, %v3152
    %v3352 = vadd.f32 %v2614, %v3155
    %v3353 = vadd.f32 %v2615, %v3160
    %v3354 = vadd.f32 %v2616, %v3163
    %v3355 = vadd.f32 %v2617, %v3168
    %v3356 = vadd.f32 %v2618, %v3171
    %v3357 = vadd.f32 %v2619, %v3176
    %v3358 = vadd.f32 %v2620, %v3179
    %v3359 = vadd.f32 %v2621, %v3184
    %v3360 = vadd.f32 %v2622, %v3187
    %v3361 = vadd.f32 %v2623, %v3192
    %v3362 = vadd.f32 %v2624, %v3195
    %v3363 = vadd.f32 %v2625, %v3200
    %v3364 = vadd.f32 %v2626, %v3203
    %v3365 = vadd.f32 %v2627, %v3208
    %v3366 = vadd.f32 %v2628, %v3211
    %v3367 = vadd.f32 %v2629, %v3216
    %v3368 = vadd.f32 %v2630, %v3219
    %v3369 = vadd.f32 %v2631, %v3224
    %v3370 = vadd.f32 %v2632, %v3227
    %v3371 = vadd.f32 %v2633, %v3232
    %v3372 = vadd.f32 %v2634, %v3235
    %v3373 = vadd.f32 %v2635, %v3240
    %v3374 = vadd.f32 %v2636, %v3243
    %v3375 = vadd.f32 %v2637, %v3248
    %v3376 = vadd.f32 %v2638, %v3251
    %v3377 = vadd.f32 %v2639, %v3256
    %v3378 = vadd.f32 %v2640, %v3259
    %v3379 = vadd.f32 %v2641, %v3264
    %v3380 = vadd.f32 %v2642, %v3267
    %v3381 = vadd.f32 %v2643, %v3272
    %v3382 = vadd.f32 %v2644, %v3275
    %v3383 = vadd.f32 %v2645, %v3280
    %v3384 = vadd.f32 %v2646, %v3283
    %v3385 = vadd.f32 %v2647, %v3288
    %v3386 = vadd.f32 %v2648, %v3291
    %v3387 = vadd.f32 %v2649, %v3296
    %v3388 = vadd.f32 %v2650, %v3299
    %v3389 = vadd.f32 %v2651, %v3304
    %s3390 = scalar_lea.vmem %s1, 10
    %v3391 = vld [vmem:[%s3390] sm:$0x3]
    %vm3392 = vcmask 1045504
    %v3393 = vrot.slane %v198, 2
    %v3394 = vrot.slane %v199, 2
    %v3395 = vsel %vm3392, %v3393, %v3394
    %v3396 = vrot.slane %v200, 2
    %v3397 = vsel %vm3392, %v3394, %v3396
    %v3398 = vrot.slane %v201, 2
    %v3399 = vsel %vm3392, %v3396, %v3398
    %v3400 = vrot.slane %v202, 2
    %v3401 = vsel %vm3392, %v3398, %v3400
    %v3402 = vrot.slane %v203, 2
    %v3403 = vsel %vm3392, %v3400, %v3402
    %v3404 = vrot.slane %v204, 2
    %v3405 = vsel %vm3392, %v3402, %v3404
    %v3406 = vrot.slane %v205, 2
    %v3407 = vsel %vm3392, %v3404, %v3406
    %v3408 = vrot.slane %v206, 2
    %v3409 = vsel %vm3392, %v3406, %v3408
    %v3410 = vrot.slane %v207, 2
    %v3411 = vsel %vm3392, %v3408, %v3410
    %v3412 = vrot.slane %v208, 2
    %v3413 = vsel %vm3392, %v3410, %v3412
    %v3414 = vrot.slane %v209, 2
    %v3415 = vsel %vm3392, %v3412, %v3414
    %v3416 = vrot.slane %v210, 2
    %v3417 = vsel %vm3392, %v3414, %v3416
    %v3418 = vrot.slane %v211, 2
    %v3419 = vsel %vm3392, %v3416, %v3418
    %v3420 = vrot.slane %v212, 2
    %v3421 = vsel %vm3392, %v3418, %v3420
    %v3422 = vrot.slane %v213, 2
    %v3423 = vsel %vm3392, %v3420, %v3422
    %v3424 = vrot.slane %v214, 2
    %v3425 = vsel %vm3392, %v3422, %v3424
    %v3426 = vrot.slane %v215, 2
    %v3427 = vsel %vm3392, %v3424, %v3426
    %v3428 = vrot.slane %v216, 2
    %v3429 = vsel %vm3392, %v3426, %v3428
    %v3430 = vrot.slane %v217, 2
    %v3431 = vsel %vm3392, %v3428, %v3430
    %v3432 = vrot.slane %v218, 2
    %v3433 = vsel %vm3392, %v3430, %v3432
    %v3434 = vrot.slane %v219, 2
    %v3435 = vsel %vm3392, %v3432, %v3434
    %v3436 = vrot.slane %v220, 2
    %v3437 = vsel %vm3392, %v3434, %v3436
    %v3438 = vrot.slane %v221, 2
    %v3439 = vsel %vm3392, %v3436, %v3438
    %v3440 = vrot.slane %v222, 2
    %v3441 = vsel %vm3392, %v3438, %v3440
    %v3442 = vrot.slane %v223, 2
    %v3443 = vsel %vm3392, %v3440, %v3442
    %v3444 = vrot.slane %v224, 2
    %v3445 = vsel %vm3392, %v3442, %v3444
    %v3446 = vrot.slane %v225, 2
    %v3447 = vsel %vm3392, %v3444, %v3446
    %v3448 = vrot.slane %v226, 2
    %v3449 = vsel %vm3392, %v3446, %v3448
    %v3450 = vrot.slane %v227, 2
    %v3451 = vsel %vm3392, %v3448, %v3450
    %v3452 = vrot.slane %v228, 2
    %v3453 = vsel %vm3392, %v3450, %v3452
    %v3454 = vrot.slane %v229, 2
    %v3455 = vsel %vm3392, %v3452, %v3454
    %v3456 = vrot.slane %v230, 2
    %v3457 = vsel %vm3392, %v3454, %v3456
    %v3458 = vrot.slane %v231, 2
    %v3459 = vsel %vm3392, %v3456, %v3458
    %v3460 = vrot.slane %v232, 2
    %v3461 = vsel %vm3392, %v3458, %v3460
    %v3462 = vrot.slane %v233, 2
    %v3463 = vsel %vm3392, %v3460, %v3462
    %v3464 = vrot.slane %v234, 2
    %v3465 = vsel %vm3392, %v3462, %v3464
    %v3466 = vrot.slane %v235, 2
    %v3467 = vsel %vm3392, %v3464, %v3466
    %v3468 = vrot.slane %v236, 2
    %v3469 = vsel %vm3392, %v3466, %v3468
    %v3470 = vrot.slane %v239, 2
    %v3471 = vsel %vm3392, %v3468, %v3470
    %v3472 = vrot.slane %v2196, 2
    %v3473 = vsel %vm3392, %v3470, %v3472
    %v3475 = vsel %vm570, %v3395, 0
    %v3478 = vsel %vm570, %v3397, 0
    %v3481 = vsel %vm570, %v3399, 0
    %v3484 = vsel %vm570, %v3401, 0
    %v3487 = vsel %vm570, %v3403, 0
    %v3490 = vsel %vm570, %v3405, 0
    %v3493 = vsel %vm570, %v3407, 0
    %v3496 = vsel %vm570, %v3409, 0
    %v3499 = vsel %vm570, %v3411, 0
    %v3502 = vsel %vm570, %v3413, 0
    %v3505 = vsel %vm570, %v3415, 0
    %v3508 = vsel %vm570, %v3417, 0
    %v3511 = vsel %vm570, %v3419, 0
    %v3514 = vsel %vm570, %v3421, 0
    %v3517 = vsel %vm570, %v3423, 0
    %v3520 = vsel %vm570, %v3425, 0
    %v3523 = vsel %vm570, %v3427, 0
    %v3526 = vsel %vm570, %v3429, 0
    %v3529 = vsel %vm570, %v3431, 0
    %v3532 = vsel %vm570, %v3433, 0
    %v3535 = vsel %vm570, %v3435, 0
    %v3538 = vsel %vm570, %v3437, 0
    %v3541 = vsel %vm570, %v3439, 0
    %v3544 = vsel %vm570, %v3441, 0
    %v3547 = vsel %vm570, %v3443, 0
    %v3550 = vsel %vm570, %v3445, 0
    %v3553 = vsel %vm570, %v3447, 0
    %v3556 = vsel %vm570, %v3449, 0
    %v3559 = vsel %vm570, %v3451, 0
    %v3562 = vsel %vm570, %v3453, 0
    %v3565 = vsel %vm570, %v3455, 0
    %v3568 = vsel %vm570, %v3457, 0
    %v3571 = vsel %vm570, %v3459, 0
    %v3574 = vsel %vm570, %v3461, 0
    %v3577 = vsel %vm570, %v3463, 0
    %v3580 = vsel %vm570, %v3465, 0
    %v3583 = vsel %vm570, %v3467, 0
    %v3586 = vsel %vm570, %v3469, 0
    %v3589 = vsel %vm570, %v3471, 0
    %v3592 = vsel %vm570, %v3473, 0
    %v3595 = vsel %vm570, %v3472, 0
    %v3598 = vsel %vm694, %v3391, 0
    %3600 = vmatprep.subr.bf16.mxu0 0
    %3601 = vmatpush1.bf16.msra.mxu0 %v3598
    %3602 = vmatprep.subr.bf16.mxu0 0
    %3603 = vmatpush1.bf16.msra.mxu0 0
    %3604 = vmatprep.subr.bf16.mxu0 0
    %3605 = vmatpush1.bf16.msra.mxu0 0
    %3606 = vmatprep.subr.bf16.mxu0 0
    %3607 = vmatpush1.bf16.msra.mxu0 0
    %3608 = vmatprep.subr.bf16.mxu0 0
    %3609 = vmatpush1.bf16.msra.mxu0 0
    %3610 = vmatprep.subr.bf16.mxu0 0
    %3611 = vmatpush1.bf16.msra.mxu0 0
    %3612 = vmatprep.subr.bf16.mxu0 0
    %3613 = vmatpush1.bf16.msra.mxu0 0
    %3614 = vmatprep.subr.bf16.mxu0 0
    %3615 = vmatpush1.bf16.msra.mxu0 0
    %3616 = vmatprep.subr.bf16.mxu0 0
    %3617 = vmatpush1.bf16.msra.mxu0 0
    %3618 = vmatprep.subr.bf16.mxu0 0
    %3619 = vmatpush1.bf16.msra.mxu0 0
    %3620 = vmatprep.subr.bf16.mxu0 0
    %3621 = vmatpush1.bf16.msra.mxu0 0
    %3622 = vmatprep.subr.bf16.mxu0 0
    %3623 = vmatpush1.bf16.msra.mxu0 0
    %3624 = vmatprep.subr.bf16.mxu0 0
    %3625 = vmatpush1.bf16.msra.mxu0 0
    %3626 = vmatprep.subr.bf16.mxu0 0
    %3627 = vmatpush1.bf16.msra.mxu0 0
    %3628 = vmatprep.subr.bf16.mxu0 0
    %3629 = vmatpush1.bf16.msra.mxu0 0
    %3630 = vmatprep.subr.bf16.mxu0 0
    %3631 = vmatpush1.bf16.msra.mxu0 0
    %3632 = vmatprep.mubr.bf16.mxu0 0
    %3633 = vmatmul.mubr.bf16.gmra.mrb[0].mxu0 %v3475
    %v3634 = vpop.f32.mrb[0].mxu0
    %v3635 = vadd.f32 0.0, %v3634
    %v3636 = vpop.f32.mrb[0].mxu0
    %v3637 = vpop.f32.mrb[0].mxu0
    %v3638 = vadd.f32 0.0, %v3637
    %v3639 = vpop.f32.mrb[0].mxu0
    %3640 = vmatprep.mubr.bf16.mxu0 0
    %3641 = vmatmul.mubr.bf16.gmra.mrb[0].mxu0 %v3478
    %v3642 = vpop.f32.mrb[0].mxu0
    %v3643 = vadd.f32 0.0, %v3642
    %v3644 = vpop.f32.mrb[0].mxu0
    %v3645 = vpop.f32.mrb[0].mxu0
    %v3646 = vadd.f32 0.0, %v3645
    %v3647 = vpop.f32.mrb[0].mxu0
    %3648 = vmatprep.mubr.bf16.mxu0 0
    %3649 = vmatmul.mubr.bf16.gmra.mrb[0].mxu0 %v3481
    %v3650 = vpop.f32.mrb[0].mxu0
    %v3651 = vadd.f32 0.0, %v3650
    %v3652 = vpop.f32.mrb[0].mxu0
    %v3653 = vpop.f32.mrb[0].mxu0
    %v3654 = vadd.f32 0.0, %v3653
    %v3655 = vpop.f32.mrb[0].mxu0
    %3656 = vmatprep.mubr.bf16.mxu0 0
    %3657 = vmatmul.mubr.bf16.gmra.mrb[0].mxu0 %v3484
    %v3658 = vpop.f32.mrb[0].mxu0
    %v3659 = vadd.f32 0.0, %v3658
    %v3660 = vpop.f32.mrb[0].mxu0
    %v3661 = vpop.f32.mrb[0].mxu0
    %v3662 = vadd.f32 0.0, %v3661
    %v3663 = vpop.f32.mrb[0].mxu0
    %3664 = vmatprep.mubr.bf16.mxu0 0
    %3665 = vmatmul.mubr.bf16.gmra.mrb[0].mxu0 %v3487
    %v3666 = vpop.f32.mrb[0].mxu0
    %v3667 = vadd.f32 0.0, %v3666
    %v3668 = vpop.f32.mrb[0].mxu0
    %v3669 = vpop.f32.mrb[0].mxu0
    %v3670 = vadd.f32 0.0, %v3669
    %v3671 = vpop.f32.mrb[0].mxu0
    %3672 = vmatprep.mubr.bf16.mxu0 0
    %3673 = vmatmul.mubr.bf16.gmra.mrb[0].mxu0 %v3490
    %v3674 = vpop.f32.mrb[0].mxu0
    %v3675 = vadd.f32 0.0, %v3674
    %v3676 = vpop.f32.mrb[0].mxu0
    %v3677 = vpop.f32.mrb[0].mxu0
    %v3678 = vadd.f32 0.0, %v3677
    %v3679 = vpop.f32.mrb[0].mxu0
    %3680 = vmatprep.mubr.bf16.mxu0 0
    %3681 = vmatmul.mubr.bf16.gmra.mrb[0].mxu0 %v3493
    %v3682 = vpop.f32.mrb[0].mxu0
    %v3683 = vadd.f32 0.0, %v3682
    %v3684 = vpop.f32.mrb[0].mxu0
    %v3685 = vpop.f32.mrb[0].mxu0
    %v3686 = vadd.f32 0.0, %v3685
    %v3687 = vpop.f32.mrb[0].mxu0
    %3688 = vmatprep.mubr.bf16.mxu0 0
    %3689 = vmatmul.mubr.bf16.gmra.mrb[0].mxu0 %v3496
    %v3690 = vpop.f32.mrb[0].mxu0
    %v3691 = vadd.f32 0.0, %v3690
    %v3692 = vpop.f32.mrb[0].mxu0
    %v3693 = vpop.f32.mrb[0].mxu0
    %v3694 = vadd.f32 0.0, %v3693
    %v3695 = vpop.f32.mrb[0].mxu0
    %3696 = vmatprep.mubr.bf16.mxu0 0
    %3697 = vmatmul.mubr.bf16.gmra.mrb[0].mxu0 %v3499
    %v3698 = vpop.f32.mrb[0].mxu0
    %v3699 = vadd.f32 0.0, %v3698
    %v3700 = vpop.f32.mrb[0].mxu0
    %v3701 = vpop.f32.mrb[0].mxu0
    %v3702 = vadd.f32 0.0, %v3701
    %v3703 = vpop.f32.mrb[0].mxu0
    %3704 = vmatprep.mubr.bf16.mxu0 0
    %3705 = vmatmul.mubr.bf16.gmra.mrb[0].mxu0 %v3502
    %v3706 = vpop.f32.mrb[0].mxu0
    %v3707 = vadd.f32 0.0, %v3706
    %v3708 = vpop.f32.mrb[0].mxu0
    %v3709 = vpop.f32.mrb[0].mxu0
    %v3710 = vadd.f32 0.0, %v3709
    %v3711 = vpop.f32.mrb[0].mxu0
    %3712 = vmatprep.mubr.bf16.mxu0 0
    %3713 = vmatmul.mubr.bf16.gmra.mrb[0].mxu0 %v3505
    %v3714 = vpop.f32.mrb[0].mxu0
    %v3715 = vadd.f32 0.0, %v3714
    %v3716 = vpop.f32.mrb[0].mxu0
    %v3717 = vpop.f32.mrb[0].mxu0
    %v3718 = vadd.f32 0.0, %v3717
    %v3719 = vpop.f32.mrb[0].mxu0
    %3720 = vmatprep.mubr.bf16.mxu0 0
    %3721 = vmatmul.mubr.bf16.gmra.mrb[0].mxu0 %v3508
    %v3722 = vpop.f32.mrb[0].mxu0
    %v3723 = vadd.f32 0.0, %v3722
    %v3724 = vpop.f32.mrb[0].mxu0
    %v3725 = vpop.f32.mrb[0].mxu0
    %v3726 = vadd.f32 0.0, %v3725
    %v3727 = vpop.f32.mrb[0].mxu0
    %3728 = vmatprep.mubr.bf16.mxu0 0
    %3729 = vmatmul.mubr.bf16.gmra.mrb[0].mxu0 %v3511
    %v3730 = vpop.f32.mrb[0].mxu0
    %v3731 = vadd.f32 0.0, %v3730
    %v3732 = vpop.f32.mrb[0].mxu0
    %v3733 = vpop.f32.mrb[0].mxu0
    %v3734 = vadd.f32 0.0, %v3733
    %v3735 = vpop.f32.mrb[0].mxu0
    %3736 = vmatprep.mubr.bf16.mxu0 0
    %3737 = vmatmul.mubr.bf16.gmra.mrb[0].mxu0 %v3514
    %v3738 = vpop.f32.mrb[0].mxu0
    %v3739 = vadd.f32 0.0, %v3738
    %v3740 = vpop.f32.mrb[0].mxu0
    %v3741 = vpop.f32.mrb[0].mxu0
    %v3742 = vadd.f32 0.0, %v3741
    %v3743 = vpop.f32.mrb[0].mxu0
    %3744 = vmatprep.mubr.bf16.mxu0 0
    %3745 = vmatmul.mubr.bf16.gmra.mrb[0].mxu0 %v3517
    %v3746 = vpop.f32.mrb[0].mxu0
    %v3747 = vadd.f32 0.0, %v3746
    %v3748 = vpop.f32.mrb[0].mxu0
    %v3749 = vpop.f32.mrb[0].mxu0
    %v3750 = vadd.f32 0.0, %v3749
    %v3751 = vpop.f32.mrb[0].mxu0
    %3752 = vmatprep.mubr.bf16.mxu0 0
    %3753 = vmatmul.mubr.bf16.gmra.mrb[0].mxu0 %v3520
    %v3754 = vpop.f32.mrb[0].mxu0
    %v3755 = vadd.f32 0.0, %v3754
    %v3756 = vpop.f32.mrb[0].mxu0
    %v3757 = vpop.f32.mrb[0].mxu0
    %v3758 = vadd.f32 0.0, %v3757
    %v3759 = vpop.f32.mrb[0].mxu0
    %3760 = vmatprep.mubr.bf16.mxu0 0
    %3761 = vmatmul.mubr.bf16.gmra.mrb[0].mxu0 %v3523
    %v3762 = vpop.f32.mrb[0].mxu0
    %v3763 = vadd.f32 0.0, %v3762
    %v3764 = vpop.f32.mrb[0].mxu0
    %v3765 = vpop.f32.mrb[0].mxu0
    %v3766 = vadd.f32 0.0, %v3765
    %v3767 = vpop.f32.mrb[0].mxu0
    %3768 = vmatprep.mubr.bf16.mxu0 0
    %3769 = vmatmul.mubr.bf16.gmra.mrb[0].mxu0 %v3526
    %v3770 = vpop.f32.mrb[0].mxu0
    %v3771 = vadd.f32 0.0, %v3770
    %v3772 = vpop.f32.mrb[0].mxu0
    %v3773 = vpop.f32.mrb[0].mxu0
    %v3774 = vadd.f32 0.0, %v3773
    %v3775 = vpop.f32.mrb[0].mxu0
    %3776 = vmatprep.mubr.bf16.mxu0 0
    %3777 = vmatmul.mubr.bf16.gmra.mrb[0].mxu0 %v3529
    %v3778 = vpop.f32.mrb[0].mxu0
    %v3779 = vadd.f32 0.0, %v3778
    %v3780 = vpop.f32.mrb[0].mxu0
    %v3781 = vpop.f32.mrb[0].mxu0
    %v3782 = vadd.f32 0.0, %v3781
    %v3783 = vpop.f32.mrb[0].mxu0
    %3784 = vmatprep.mubr.bf16.mxu0 0
    %3785 = vmatmul.mubr.bf16.gmra.mrb[0].mxu0 %v3532
    %v3786 = vpop.f32.mrb[0].mxu0
    %v3787 = vadd.f32 0.0, %v3786
    %v3788 = vpop.f32.mrb[0].mxu0
    %v3789 = vpop.f32.mrb[0].mxu0
    %v3790 = vadd.f32 0.0, %v3789
    %v3791 = vpop.f32.mrb[0].mxu0
    %3792 = vmatprep.mubr.bf16.mxu0 0
    %3793 = vmatmul.mubr.bf16.gmra.mrb[0].mxu0 %v3535
    %v3794 = vpop.f32.mrb[0].mxu0
    %v3795 = vadd.f32 0.0, %v3794
    %v3796 = vpop.f32.mrb[0].mxu0
    %v3797 = vpop.f32.mrb[0].mxu0
    %v3798 = vadd.f32 0.0, %v3797
    %v3799 = vpop.f32.mrb[0].mxu0
    %3800 = vmatprep.mubr.bf16.mxu0 0
    %3801 = vmatmul.mubr.bf16.gmra.mrb[0].mxu0 %v3538
    %v3802 = vpop.f32.mrb[0].mxu0
    %v3803 = vadd.f32 0.0, %v3802
    %v3804 = vpop.f32.mrb[0].mxu0
    %v3805 = vpop.f32.mrb[0].mxu0
    %v3806 = vadd.f32 0.0, %v3805
    %v3807 = vpop.f32.mrb[0].mxu0
    %3808 = vmatprep.mubr.bf16.mxu0 0
    %3809 = vmatmul.mubr.bf16.gmra.mrb[0].mxu0 %v3541
    %v3810 = vpop.f32.mrb[0].mxu0
    %v3811 = vadd.f32 0.0, %v3810
    %v3812 = vpop.f32.mrb[0].mxu0
    %v3813 = vpop.f32.mrb[0].mxu0
    %v3814 = vadd.f32 0.0, %v3813
    %v3815 = vpop.f32.mrb[0].mxu0
    %3816 = vmatprep.mubr.bf16.mxu0 0
    %3817 = vmatmul.mubr.bf16.gmra.mrb[0].mxu0 %v3544
    %v3818 = vpop.f32.mrb[0].mxu0
    %v3819 = vadd.f32 0.0, %v3818
    %v3820 = vpop.f32.mrb[0].mxu0
    %v3821 = vpop.f32.mrb[0].mxu0
    %v3822 = vadd.f32 0.0, %v3821
    %v3823 = vpop.f32.mrb[0].mxu0
    %3824 = vmatprep.mubr.bf16.mxu0 0
    %3825 = vmatmul.mubr.bf16.gmra.mrb[0].mxu0 %v3547
    %v3826 = vpop.f32.mrb[0].mxu0
    %v3827 = vadd.f32 0.0, %v3826
    %v3828 = vpop.f32.mrb[0].mxu0
    %v3829 = vpop.f32.mrb[0].mxu0
    %v3830 = vadd.f32 0.0, %v3829
    %v3831 = vpop.f32.mrb[0].mxu0
    %3832 = vmatprep.mubr.bf16.mxu0 0
    %3833 = vmatmul.mubr.bf16.gmra.mrb[0].mxu0 %v3550
    %v3834 = vpop.f32.mrb[0].mxu0
    %v3835 = vadd.f32 0.0, %v3834
    %v3836 = vpop.f32.mrb[0].mxu0
    %v3837 = vpop.f32.mrb[0].mxu0
    %v3838 = vadd.f32 0.0, %v3837
    %v3839 = vpop.f32.mrb[0].mxu0
    %3840 = vmatprep.mubr.bf16.mxu0 0
    %3841 = vmatmul.mubr.bf16.gmra.mrb[0].mxu0 %v3553
    %v3842 = vpop.f32.mrb[0].mxu0
    %v3843 = vadd.f32 0.0, %v3842
    %v3844 = vpop.f32.mrb[0].mxu0
    %v3845 = vpop.f32.mrb[0].mxu0
    %v3846 = vadd.f32 0.0, %v3845
    %v3847 = vpop.f32.mrb[0].mxu0
    %3848 = vmatprep.mubr.bf16.mxu0 0
    %3849 = vmatmul.mubr.bf16.gmra.mrb[0].mxu0 %v3556
    %v3850 = vpop.f32.mrb[0].mxu0
    %v3851 = vadd.f32 0.0, %v3850
    %v3852 = vpop.f32.mrb[0].mxu0
    %v3853 = vpop.f32.mrb[0].mxu0
    %v3854 = vadd.f32 0.0, %v3853
    %v3855 = vpop.f32.mrb[0].mxu0
    %3856 = vmatprep.mubr.bf16.mxu0 0
    %3857 = vmatmul.mubr.bf16.gmra.mrb[0].mxu0 %v3559
    %v3858 = vpop.f32.mrb[0].mxu0
    %v3859 = vadd.f32 0.0, %v3858
    %v3860 = vpop.f32.mrb[0].mxu0
    %v3861 = vpop.f32.mrb[0].mxu0
    %v3862 = vadd.f32 0.0, %v3861
    %v3863 = vpop.f32.mrb[0].mxu0
    %3864 = vmatprep.mubr.bf16.mxu0 0
    %3865 = vmatmul.mubr.bf16.gmra.mrb[0].mxu0 %v3562
    %v3866 = vpop.f32.mrb[0].mxu0
    %v3867 = vadd.f32 0.0, %v3866
    %v3868 = vpop.f32.mrb[0].mxu0
    %v3869 = vpop.f32.mrb[0].mxu0
    %v3870 = vadd.f32 0.0, %v3869
    %v3871 = vpop.f32.mrb[0].mxu0
    %3872 = vmatprep.mubr.bf16.mxu0 0
    %3873 = vmatmul.mubr.bf16.gmra.mrb[0].mxu0 %v3565
    %v3874 = vpop.f32.mrb[0].mxu0
    %v3875 = vadd.f32 0.0, %v3874
    %v3876 = vpop.f32.mrb[0].mxu0
    %v3877 = vpop.f32.mrb[0].mxu0
    %v3878 = vadd.f32 0.0, %v3877
    %v3879 = vpop.f32.mrb[0].mxu0
    %3880 = vmatprep.mubr.bf16.mxu0 0
    %3881 = vmatmul.mubr.bf16.gmra.mrb[0].mxu0 %v3568
    %v3882 = vpop.f32.mrb[0].mxu0
    %v3883 = vadd.f32 0.0, %v3882
    %v3884 = vpop.f32.mrb[0].mxu0
    %v3885 = vpop.f32.mrb[0].mxu0
    %v3886 = vadd.f32 0.0, %v3885
    %v3887 = vpop.f32.mrb[0].mxu0
    %3888 = vmatprep.mubr.bf16.mxu0 0
    %3889 = vmatmul.mubr.bf16.gmra.mrb[0].mxu0 %v3571
    %v3890 = vpop.f32.mrb[0].mxu0
    %v3891 = vadd.f32 0.0, %v3890
    %v3892 = vpop.f32.mrb[0].mxu0
    %v3893 = vpop.f32.mrb[0].mxu0
    %v3894 = vadd.f32 0.0, %v3893
    %v3895 = vpop.f32.mrb[0].mxu0
    %3896 = vmatprep.mubr.bf16.mxu0 0
    %3897 = vmatmul.mubr.bf16.gmra.mrb[0].mxu0 %v3574
    %v3898 = vpop.f32.mrb[0].mxu0
    %v3899 = vadd.f32 0.0, %v3898
    %v3900 = vpop.f32.mrb[0].mxu0
    %v3901 = vpop.f32.mrb[0].mxu0
    %v3902 = vadd.f32 0.0, %v3901
    %v3903 = vpop.f32.mrb[0].mxu0
    %3904 = vmatprep.mubr.bf16.mxu0 0
    %3905 = vmatmul.mubr.bf16.gmra.mrb[0].mxu0 %v3577
    %v3906 = vpop.f32.mrb[0].mxu0
    %v3907 = vadd.f32 0.0, %v3906
    %v3908 = vpop.f32.mrb[0].mxu0
    %v3909 = vpop.f32.mrb[0].mxu0
    %v3910 = vadd.f32 0.0, %v3909
    %v3911 = vpop.f32.mrb[0].mxu0
    %3912 = vmatprep.mubr.bf16.mxu0 0
    %3913 = vmatmul.mubr.bf16.gmra.mrb[0].mxu0 %v3580
    %v3914 = vpop.f32.mrb[0].mxu0
    %v3915 = vadd.f32 0.0, %v3914
    %v3916 = vpop.f32.mrb[0].mxu0
    %v3917 = vpop.f32.mrb[0].mxu0
    %v3918 = vadd.f32 0.0, %v3917
    %v3919 = vpop.f32.mrb[0].mxu0
    %3920 = vmatprep.mubr.bf16.mxu0 0
    %3921 = vmatmul.mubr.bf16.gmra.mrb[0].mxu0 %v3583
    %v3922 = vpop.f32.mrb[0].mxu0
    %v3923 = vadd.f32 0.0, %v3922
    %v3924 = vpop.f32.mrb[0].mxu0
    %v3925 = vpop.f32.mrb[0].mxu0
    %v3926 = vadd.f32 0.0, %v3925
    %v3927 = vpop.f32.mrb[0].mxu0
    %3928 = vmatprep.mubr.bf16.mxu0 0
    %3929 = vmatmul.mubr.bf16.gmra.mrb[0].mxu0 %v3586
    %v3930 = vpop.f32.mrb[0].mxu0
    %v3931 = vadd.f32 0.0, %v3930
    %v3932 = vpop.f32.mrb[0].mxu0
    %v3933 = vpop.f32.mrb[0].mxu0
    %v3934 = vadd.f32 0.0, %v3933
    %v3935 = vpop.f32.mrb[0].mxu0
    %3936 = vmatprep.mubr.bf16.mxu0 0
    %3937 = vmatmul.mubr.bf16.gmra.mrb[0].mxu0 %v3589
    %v3938 = vpop.f32.mrb[0].mxu0
    %v3939 = vadd.f32 0.0, %v3938
    %v3940 = vpop.f32.mrb[0].mxu0
    %v3941 = vpop.f32.mrb[0].mxu0
    %v3942 = vadd.f32 0.0, %v3941
    %v3943 = vpop.f32.mrb[0].mxu0
    %3944 = vmatprep.mubr.bf16.mxu0 0
    %3945 = vmatmul.mubr.bf16.gmra.mrb[0].mxu0 %v3592
    %v3946 = vpop.f32.mrb[0].mxu0
    %v3947 = vadd.f32 0.0, %v3946
    %v3948 = vpop.f32.mrb[0].mxu0
    %v3949 = vpop.f32.mrb[0].mxu0
    %v3950 = vadd.f32 0.0, %v3949
    %v3951 = vpop.f32.mrb[0].mxu0
    %3952 = vmatprep.mubr.bf16.mxu0 0
    %3953 = vmatmul.mubr.bf16.gmra.mrb[0].mxu0 %v3595
    %v3954 = vpop.f32.mrb[0].mxu0
    %v3955 = vadd.f32 0.0, %v3954
    %v3956 = vpop.f32.mrb[0].mxu0
    %v3957 = vpop.f32.mrb[0].mxu0
    %v3958 = vpop.f32.mrb[0].mxu0
    %3959 = vdwg.mxu0
    %v3960 = vadd.f32 %v3309, %v3635
    %v3961 = vadd.f32 %v3310, %v3638
    %v3962 = vadd.f32 %v3311, %v3643
    %v3963 = vadd.f32 %v3312, %v3646
    %v3964 = vadd.f32 %v3313, %v3651
    %v3965 = vadd.f32 %v3314, %v3654
    %v3966 = vadd.f32 %v3315, %v3659
    %v3967 = vadd.f32 %v3316, %v3662
    %v3968 = vadd.f32 %v3317, %v3667
    %v3969 = vadd.f32 %v3318, %v3670
    %v3970 = vadd.f32 %v3319, %v3675
    %v3971 = vadd.f32 %v3320, %v3678
    %v3972 = vadd.f32 %v3321, %v3683
    %v3973 = vadd.f32 %v3322, %v3686
    %v3974 = vadd.f32 %v3323, %v3691
    %v3975 = vadd.f32 %v3324, %v3694
    %v3976 = vadd.f32 %v3325, %v3699
    %v3977 = vadd.f32 %v3326, %v3702
    %v3978 = vadd.f32 %v3327, %v3707
    %v3979 = vadd.f32 %v3328, %v3710
    %v3980 = vadd.f32 %v3329, %v3715
    %v3981 = vadd.f32 %v3330, %v3718
    %v3982 = vadd.f32 %v3331, %v3723
    %v3983 = vadd.f32 %v3332, %v3726
    %v3984 = vadd.f32 %v3333, %v3731
    %v3985 = vadd.f32 %v3334, %v3734
    %v3986 = vadd.f32 %v3335, %v3739
    %v3987 = vadd.f32 %v3336, %v3742
    %v3988 = vadd.f32 %v3337, %v3747
    %v3989 = vadd.f32 %v3338, %v3750
    %v3990 = vadd.f32 %v3339, %v3755
    %v3991 = vadd.f32 %v3340, %v3758
    %v3992 = vadd.f32 %v3341, %v3763
    %v3993 = vadd.f32 %v3342, %v3766
    %v3994 = vadd.f32 %v3343, %v3771
    %v3995 = vadd.f32 %v3344, %v3774
    %v3996 = vadd.f32 %v3345, %v3779
    %v3997 = vadd.f32 %v3346, %v3782
    %v3998 = vadd.f32 %v3347, %v3787
    %v3999 = vadd.f32 %v3348, %v3790
    %v4000 = vadd.f32 %v3349, %v3795
    %v4001 = vadd.f32 %v3350, %v3798
    %v4002 = vadd.f32 %v3351, %v3803
    %v4003 = vadd.f32 %v3352, %v3806
    %v4004 = vadd.f32 %v3353, %v3811
    %v4005 = vadd.f32 %v3354, %v3814
    %v4006 = vadd.f32 %v3355, %v3819
    %v4007 = vadd.f32 %v3356, %v3822
    %v4008 = vadd.f32 %v3357, %v3827
    %v4009 = vadd.f32 %v3358, %v3830
    %v4010 = vadd.f32 %v3359, %v3835
    %v4011 = vadd.f32 %v3360, %v3838
    %v4012 = vadd.f32 %v3361, %v3843
    %v4013 = vadd.f32 %v3362, %v3846
    %v4014 = vadd.f32 %v3363, %v3851
    %v4015 = vadd.f32 %v3364, %v3854
    %v4016 = vadd.f32 %v3365, %v3859
    %v4017 = vadd.f32 %v3366, %v3862
    %v4018 = vadd.f32 %v3367, %v3867
    %v4019 = vadd.f32 %v3368, %v3870
    %v4020 = vadd.f32 %v3369, %v3875
    %v4021 = vadd.f32 %v3370, %v3878
    %v4022 = vadd.f32 %v3371, %v3883
    %v4023 = vadd.f32 %v3372, %v3886
    %v4024 = vadd.f32 %v3373, %v3891
    %v4025 = vadd.f32 %v3374, %v3894
    %v4026 = vadd.f32 %v3375, %v3899
    %v4027 = vadd.f32 %v3376, %v3902
    %v4028 = vadd.f32 %v3377, %v3907
    %v4029 = vadd.f32 %v3378, %v3910
    %v4030 = vadd.f32 %v3379, %v3915
    %v4031 = vadd.f32 %v3380, %v3918
    %v4032 = vadd.f32 %v3381, %v3923
    %v4033 = vadd.f32 %v3382, %v3926
    %v4034 = vadd.f32 %v3383, %v3931
    %v4035 = vadd.f32 %v3384, %v3934
    %v4036 = vadd.f32 %v3385, %v3939
    %v4037 = vadd.f32 %v3386, %v3942
    %v4038 = vadd.f32 %v3387, %v3947
    %v4039 = vadd.f32 %v3388, %v3950
    %v4040 = vadd.f32 %v3389, %v3955
    %v4041 = vpack.c.bf16 %v196, %v195
    %s4042 = scalar_lea.vmem %s1, 12
    %v4043 = vld [vmem:[%s4042] sm:$0x3]
    %v4045 = vrot.slane %v4041, 2
    %v4046 = vsel %vm3392, %v3472, %v4045
    %v4048 = vsel %vm570, %v4046, 0
    %v4051 = vsel %vm570, %v4045, 0
    %v4054 = vsel %vm694, %v4043, 0
    %4056 = vmatprep.subr.bf16.mxu0 0
    %4057 = vmatpush1.bf16.msra.mxu0 %v4054
    %4058 = vmatprep.subr.bf16.mxu0 0
    %4059 = vmatpush1.bf16.msra.mxu0 0
    %4060 = vmatprep.subr.bf16.mxu0 0
    %4061 = vmatpush1.bf16.msra.mxu0 0
    %4062 = vmatprep.subr.bf16.mxu0 0
    %4063 = vmatpush1.bf16.msra.mxu0 0
    %4064 = vmatprep.subr.bf16.mxu0 0
    %4065 = vmatpush1.bf16.msra.mxu0 0
    %4066 = vmatprep.subr.bf16.mxu0 0
    %4067 = vmatpush1.bf16.msra.mxu0 0
    %4068 = vmatprep.subr.bf16.mxu0 0
    %4069 = vmatpush1.bf16.msra.mxu0 0
    %4070 = vmatprep.subr.bf16.mxu0 0
    %4071 = vmatpush1.bf16.msra.mxu0 0
    %4072 = vmatprep.subr.bf16.mxu0 0
    %4073 = vmatpush1.bf16.msra.mxu0 0
    %4074 = vmatprep.subr.bf16.mxu0 0
    %4075 = vmatpush1.bf16.msra.mxu0 0
    %4076 = vmatprep.subr.bf16.mxu0 0
    %4077 = vmatpush1.bf16.msra.mxu0 0
    %4078 = vmatprep.subr.bf16.mxu0 0
    %4079 = vmatpush1.bf16.msra.mxu0 0
    %4080 = vmatprep.subr.bf16.mxu0 0
    %4081 = vmatpush1.bf16.msra.mxu0 0
    %4082 = vmatprep.subr.bf16.mxu0 0
    %4083 = vmatpush1.bf16.msra.mxu0 0
    %4084 = vmatprep.subr.bf16.mxu0 0
    %4085 = vmatpush1.bf16.msra.mxu0 0
    %4086 = vmatprep.subr.bf16.mxu0 0
    %4087 = vmatpush1.bf16.msra.mxu0 0
    %4088 = vmatprep.mubr.bf16.mxu0 0
    %4089 = vmatmul.mubr.bf16.gmra.mrb[0].mxu0 %v3478
    %v4090 = vpop.f32.mrb[0].mxu0
    %v4091 = vadd.f32 0.0, %v4090
    %v4092 = vpop.f32.mrb[0].mxu0
    %v4093 = vpop.f32.mrb[0].mxu0
    %v4094 = vadd.f32 0.0, %v4093
    %v4095 = vpop.f32.mrb[0].mxu0
    %4096 = vmatprep.mubr.bf16.mxu0 0
    %4097 = vmatmul.mubr.bf16.gmra.mrb[0].mxu0 %v3481
    %v4098 = vpop.f32.mrb[0].mxu0
    %v4099 = vadd.f32 0.0, %v4098
    %v4100 = vpop.f32.mrb[0].mxu0
    %v4101 = vpop.f32.mrb[0].mxu0
    %v4102 = vadd.f32 0.0, %v4101
    %v4103 = vpop.f32.mrb[0].mxu0
    %4104 = vmatprep.mubr.bf16.mxu0 0
    %4105 = vmatmul.mubr.bf16.gmra.mrb[0].mxu0 %v3484
    %v4106 = vpop.f32.mrb[0].mxu0
    %v4107 = vadd.f32 0.0, %v4106
    %v4108 = vpop.f32.mrb[0].mxu0
    %v4109 = vpop.f32.mrb[0].mxu0
    %v4110 = vadd.f32 0.0, %v4109
    %v4111 = vpop.f32.mrb[0].mxu0
    %4112 = vmatprep.mubr.bf16.mxu0 0
    %4113 = vmatmul.mubr.bf16.gmra.mrb[0].mxu0 %v3487
    %v4114 = vpop.f32.mrb[0].mxu0
    %v4115 = vadd.f32 0.0, %v4114
    %v4116 = vpop.f32.mrb[0].mxu0
    %v4117 = vpop.f32.mrb[0].mxu0
    %v4118 = vadd.f32 0.0, %v4117
    %v4119 = vpop.f32.mrb[0].mxu0
    %4120 = vmatprep.mubr.bf16.mxu0 0
    %4121 = vmatmul.mubr.bf16.gmra.mrb[0].mxu0 %v3490
    %v4122 = vpop.f32.mrb[0].mxu0
    %v4123 = vadd.f32 0.0, %v4122
    %v4124 = vpop.f32.mrb[0].mxu0
    %v4125 = vpop.f32.mrb[0].mxu0
    %v4126 = vadd.f32 0.0, %v4125
    %v4127 = vpop.f32.mrb[0].mxu0
    %4128 = vmatprep.mubr.bf16.mxu0 0
    %4129 = vmatmul.mubr.bf16.gmra.mrb[0].mxu0 %v3493
    %v4130 = vpop.f32.mrb[0].mxu0
    %v4131 = vadd.f32 0.0, %v4130
    %v4132 = vpop.f32.mrb[0].mxu0
    %v4133 = vpop.f32.mrb[0].mxu0
    %v4134 = vadd.f32 0.0, %v4133
    %v4135 = vpop.f32.mrb[0].mxu0
    %4136 = vmatprep.mubr.bf16.mxu0 0
    %4137 = vmatmul.mubr.bf16.gmra.mrb[0].mxu0 %v3496
    %v4138 = vpop.f32.mrb[0].mxu0
    %v4139 = vadd.f32 0.0, %v4138
    %v4140 = vpop.f32.mrb[0].mxu0
    %v4141 = vpop.f32.mrb[0].mxu0
    %v4142 = vadd.f32 0.0, %v4141
    %v4143 = vpop.f32.mrb[0].mxu0
    %4144 = vmatprep.mubr.bf16.mxu0 0
    %4145 = vmatmul.mubr.bf16.gmra.mrb[0].mxu0 %v3499
    %v4146 = vpop.f32.mrb[0].mxu0
    %v4147 = vadd.f32 0.0, %v4146
    %v4148 = vpop.f32.mrb[0].mxu0
    %v4149 = vpop.f32.mrb[0].mxu0
    %v4150 = vadd.f32 0.0, %v4149
    %v4151 = vpop.f32.mrb[0].mxu0
    %4152 = vmatprep.mubr.bf16.mxu0 0
    %4153 = vmatmul.mubr.bf16.gmra.mrb[0].mxu0 %v3502
    %v4154 = vpop.f32.mrb[0].mxu0
    %v4155 = vadd.f32 0.0, %v4154
    %v4156 = vpop.f32.mrb[0].mxu0
    %v4157 = vpop.f32.mrb[0].mxu0
    %v4158 = vadd.f32 0.0, %v4157
    %v4159 = vpop.f32.mrb[0].mxu0
    %4160 = vmatprep.mubr.bf16.mxu0 0
    %4161 = vmatmul.mubr.bf16.gmra.mrb[0].mxu0 %v3505
    %v4162 = vpop.f32.mrb[0].mxu0
    %v4163 = vadd.f32 0.0, %v4162
    %v4164 = vpop.f32.mrb[0].mxu0
    %v4165 = vpop.f32.mrb[0].mxu0
    %v4166 = vadd.f32 0.0, %v4165
    %v4167 = vpop.f32.mrb[0].mxu0
    %4168 = vmatprep.mubr.bf16.mxu0 0
    %4169 = vmatmul.mubr.bf16.gmra.mrb[0].mxu0 %v3508
    %v4170 = vpop.f32.mrb[0].mxu0
    %v4171 = vadd.f32 0.0, %v4170
    %v4172 = vpop.f32.mrb[0].mxu0
    %v4173 = vpop.f32.mrb[0].mxu0
    %v4174 = vadd.f32 0.0, %v4173
    %v4175 = vpop.f32.mrb[0].mxu0
    %4176 = vmatprep.mubr.bf16.mxu0 0
    %4177 = vmatmul.mubr.bf16.gmra.mrb[0].mxu0 %v3511
    %v4178 = vpop.f32.mrb[0].mxu0
    %v4179 = vadd.f32 0.0, %v4178
    %v4180 = vpop.f32.mrb[0].mxu0
    %v4181 = vpop.f32.mrb[0].mxu0
    %v4182 = vadd.f32 0.0, %v4181
    %v4183 = vpop.f32.mrb[0].mxu0
    %4184 = vmatprep.mubr.bf16.mxu0 0
    %4185 = vmatmul.mubr.bf16.gmra.mrb[0].mxu0 %v3514
    %v4186 = vpop.f32.mrb[0].mxu0
    %v4187 = vadd.f32 0.0, %v4186
    %v4188 = vpop.f32.mrb[0].mxu0
    %v4189 = vpop.f32.mrb[0].mxu0
    %v4190 = vadd.f32 0.0, %v4189
    %v4191 = vpop.f32.mrb[0].mxu0
    %4192 = vmatprep.mubr.bf16.mxu0 0
    %4193 = vmatmul.mubr.bf16.gmra.mrb[0].mxu0 %v3517
    %v4194 = vpop.f32.mrb[0].mxu0
    %v4195 = vadd.f32 0.0, %v4194
    %v4196 = vpop.f32.mrb[0].mxu0
    %v4197 = vpop.f32.mrb[0].mxu0
    %v4198 = vadd.f32 0.0, %v4197
    %v4199 = vpop.f32.mrb[0].mxu0
    %4200 = vmatprep.mubr.bf16.mxu0 0
    %4201 = vmatmul.mubr.bf16.gmra.mrb[0].mxu0 %v3520
    %v4202 = vpop.f32.mrb[0].mxu0
    %v4203 = vadd.f32 0.0, %v4202
    %v4204 = vpop.f32.mrb[0].mxu0
    %v4205 = vpop.f32.mrb[0].mxu0
    %v4206 = vadd.f32 0.0, %v4205
    %v4207 = vpop.f32.mrb[0].mxu0
    %4208 = vmatprep.mubr.bf16.mxu0 0
    %4209 = vmatmul.mubr.bf16.gmra.mrb[0].mxu0 %v3523
    %v4210 = vpop.f32.mrb[0].mxu0
    %v4211 = vadd.f32 0.0, %v4210
    %v4212 = vpop.f32.mrb[0].mxu0
    %v4213 = vpop.f32.mrb[0].mxu0
    %v4214 = vadd.f32 0.0, %v4213
    %v4215 = vpop.f32.mrb[0].mxu0
    %4216 = vmatprep.mubr.bf16.mxu0 0
    %4217 = vmatmul.mubr.bf16.gmra.mrb[0].mxu0 %v3526
    %v4218 = vpop.f32.mrb[0].mxu0
    %v4219 = vadd.f32 0.0, %v4218
    %v4220 = vpop.f32.mrb[0].mxu0
    %v4221 = vpop.f32.mrb[0].mxu0
    %v4222 = vadd.f32 0.0, %v4221
    %v4223 = vpop.f32.mrb[0].mxu0
    %4224 = vmatprep.mubr.bf16.mxu0 0
    %4225 = vmatmul.mubr.bf16.gmra.mrb[0].mxu0 %v3529
    %v4226 = vpop.f32.mrb[0].mxu0
    %v4227 = vadd.f32 0.0, %v4226
    %v4228 = vpop.f32.mrb[0].mxu0
    %v4229 = vpop.f32.mrb[0].mxu0
    %v4230 = vadd.f32 0.0, %v4229
    %v4231 = vpop.f32.mrb[0].mxu0
    %4232 = vmatprep.mubr.bf16.mxu0 0
    %4233 = vmatmul.mubr.bf16.gmra.mrb[0].mxu0 %v3532
    %v4234 = vpop.f32.mrb[0].mxu0
    %v4235 = vadd.f32 0.0, %v4234
    %v4236 = vpop.f32.mrb[0].mxu0
    %v4237 = vpop.f32.mrb[0].mxu0
    %v4238 = vadd.f32 0.0, %v4237
    %v4239 = vpop.f32.mrb[0].mxu0
    %4240 = vmatprep.mubr.bf16.mxu0 0
    %4241 = vmatmul.mubr.bf16.gmra.mrb[0].mxu0 %v3535
    %v4242 = vpop.f32.mrb[0].mxu0
    %v4243 = vadd.f32 0.0, %v4242
    %v4244 = vpop.f32.mrb[0].mxu0
    %v4245 = vpop.f32.mrb[0].mxu0
    %v4246 = vadd.f32 0.0, %v4245
    %v4247 = vpop.f32.mrb[0].mxu0
    %4248 = vmatprep.mubr.bf16.mxu0 0
    %4249 = vmatmul.mubr.bf16.gmra.mrb[0].mxu0 %v3538
    %v4250 = vpop.f32.mrb[0].mxu0
    %v4251 = vadd.f32 0.0, %v4250
    %v4252 = vpop.f32.mrb[0].mxu0
    %v4253 = vpop.f32.mrb[0].mxu0
    %v4254 = vadd.f32 0.0, %v4253
    %v4255 = vpop.f32.mrb[0].mxu0
    %4256 = vmatprep.mubr.bf16.mxu0 0
    %4257 = vmatmul.mubr.bf16.gmra.mrb[0].mxu0 %v3541
    %v4258 = vpop.f32.mrb[0].mxu0
    %v4259 = vadd.f32 0.0, %v4258
    %v4260 = vpop.f32.mrb[0].mxu0
    %v4261 = vpop.f32.mrb[0].mxu0
    %v4262 = vadd.f32 0.0, %v4261
    %v4263 = vpop.f32.mrb[0].mxu0
    %4264 = vmatprep.mubr.bf16.mxu0 0
    %4265 = vmatmul.mubr.bf16.gmra.mrb[0].mxu0 %v3544
    %v4266 = vpop.f32.mrb[0].mxu0
    %v4267 = vadd.f32 0.0, %v4266
    %v4268 = vpop.f32.mrb[0].mxu0
    %v4269 = vpop.f32.mrb[0].mxu0
    %v4270 = vadd.f32 0.0, %v4269
    %v4271 = vpop.f32.mrb[0].mxu0
    %4272 = vmatprep.mubr.bf16.mxu0 0
    %4273 = vmatmul.mubr.bf16.gmra.mrb[0].mxu0 %v3547
    %v4274 = vpop.f32.mrb[0].mxu0
    %v4275 = vadd.f32 0.0, %v4274
    %v4276 = vpop.f32.mrb[0].mxu0
    %v4277 = vpop.f32.mrb[0].mxu0
    %v4278 = vadd.f32 0.0, %v4277
    %v4279 = vpop.f32.mrb[0].mxu0
    %4280 = vmatprep.mubr.bf16.mxu0 0
    %4281 = vmatmul.mubr.bf16.gmra.mrb[0].mxu0 %v3550
    %v4282 = vpop.f32.mrb[0].mxu0
    %v4283 = vadd.f32 0.0, %v4282
    %v4284 = vpop.f32.mrb[0].mxu0
    %v4285 = vpop.f32.mrb[0].mxu0
    %v4286 = vadd.f32 0.0, %v4285
    %v4287 = vpop.f32.mrb[0].mxu0
    %4288 = vmatprep.mubr.bf16.mxu0 0
    %4289 = vmatmul.mubr.bf16.gmra.mrb[0].mxu0 %v3553
    %v4290 = vpop.f32.mrb[0].mxu0
    %v4291 = vadd.f32 0.0, %v4290
    %v4292 = vpop.f32.mrb[0].mxu0
    %v4293 = vpop.f32.mrb[0].mxu0
    %v4294 = vadd.f32 0.0, %v4293
    %v4295 = vpop.f32.mrb[0].mxu0
    %4296 = vmatprep.mubr.bf16.mxu0 0
    %4297 = vmatmul.mubr.bf16.gmra.mrb[0].mxu0 %v3556
    %v4298 = vpop.f32.mrb[0].mxu0
    %v4299 = vadd.f32 0.0, %v4298
    %v4300 = vpop.f32.mrb[0].mxu0
    %v4301 = vpop.f32.mrb[0].mxu0
    %v4302 = vadd.f32 0.0, %v4301
    %v4303 = vpop.f32.mrb[0].mxu0
    %4304 = vmatprep.mubr.bf16.mxu0 0
    %4305 = vmatmul.mubr.bf16.gmra.mrb[0].mxu0 %v3559
    %v4306 = vpop.f32.mrb[0].mxu0
    %v4307 = vadd.f32 0.0, %v4306
    %v4308 = vpop.f32.mrb[0].mxu0
    %v4309 = vpop.f32.mrb[0].mxu0
    %v4310 = vadd.f32 0.0, %v4309
    %v4311 = vpop.f32.mrb[0].mxu0
    %4312 = vmatprep.mubr.bf16.mxu0 0
    %4313 = vmatmul.mubr.bf16.gmra.mrb[0].mxu0 %v3562
    %v4314 = vpop.f32.mrb[0].mxu0
    %v4315 = vadd.f32 0.0, %v4314
    %v4316 = vpop.f32.mrb[0].mxu0
    %v4317 = vpop.f32.mrb[0].mxu0
    %v4318 = vadd.f32 0.0, %v4317
    %v4319 = vpop.f32.mrb[0].mxu0
    %4320 = vmatprep.mubr.bf16.mxu0 0
    %4321 = vmatmul.mubr.bf16.gmra.mrb[0].mxu0 %v3565
    %v4322 = vpop.f32.mrb[0].mxu0
    %v4323 = vadd.f32 0.0, %v4322
    %v4324 = vpop.f32.mrb[0].mxu0
    %v4325 = vpop.f32.mrb[0].mxu0
    %v4326 = vadd.f32 0.0, %v4325
    %v4327 = vpop.f32.mrb[0].mxu0
    %4328 = vmatprep.mubr.bf16.mxu0 0
    %4329 = vmatmul.mubr.bf16.gmra.mrb[0].mxu0 %v3568
    %v4330 = vpop.f32.mrb[0].mxu0
    %v4331 = vadd.f32 0.0, %v4330
    %v4332 = vpop.f32.mrb[0].mxu0
    %v4333 = vpop.f32.mrb[0].mxu0
    %v4334 = vadd.f32 0.0, %v4333
    %v4335 = vpop.f32.mrb[0].mxu0
    %4336 = vmatprep.mubr.bf16.mxu0 0
    %4337 = vmatmul.mubr.bf16.gmra.mrb[0].mxu0 %v3571
    %v4338 = vpop.f32.mrb[0].mxu0
    %v4339 = vadd.f32 0.0, %v4338
    %v4340 = vpop.f32.mrb[0].mxu0
    %v4341 = vpop.f32.mrb[0].mxu0
    %v4342 = vadd.f32 0.0, %v4341
    %v4343 = vpop.f32.mrb[0].mxu0
    %4344 = vmatprep.mubr.bf16.mxu0 0
    %4345 = vmatmul.mubr.bf16.gmra.mrb[0].mxu0 %v3574
    %v4346 = vpop.f32.mrb[0].mxu0
    %v4347 = vadd.f32 0.0, %v4346
    %v4348 = vpop.f32.mrb[0].mxu0
    %v4349 = vpop.f32.mrb[0].mxu0
    %v4350 = vadd.f32 0.0, %v4349
    %v4351 = vpop.f32.mrb[0].mxu0
    %4352 = vmatprep.mubr.bf16.mxu0 0
    %4353 = vmatmul.mubr.bf16.gmra.mrb[0].mxu0 %v3577
    %v4354 = vpop.f32.mrb[0].mxu0
    %v4355 = vadd.f32 0.0, %v4354
    %v4356 = vpop.f32.mrb[0].mxu0
    %v4357 = vpop.f32.mrb[0].mxu0
    %v4358 = vadd.f32 0.0, %v4357
    %v4359 = vpop.f32.mrb[0].mxu0
    %4360 = vmatprep.mubr.bf16.mxu0 0
    %4361 = vmatmul.mubr.bf16.gmra.mrb[0].mxu0 %v3580
    %v4362 = vpop.f32.mrb[0].mxu0
    %v4363 = vadd.f32 0.0, %v4362
    %v4364 = vpop.f32.mrb[0].mxu0
    %v4365 = vpop.f32.mrb[0].mxu0
    %v4366 = vadd.f32 0.0, %v4365
    %v4367 = vpop.f32.mrb[0].mxu0
    %4368 = vmatprep.mubr.bf16.mxu0 0
    %4369 = vmatmul.mubr.bf16.gmra.mrb[0].mxu0 %v3583
    %v4370 = vpop.f32.mrb[0].mxu0
    %v4371 = vadd.f32 0.0, %v4370
    %v4372 = vpop.f32.mrb[0].mxu0
    %v4373 = vpop.f32.mrb[0].mxu0
    %v4374 = vadd.f32 0.0, %v4373
    %v4375 = vpop.f32.mrb[0].mxu0
    %4376 = vmatprep.mubr.bf16.mxu0 0
    %4377 = vmatmul.mubr.bf16.gmra.mrb[0].mxu0 %v3586
    %v4378 = vpop.f32.mrb[0].mxu0
    %v4379 = vadd.f32 0.0, %v4378
    %v4380 = vpop.f32.mrb[0].mxu0
    %v4381 = vpop.f32.mrb[0].mxu0
    %v4382 = vadd.f32 0.0, %v4381
    %v4383 = vpop.f32.mrb[0].mxu0
    %4384 = vmatprep.mubr.bf16.mxu0 0
    %4385 = vmatmul.mubr.bf16.gmra.mrb[0].mxu0 %v3589
    %v4386 = vpop.f32.mrb[0].mxu0
    %v4387 = vadd.f32 0.0, %v4386
    %v4388 = vpop.f32.mrb[0].mxu0
    %v4389 = vpop.f32.mrb[0].mxu0
    %v4390 = vadd.f32 0.0, %v4389
    %v4391 = vpop.f32.mrb[0].mxu0
    %4392 = vmatprep.mubr.bf16.mxu0 0
    %4393 = vmatmul.mubr.bf16.gmra.mrb[0].mxu0 %v3592
    %v4394 = vpop.f32.mrb[0].mxu0
    %v4395 = vadd.f32 0.0, %v4394
    %v4396 = vpop.f32.mrb[0].mxu0
    %v4397 = vpop.f32.mrb[0].mxu0
    %v4398 = vadd.f32 0.0, %v4397
    %v4399 = vpop.f32.mrb[0].mxu0
    %4400 = vmatprep.mubr.bf16.mxu0 0
    %4401 = vmatmul.mubr.bf16.gmra.mrb[0].mxu0 %v4048
    %v4402 = vpop.f32.mrb[0].mxu0
    %v4403 = vadd.f32 0.0, %v4402
    %v4404 = vpop.f32.mrb[0].mxu0
    %v4405 = vpop.f32.mrb[0].mxu0
    %v4406 = vadd.f32 0.0, %v4405
    %v4407 = vpop.f32.mrb[0].mxu0
    %4408 = vmatprep.mubr.bf16.mxu0 0
    %4409 = vmatmul.mubr.bf16.gmra.mrb[0].mxu0 %v4051
    %v4410 = vpop.f32.mrb[0].mxu0
    %v4411 = vadd.f32 0.0, %v4410
    %v4412 = vpop.f32.mrb[0].mxu0
    %v4413 = vpop.f32.mrb[0].mxu0
    %v4414 = vpop.f32.mrb[0].mxu0
    %4415 = vdwg.mxu0
    %v4416 = vadd.f32 %v3960, %v4091
    %v4417 = vadd.f32 %v3961, %v4094
    %v4418 = vadd.f32 %v3962, %v4099
    %v4419 = vadd.f32 %v3963, %v4102
    %v4420 = vadd.f32 %v3964, %v4107
    %v4421 = vadd.f32 %v3965, %v4110
    %v4422 = vadd.f32 %v3966, %v4115
    %v4423 = vadd.f32 %v3967, %v4118
    %v4424 = vadd.f32 %v3968, %v4123
    %v4425 = vadd.f32 %v3969, %v4126
    %v4426 = vadd.f32 %v3970, %v4131
    %v4427 = vadd.f32 %v3971, %v4134
    %v4428 = vadd.f32 %v3972, %v4139
    %v4429 = vadd.f32 %v3973, %v4142
    %v4430 = vadd.f32 %v3974, %v4147
    %v4431 = vadd.f32 %v3975, %v4150
    %v4432 = vadd.f32 %v3976, %v4155
    %v4433 = vadd.f32 %v3977, %v4158
    %v4434 = vadd.f32 %v3978, %v4163
    %v4435 = vadd.f32 %v3979, %v4166
    %v4436 = vadd.f32 %v3980, %v4171
    %v4437 = vadd.f32 %v3981, %v4174
    %v4438 = vadd.f32 %v3982, %v4179
    %v4439 = vadd.f32 %v3983, %v4182
    %v4440 = vadd.f32 %v3984, %v4187
    %v4441 = vadd.f32 %v3985, %v4190
    %v4442 = vadd.f32 %v3986, %v4195
    %v4443 = vadd.f32 %v3987, %v4198
    %v4444 = vadd.f32 %v3988, %v4203
    %v4445 = vadd.f32 %v3989, %v4206
    %v4446 = vadd.f32 %v3990, %v4211
    %v4447 = vadd.f32 %v3991, %v4214
    %v4448 = vadd.f32 %v3992, %v4219
    %v4449 = vadd.f32 %v3993, %v4222
    %v4450 = vadd.f32 %v3994, %v4227
    %v4451 = vadd.f32 %v3995, %v4230
    %v4452 = vadd.f32 %v3996, %v4235
    %v4453 = vadd.f32 %v3997, %v4238
    %v4454 = vadd.f32 %v3998, %v4243
    %v4455 = vadd.f32 %v3999, %v4246
    %v4456 = vadd.f32 %v4000, %v4251
    %v4457 = vadd.f32 %v4001, %v4254
    %v4458 = vadd.f32 %v4002, %v4259
    %v4459 = vadd.f32 %v4003, %v4262
    %v4460 = vadd.f32 %v4004, %v4267
    %v4461 = vadd.f32 %v4005, %v4270
    %v4462 = vadd.f32 %v4006, %v4275
    %v4463 = vadd.f32 %v4007, %v4278
    %v4464 = vadd.f32 %v4008, %v4283
    %v4465 = vadd.f32 %v4009, %v4286
    %v4466 = vadd.f32 %v4010, %v4291
    %v4467 = vadd.f32 %v4011, %v4294
    %v4468 = vadd.f32 %v4012, %v4299
    %v4469 = vadd.f32 %v4013, %v4302
    %v4470 = vadd.f32 %v4014, %v4307
    %v4471 = vadd.f32 %v4015, %v4310
    %v4472 = vadd.f32 %v4016, %v4315
    %v4473 = vadd.f32 %v4017, %v4318
    %v4474 = vadd.f32 %v4018, %v4323
    %v4475 = vadd.f32 %v4019, %v4326
    %v4476 = vadd.f32 %v4020, %v4331
    %v4477 = vadd.f32 %v4021, %v4334
    %v4478 = vadd.f32 %v4022, %v4339
    %v4479 = vadd.f32 %v4023, %v4342
    %v4480 = vadd.f32 %v4024, %v4347
    %v4481 = vadd.f32 %v4025, %v4350
    %v4482 = vadd.f32 %v4026, %v4355
    %v4483 = vadd.f32 %v4027, %v4358
    %v4484 = vadd.f32 %v4028, %v4363
    %v4485 = vadd.f32 %v4029, %v4366
    %v4486 = vadd.f32 %v4030, %v4371
    %v4487 = vadd.f32 %v4031, %v4374
    %v4488 = vadd.f32 %v4032, %v4379
    %v4489 = vadd.f32 %v4033, %v4382
    %v4490 = vadd.f32 %v4034, %v4387
    %v4491 = vadd.f32 %v4035, %v4390
    %v4492 = vadd.f32 %v4036, %v4395
    %v4493 = vadd.f32 %v4037, %v4398
    %v4494 = vadd.f32 %v4038, %v4403
    %v4495 = vadd.f32 %v4039, %v4406
    %v4496 = vadd.f32 %v4040, %v4411
    %s4497 = scalar_lea.vmem %s1, 14
    %v4498 = vld [vmem:[%s4497] sm:$0x3]
    %vm4499 = vsmask.f32 5376
    %v4500 = vrot.slane %v263, 2
    %v4501 = vrot.slane %v259, 3
    %v4502 = vor.u32 %v4500, %v4501
    %v4503 = vrot.slane %v271, 2
    %v4504 = vrot.slane %v267, 3
    %v4505 = vor.u32 %v4503, %v4504
    %v4506 = vsel %vm4499, %v4502, %v4505
    %v4507 = vrot.slane %v279, 2
    %v4508 = vrot.slane %v275, 3
    %v4509 = vor.u32 %v4507, %v4508
    %v4510 = vsel %vm4499, %v4505, %v4509
    %v4511 = vrot.slane %v287, 2
    %v4512 = vrot.slane %v283, 3
    %v4513 = vor.u32 %v4511, %v4512
    %v4514 = vsel %vm4499, %v4509, %v4513
    %v4515 = vrot.slane %v295, 2
    %v4516 = vrot.slane %v291, 3
    %v4517 = vor.u32 %v4515, %v4516
    %v4518 = vsel %vm4499, %v4513, %v4517
    %v4519 = vrot.slane %v303, 2
    %v4520 = vrot.slane %v299, 3
    %v4521 = vor.u32 %v4519, %v4520
    %v4522 = vsel %vm4499, %v4517, %v4521
    %v4523 = vrot.slane %v311, 2
    %v4524 = vrot.slane %v307, 3
    %v4525 = vor.u32 %v4523, %v4524
    %v4526 = vsel %vm4499, %v4521, %v4525
    %v4527 = vrot.slane %v319, 2
    %v4528 = vrot.slane %v315, 3
    %v4529 = vor.u32 %v4527, %v4528
    %v4530 = vsel %vm4499, %v4525, %v4529
    %v4531 = vrot.slane %v327, 2
    %v4532 = vrot.slane %v323, 3
    %v4533 = vor.u32 %v4531, %v4532
    %v4534 = vsel %vm4499, %v4529, %v4533
    %v4535 = vrot.slane %v335, 2
    %v4536 = vrot.slane %v331, 3
    %v4537 = vor.u32 %v4535, %v4536
    %v4538 = vsel %vm4499, %v4533, %v4537
    %v4539 = vrot.slane %v343, 2
    %v4540 = vrot.slane %v339, 3
    %v4541 = vor.u32 %v4539, %v4540
    %v4542 = vsel %vm4499, %v4537, %v4541
    %v4543 = vrot.slane %v351, 2
    %v4544 = vrot.slane %v347, 3
    %v4545 = vor.u32 %v4543, %v4544
    %v4546 = vsel %vm4499, %v4541, %v4545
    %v4547 = vrot.slane %v359, 2
    %v4548 = vrot.slane %v355, 3
    %v4549 = vor.u32 %v4547, %v4548
    %v4550 = vsel %vm4499, %v4545, %v4549
    %v4551 = vrot.slane %v367, 2
    %v4552 = vrot.slane %v363, 3
    %v4553 = vor.u32 %v4551, %v4552
    %v4554 = vsel %vm4499, %v4549, %v4553
    %v4555 = vrot.slane %v375, 2
    %v4556 = vrot.slane %v371, 3
    %v4557 = vor.u32 %v4555, %v4556
    %v4558 = vsel %vm4499, %v4553, %v4557
    %v4559 = vrot.slane %v383, 2
    %v4560 = vrot.slane %v379, 3
    %v4561 = vor.u32 %v4559, %v4560
    %v4562 = vsel %vm4499, %v4557, %v4561
    %v4563 = vrot.slane %v391, 2
    %v4564 = vrot.slane %v387, 3
    %v4565 = vor.u32 %v4563, %v4564
    %v4566 = vsel %vm4499, %v4561, %v4565
    %v4567 = vrot.slane %v399, 2
    %v4568 = vrot.slane %v395, 3
    %v4569 = vor.u32 %v4567, %v4568
    %v4570 = vsel %vm4499, %v4565, %v4569
    %v4571 = vrot.slane %v407, 2
    %v4572 = vrot.slane %v403, 3
    %v4573 = vor.u32 %v4571, %v4572
    %v4574 = vsel %vm4499, %v4569, %v4573
    %v4575 = vrot.slane %v415, 2
    %v4576 = vrot.slane %v411, 3
    %v4577 = vor.u32 %v4575, %v4576
    %v4578 = vsel %vm4499, %v4573, %v4577
    %v4579 = vrot.slane %v423, 2
    %v4580 = vrot.slane %v419, 3
    %v4581 = vor.u32 %v4579, %v4580
    %v4582 = vsel %vm4499, %v4577, %v4581
    %v4583 = vrot.slane %v431, 2
    %v4584 = vrot.slane %v427, 3
    %v4585 = vor.u32 %v4583, %v4584
    %v4586 = vsel %vm4499, %v4581, %v4585
    %v4587 = vrot.slane %v439, 2
    %v4588 = vrot.slane %v435, 3
    %v4589 = vor.u32 %v4587, %v4588
    %v4590 = vsel %vm4499, %v4585, %v4589
    %v4591 = vrot.slane %v447, 2
    %v4592 = vrot.slane %v443, 3
    %v4593 = vor.u32 %v4591, %v4592
    %v4594 = vsel %vm4499, %v4589, %v4593
    %v4595 = vrot.slane %v455, 2
    %v4596 = vrot.slane %v451, 3
    %v4597 = vor.u32 %v4595, %v4596
    %v4598 = vsel %vm4499, %v4593, %v4597
    %v4599 = vrot.slane %v463, 2
    %v4600 = vrot.slane %v459, 3
    %v4601 = vor.u32 %v4599, %v4600
    %v4602 = vsel %vm4499, %v4597, %v4601
    %v4603 = vrot.slane %v471, 2
    %v4604 = vrot.slane %v467, 3
    %v4605 = vor.u32 %v4603, %v4604
    %v4606 = vsel %vm4499, %v4601, %v4605
    %v4607 = vrot.slane %v479, 2
    %v4608 = vrot.slane %v475, 3
    %v4609 = vor.u32 %v4607, %v4608
    %v4610 = vsel %vm4499, %v4605, %v4609
    %v4611 = vrot.slane %v487, 2
    %v4612 = vrot.slane %v483, 3
    %v4613 = vor.u32 %v4611, %v4612
    %v4614 = vsel %vm4499, %v4609, %v4613
    %v4615 = vrot.slane %v495, 2
    %v4616 = vrot.slane %v491, 3
    %v4617 = vor.u32 %v4615, %v4616
    %v4618 = vsel %vm4499, %v4613, %v4617
    %v4619 = vrot.slane %v503, 2
    %v4620 = vrot.slane %v499, 3
    %v4621 = vor.u32 %v4619, %v4620
    %v4622 = vsel %vm4499, %v4617, %v4621
    %v4623 = vrot.slane %v511, 2
    %v4624 = vrot.slane %v507, 3
    %v4625 = vor.u32 %v4623, %v4624
    %v4626 = vsel %vm4499, %v4621, %v4625
    %v4627 = vrot.slane %v519, 2
    %v4628 = vrot.slane %v515, 3
    %v4629 = vor.u32 %v4627, %v4628
    %v4630 = vsel %vm4499, %v4625, %v4629
    %v4631 = vrot.slane %v527, 2
    %v4632 = vrot.slane %v523, 3
    %v4633 = vor.u32 %v4631, %v4632
    %v4634 = vsel %vm4499, %v4629, %v4633
    %v4635 = vrot.slane %v535, 2
    %v4636 = vrot.slane %v531, 3
    %v4637 = vor.u32 %v4635, %v4636
    %v4638 = vsel %vm4499, %v4633, %v4637
    %v4639 = vrot.slane %v543, 2
    %v4640 = vrot.slane %v539, 3
    %v4641 = vor.u32 %v4639, %v4640
    %v4642 = vsel %vm4499, %v4637, %v4641
    %v4643 = vrot.slane %v551, 2
    %v4644 = vrot.slane %v547, 3
    %v4645 = vor.u32 %v4643, %v4644
    %v4646 = vsel %vm4499, %v4641, %v4645
    %v4647 = vrot.slane %v559, 2
    %v4648 = vrot.slane %v555, 3
    %v4649 = vor.u32 %v4647, %v4648
    %v4650 = vsel %vm4499, %v4645, %v4649
    %v4651 = vrot.slane %v567, 2
    %v4652 = vrot.slane %v563, 3
    %v4653 = vor.u32 %v4651, %v4652
    %v4654 = vsel %vm4499, %v4649, %v4653
    %v4655 = vrot.slane %v2815, 2
    %v4656 = vrot.slane %v2818, 3
    %v4657 = vor.u32 %v4655, %v4656
    %v4658 = vsel %vm4499, %v4653, %v4657
    %v4660 = vshrl.u32 %v4041, 16
    %v4662 = vrot.slane %v4660, 2
    %v4663 = vshll.u32 %v4041, 16
    %v4665 = vrot.slane %v4663, 3
    %v4666 = vor.u32 %v4662, %v4665
    %v4667 = vsel %vm4499, %v4657, %v4666
    %v4669 = vsel %vm570, %v4506, 0
    %v4672 = vsel %vm570, %v4510, 0
    %v4675 = vsel %vm570, %v4514, 0
    %v4678 = vsel %vm570, %v4518, 0
    %v4681 = vsel %vm570, %v4522, 0
    %v4684 = vsel %vm570, %v4526, 0
    %v4687 = vsel %vm570, %v4530, 0
    %v4690 = vsel %vm570, %v4534, 0
    %v4693 = vsel %vm570, %v4538, 0
    %v4696 = vsel %vm570, %v4542, 0
    %v4699 = vsel %vm570, %v4546, 0
    %v4702 = vsel %vm570, %v4550, 0
    %v4705 = vsel %vm570, %v4554, 0
    %v4708 = vsel %vm570, %v4558, 0
    %v4711 = vsel %vm570, %v4562, 0
    %v4714 = vsel %vm570, %v4566, 0
    %v4717 = vsel %vm570, %v4570, 0
    %v4720 = vsel %vm570, %v4574, 0
    %v4723 = vsel %vm570, %v4578, 0
    %v4726 = vsel %vm570, %v4582, 0
    %v4729 = vsel %vm570, %v4586, 0
    %v4732 = vsel %vm570, %v4590, 0
    %v4735 = vsel %vm570, %v4594, 0
    %v4738 = vsel %vm570, %v4598, 0
    %v4741 = vsel %vm570, %v4602, 0
    %v4744 = vsel %vm570, %v4606, 0
    %v4747 = vsel %vm570, %v4610, 0
    %v4750 = vsel %vm570, %v4614, 0
    %v4753 = vsel %vm570, %v4618, 0
    %v4756 = vsel %vm570, %v4622, 0
    %v4759 = vsel %vm570, %v4626, 0
    %v4762 = vsel %vm570, %v4630, 0
    %v4765 = vsel %vm570, %v4634, 0
    %v4768 = vsel %vm570, %v4638, 0
    %v4771 = vsel %vm570, %v4642, 0
    %v4774 = vsel %vm570, %v4646, 0
    %v4777 = vsel %vm570, %v4650, 0
    %v4780 = vsel %vm570, %v4654, 0
    %v4783 = vsel %vm570, %v4658, 0
    %v4786 = vsel %vm570, %v4667, 0
    %v4789 = vsel %vm570, %v4666, 0
    %v4792 = vsel %vm694, %v4498, 0
    %4794 = vmatprep.subr.bf16.mxu0 0
    %4795 = vmatpush1.bf16.msra.mxu0 %v4792
    %4796 = vmatprep.subr.bf16.mxu0 0
    %4797 = vmatpush1.bf16.msra.mxu0 0
    %4798 = vmatprep.subr.bf16.mxu0 0
    %4799 = vmatpush1.bf16.msra.mxu0 0
    %4800 = vmatprep.subr.bf16.mxu0 0
    %4801 = vmatpush1.bf16.msra.mxu0 0
    %4802 = vmatprep.subr.bf16.mxu0 0
    %4803 = vmatpush1.bf16.msra.mxu0 0
    %4804 = vmatprep.subr.bf16.mxu0 0
    %4805 = vmatpush1.bf16.msra.mxu0 0
    %4806 = vmatprep.subr.bf16.mxu0 0
    %4807 = vmatpush1.bf16.msra.mxu0 0
    %4808 = vmatprep.subr.bf16.mxu0 0
    %4809 = vmatpush1.bf16.msra.mxu0 0
    %4810 = vmatprep.subr.bf16.mxu0 0
    %4811 = vmatpush1.bf16.msra.mxu0 0
    %4812 = vmatprep.subr.bf16.mxu0 0
    %4813 = vmatpush1.bf16.msra.mxu0 0
    %4814 = vmatprep.subr.bf16.mxu0 0
    %4815 = vmatpush1.bf16.msra.mxu0 0
    %4816 = vmatprep.subr.bf16.mxu0 0
    %4817 = vmatpush1.bf16.msra.mxu0 0
    %4818 = vmatprep.subr.bf16.mxu0 0
    %4819 = vmatpush1.bf16.msra.mxu0 0
    %4820 = vmatprep.subr.bf16.mxu0 0
    %4821 = vmatpush1.bf16.msra.mxu0 0
    %4822 = vmatprep.subr.bf16.mxu0 0
    %4823 = vmatpush1.bf16.msra.mxu0 0
    %4824 = vmatprep.subr.bf16.mxu0 0
    %4825 = vmatpush1.bf16.msra.mxu0 0
    %4826 = vmatprep.mubr.bf16.mxu0 0
    %4827 = vmatmul.mubr.bf16.gmra.mrb[0].mxu0 %v4669
    %v4828 = vpop.f32.mrb[0].mxu0
    %v4829 = vadd.f32 0.0, %v4828
    %v4830 = vpop.f32.mrb[0].mxu0
    %v4831 = vpop.f32.mrb[0].mxu0
    %v4832 = vadd.f32 0.0, %v4831
    %v4833 = vpop.f32.mrb[0].mxu0
    %4834 = vmatprep.mubr.bf16.mxu0 0
    %4835 = vmatmul.mubr.bf16.gmra.mrb[0].mxu0 %v4672
    %v4836 = vpop.f32.mrb[0].mxu0
    %v4837 = vadd.f32 0.0, %v4836
    %v4838 = vpop.f32.mrb[0].mxu0
    %v4839 = vpop.f32.mrb[0].mxu0
    %v4840 = vadd.f32 0.0, %v4839
    %v4841 = vpop.f32.mrb[0].mxu0
    %4842 = vmatprep.mubr.bf16.mxu0 0
    %4843 = vmatmul.mubr.bf16.gmra.mrb[0].mxu0 %v4675
    %v4844 = vpop.f32.mrb[0].mxu0
    %v4845 = vadd.f32 0.0, %v4844
    %v4846 = vpop.f32.mrb[0].mxu0
    %v4847 = vpop.f32.mrb[0].mxu0
    %v4848 = vadd.f32 0.0, %v4847
    %v4849 = vpop.f32.mrb[0].mxu0
    %4850 = vmatprep.mubr.bf16.mxu0 0
    %4851 = vmatmul.mubr.bf16.gmra.mrb[0].mxu0 %v4678
    %v4852 = vpop.f32.mrb[0].mxu0
    %v4853 = vadd.f32 0.0, %v4852
    %v4854 = vpop.f32.mrb[0].mxu0
    %v4855 = vpop.f32.mrb[0].mxu0
    %v4856 = vadd.f32 0.0, %v4855
    %v4857 = vpop.f32.mrb[0].mxu0
    %4858 = vmatprep.mubr.bf16.mxu0 0
    %4859 = vmatmul.mubr.bf16.gmra.mrb[0].mxu0 %v4681
    %v4860 = vpop.f32.mrb[0].mxu0
    %v4861 = vadd.f32 0.0, %v4860
    %v4862 = vpop.f32.mrb[0].mxu0
    %v4863 = vpop.f32.mrb[0].mxu0
    %v4864 = vadd.f32 0.0, %v4863
    %v4865 = vpop.f32.mrb[0].mxu0
    %4866 = vmatprep.mubr.bf16.mxu0 0
    %4867 = vmatmul.mubr.bf16.gmra.mrb[0].mxu0 %v4684
    %v4868 = vpop.f32.mrb[0].mxu0
    %v4869 = vadd.f32 0.0, %v4868
    %v4870 = vpop.f32.mrb[0].mxu0
    %v4871 = vpop.f32.mrb[0].mxu0
    %v4872 = vadd.f32 0.0, %v4871
    %v4873 = vpop.f32.mrb[0].mxu0
    %4874 = vmatprep.mubr.bf16.mxu0 0
    %4875 = vmatmul.mubr.bf16.gmra.mrb[0].mxu0 %v4687
    %v4876 = vpop.f32.mrb[0].mxu0
    %v4877 = vadd.f32 0.0, %v4876
    %v4878 = vpop.f32.mrb[0].mxu0
    %v4879 = vpop.f32.mrb[0].mxu0
    %v4880 = vadd.f32 0.0, %v4879
    %v4881 = vpop.f32.mrb[0].mxu0
    %4882 = vmatprep.mubr.bf16.mxu0 0
    %4883 = vmatmul.mubr.bf16.gmra.mrb[0].mxu0 %v4690
    %v4884 = vpop.f32.mrb[0].mxu0
    %v4885 = vadd.f32 0.0, %v4884
    %v4886 = vpop.f32.mrb[0].mxu0
    %v4887 = vpop.f32.mrb[0].mxu0
    %v4888 = vadd.f32 0.0, %v4887
    %v4889 = vpop.f32.mrb[0].mxu0
    %4890 = vmatprep.mubr.bf16.mxu0 0
    %4891 = vmatmul.mubr.bf16.gmra.mrb[0].mxu0 %v4693
    %v4892 = vpop.f32.mrb[0].mxu0
    %v4893 = vadd.f32 0.0, %v4892
    %v4894 = vpop.f32.mrb[0].mxu0
    %v4895 = vpop.f32.mrb[0].mxu0
    %v4896 = vadd.f32 0.0, %v4895
    %v4897 = vpop.f32.mrb[0].mxu0
    %4898 = vmatprep.mubr.bf16.mxu0 0
    %4899 = vmatmul.mubr.bf16.gmra.mrb[0].mxu0 %v4696
    %v4900 = vpop.f32.mrb[0].mxu0
    %v4901 = vadd.f32 0.0, %v4900
    %v4902 = vpop.f32.mrb[0].mxu0
    %v4903 = vpop.f32.mrb[0].mxu0
    %v4904 = vadd.f32 0.0, %v4903
    %v4905 = vpop.f32.mrb[0].mxu0
    %4906 = vmatprep.mubr.bf16.mxu0 0
    %4907 = vmatmul.mubr.bf16.gmra.mrb[0].mxu0 %v4699
    %v4908 = vpop.f32.mrb[0].mxu0
    %v4909 = vadd.f32 0.0, %v4908
    %v4910 = vpop.f32.mrb[0].mxu0
    %v4911 = vpop.f32.mrb[0].mxu0
    %v4912 = vadd.f32 0.0, %v4911
    %v4913 = vpop.f32.mrb[0].mxu0
    %4914 = vmatprep.mubr.bf16.mxu0 0
    %4915 = vmatmul.mubr.bf16.gmra.mrb[0].mxu0 %v4702
    %v4916 = vpop.f32.mrb[0].mxu0
    %v4917 = vadd.f32 0.0, %v4916
    %v4918 = vpop.f32.mrb[0].mxu0
    %v4919 = vpop.f32.mrb[0].mxu0
    %v4920 = vadd.f32 0.0, %v4919
    %v4921 = vpop.f32.mrb[0].mxu0
    %4922 = vmatprep.mubr.bf16.mxu0 0
    %4923 = vmatmul.mubr.bf16.gmra.mrb[0].mxu0 %v4705
    %v4924 = vpop.f32.mrb[0].mxu0
    %v4925 = vadd.f32 0.0, %v4924
    %v4926 = vpop.f32.mrb[0].mxu0
    %v4927 = vpop.f32.mrb[0].mxu0
    %v4928 = vadd.f32 0.0, %v4927
    %v4929 = vpop.f32.mrb[0].mxu0
    %4930 = vmatprep.mubr.bf16.mxu0 0
    %4931 = vmatmul.mubr.bf16.gmra.mrb[0].mxu0 %v4708
    %v4932 = vpop.f32.mrb[0].mxu0
    %v4933 = vadd.f32 0.0, %v4932
    %v4934 = vpop.f32.mrb[0].mxu0
    %v4935 = vpop.f32.mrb[0].mxu0
    %v4936 = vadd.f32 0.0, %v4935
    %v4937 = vpop.f32.mrb[0].mxu0
    %4938 = vmatprep.mubr.bf16.mxu0 0
    %4939 = vmatmul.mubr.bf16.gmra.mrb[0].mxu0 %v4711
    %v4940 = vpop.f32.mrb[0].mxu0
    %v4941 = vadd.f32 0.0, %v4940
    %v4942 = vpop.f32.mrb[0].mxu0
    %v4943 = vpop.f32.mrb[0].mxu0
    %v4944 = vadd.f32 0.0, %v4943
    %v4945 = vpop.f32.mrb[0].mxu0
    %4946 = vmatprep.mubr.bf16.mxu0 0
    %4947 = vmatmul.mubr.bf16.gmra.mrb[0].mxu0 %v4714
    %v4948 = vpop.f32.mrb[0].mxu0
    %v4949 = vadd.f32 0.0, %v4948
    %v4950 = vpop.f32.mrb[0].mxu0
    %v4951 = vpop.f32.mrb[0].mxu0
    %v4952 = vadd.f32 0.0, %v4951
    %v4953 = vpop.f32.mrb[0].mxu0
    %4954 = vmatprep.mubr.bf16.mxu0 0
    %4955 = vmatmul.mubr.bf16.gmra.mrb[0].mxu0 %v4717
    %v4956 = vpop.f32.mrb[0].mxu0
    %v4957 = vadd.f32 0.0, %v4956
    %v4958 = vpop.f32.mrb[0].mxu0
    %v4959 = vpop.f32.mrb[0].mxu0
    %v4960 = vadd.f32 0.0, %v4959
    %v4961 = vpop.f32.mrb[0].mxu0
    %4962 = vmatprep.mubr.bf16.mxu0 0
    %4963 = vmatmul.mubr.bf16.gmra.mrb[0].mxu0 %v4720
    %v4964 = vpop.f32.mrb[0].mxu0
    %v4965 = vadd.f32 0.0, %v4964
    %v4966 = vpop.f32.mrb[0].mxu0
    %v4967 = vpop.f32.mrb[0].mxu0
    %v4968 = vadd.f32 0.0, %v4967
    %v4969 = vpop.f32.mrb[0].mxu0
    %4970 = vmatprep.mubr.bf16.mxu0 0
    %4971 = vmatmul.mubr.bf16.gmra.mrb[0].mxu0 %v4723
    %v4972 = vpop.f32.mrb[0].mxu0
    %v4973 = vadd.f32 0.0, %v4972
    %v4974 = vpop.f32.mrb[0].mxu0
    %v4975 = vpop.f32.mrb[0].mxu0
    %v4976 = vadd.f32 0.0, %v4975
    %v4977 = vpop.f32.mrb[0].mxu0
    %4978 = vmatprep.mubr.bf16.mxu0 0
    %4979 = vmatmul.mubr.bf16.gmra.mrb[0].mxu0 %v4726
    %v4980 = vpop.f32.mrb[0].mxu0
    %v4981 = vadd.f32 0.0, %v4980
    %v4982 = vpop.f32.mrb[0].mxu0
    %v4983 = vpop.f32.mrb[0].mxu0
    %v4984 = vadd.f32 0.0, %v4983
    %v4985 = vpop.f32.mrb[0].mxu0
    %4986 = vmatprep.mubr.bf16.mxu0 0
    %4987 = vmatmul.mubr.bf16.gmra.mrb[0].mxu0 %v4729
    %v4988 = vpop.f32.mrb[0].mxu0
    %v4989 = vadd.f32 0.0, %v4988
    %v4990 = vpop.f32.mrb[0].mxu0
    %v4991 = vpop.f32.mrb[0].mxu0
    %v4992 = vadd.f32 0.0, %v4991
    %v4993 = vpop.f32.mrb[0].mxu0
    %4994 = vmatprep.mubr.bf16.mxu0 0
    %4995 = vmatmul.mubr.bf16.gmra.mrb[0].mxu0 %v4732
    %v4996 = vpop.f32.mrb[0].mxu0
    %v4997 = vadd.f32 0.0, %v4996
    %v4998 = vpop.f32.mrb[0].mxu0
    %v4999 = vpop.f32.mrb[0].mxu0
    %v5000 = vadd.f32 0.0, %v4999
    %v5001 = vpop.f32.mrb[0].mxu0
    %5002 = vmatprep.mubr.bf16.mxu0 0
    %5003 = vmatmul.mubr.bf16.gmra.mrb[0].mxu0 %v4735
    %v5004 = vpop.f32.mrb[0].mxu0
    %v5005 = vadd.f32 0.0, %v5004
    %v5006 = vpop.f32.mrb[0].mxu0
    %v5007 = vpop.f32.mrb[0].mxu0
    %v5008 = vadd.f32 0.0, %v5007
    %v5009 = vpop.f32.mrb[0].mxu0
    %5010 = vmatprep.mubr.bf16.mxu0 0
    %5011 = vmatmul.mubr.bf16.gmra.mrb[0].mxu0 %v4738
    %v5012 = vpop.f32.mrb[0].mxu0
    %v5013 = vadd.f32 0.0, %v5012
    %v5014 = vpop.f32.mrb[0].mxu0
    %v5015 = vpop.f32.mrb[0].mxu0
    %v5016 = vadd.f32 0.0, %v5015
    %v5017 = vpop.f32.mrb[0].mxu0
    %5018 = vmatprep.mubr.bf16.mxu0 0
    %5019 = vmatmul.mubr.bf16.gmra.mrb[0].mxu0 %v4741
    %v5020 = vpop.f32.mrb[0].mxu0
    %v5021 = vadd.f32 0.0, %v5020
    %v5022 = vpop.f32.mrb[0].mxu0
    %v5023 = vpop.f32.mrb[0].mxu0
    %v5024 = vadd.f32 0.0, %v5023
    %v5025 = vpop.f32.mrb[0].mxu0
    %5026 = vmatprep.mubr.bf16.mxu0 0
    %5027 = vmatmul.mubr.bf16.gmra.mrb[0].mxu0 %v4744
    %v5028 = vpop.f32.mrb[0].mxu0
    %v5029 = vadd.f32 0.0, %v5028
    %v5030 = vpop.f32.mrb[0].mxu0
    %v5031 = vpop.f32.mrb[0].mxu0
    %v5032 = vadd.f32 0.0, %v5031
    %v5033 = vpop.f32.mrb[0].mxu0
    %5034 = vmatprep.mubr.bf16.mxu0 0
    %5035 = vmatmul.mubr.bf16.gmra.mrb[0].mxu0 %v4747
    %v5036 = vpop.f32.mrb[0].mxu0
    %v5037 = vadd.f32 0.0, %v5036
    %v5038 = vpop.f32.mrb[0].mxu0
    %v5039 = vpop.f32.mrb[0].mxu0
    %v5040 = vadd.f32 0.0, %v5039
    %v5041 = vpop.f32.mrb[0].mxu0
    %5042 = vmatprep.mubr.bf16.mxu0 0
    %5043 = vmatmul.mubr.bf16.gmra.mrb[0].mxu0 %v4750
    %v5044 = vpop.f32.mrb[0].mxu0
    %v5045 = vadd.f32 0.0, %v5044
    %v5046 = vpop.f32.mrb[0].mxu0
    %v5047 = vpop.f32.mrb[0].mxu0
    %v5048 = vadd.f32 0.0, %v5047
    %v5049 = vpop.f32.mrb[0].mxu0
    %5050 = vmatprep.mubr.bf16.mxu0 0
    %5051 = vmatmul.mubr.bf16.gmra.mrb[0].mxu0 %v4753
    %v5052 = vpop.f32.mrb[0].mxu0
    %v5053 = vadd.f32 0.0, %v5052
    %v5054 = vpop.f32.mrb[0].mxu0
    %v5055 = vpop.f32.mrb[0].mxu0
    %v5056 = vadd.f32 0.0, %v5055
    %v5057 = vpop.f32.mrb[0].mxu0
    %5058 = vmatprep.mubr.bf16.mxu0 0
    %5059 = vmatmul.mubr.bf16.gmra.mrb[0].mxu0 %v4756
    %v5060 = vpop.f32.mrb[0].mxu0
    %v5061 = vadd.f32 0.0, %v5060
    %v5062 = vpop.f32.mrb[0].mxu0
    %v5063 = vpop.f32.mrb[0].mxu0
    %v5064 = vadd.f32 0.0, %v5063
    %v5065 = vpop.f32.mrb[0].mxu0
    %5066 = vmatprep.mubr.bf16.mxu0 0
    %5067 = vmatmul.mubr.bf16.gmra.mrb[0].mxu0 %v4759
    %v5068 = vpop.f32.mrb[0].mxu0
    %v5069 = vadd.f32 0.0, %v5068
    %v5070 = vpop.f32.mrb[0].mxu0
    %v5071 = vpop.f32.mrb[0].mxu0
    %v5072 = vadd.f32 0.0, %v5071
    %v5073 = vpop.f32.mrb[0].mxu0
    %5074 = vmatprep.mubr.bf16.mxu0 0
    %5075 = vmatmul.mubr.bf16.gmra.mrb[0].mxu0 %v4762
    %v5076 = vpop.f32.mrb[0].mxu0
    %v5077 = vadd.f32 0.0, %v5076
    %v5078 = vpop.f32.mrb[0].mxu0
    %v5079 = vpop.f32.mrb[0].mxu0
    %v5080 = vadd.f32 0.0, %v5079
    %v5081 = vpop.f32.mrb[0].mxu0
    %5082 = vmatprep.mubr.bf16.mxu0 0
    %5083 = vmatmul.mubr.bf16.gmra.mrb[0].mxu0 %v4765
    %v5084 = vpop.f32.mrb[0].mxu0
    %v5085 = vadd.f32 0.0, %v5084
    %v5086 = vpop.f32.mrb[0].mxu0
    %v5087 = vpop.f32.mrb[0].mxu0
    %v5088 = vadd.f32 0.0, %v5087
    %v5089 = vpop.f32.mrb[0].mxu0
    %5090 = vmatprep.mubr.bf16.mxu0 0
    %5091 = vmatmul.mubr.bf16.gmra.mrb[0].mxu0 %v4768
    %v5092 = vpop.f32.mrb[0].mxu0
    %v5093 = vadd.f32 0.0, %v5092
    %v5094 = vpop.f32.mrb[0].mxu0
    %v5095 = vpop.f32.mrb[0].mxu0
    %v5096 = vadd.f32 0.0, %v5095
    %v5097 = vpop.f32.mrb[0].mxu0
    %5098 = vmatprep.mubr.bf16.mxu0 0
    %5099 = vmatmul.mubr.bf16.gmra.mrb[0].mxu0 %v4771
    %v5100 = vpop.f32.mrb[0].mxu0
    %v5101 = vadd.f32 0.0, %v5100
    %v5102 = vpop.f32.mrb[0].mxu0
    %v5103 = vpop.f32.mrb[0].mxu0
    %v5104 = vadd.f32 0.0, %v5103
    %v5105 = vpop.f32.mrb[0].mxu0
    %5106 = vmatprep.mubr.bf16.mxu0 0
    %5107 = vmatmul.mubr.bf16.gmra.mrb[0].mxu0 %v4774
    %v5108 = vpop.f32.mrb[0].mxu0
    %v5109 = vadd.f32 0.0, %v5108
    %v5110 = vpop.f32.mrb[0].mxu0
    %v5111 = vpop.f32.mrb[0].mxu0
    %v5112 = vadd.f32 0.0, %v5111
    %v5113 = vpop.f32.mrb[0].mxu0
    %5114 = vmatprep.mubr.bf16.mxu0 0
    %5115 = vmatmul.mubr.bf16.gmra.mrb[0].mxu0 %v4777
    %v5116 = vpop.f32.mrb[0].mxu0
    %v5117 = vadd.f32 0.0, %v5116
    %v5118 = vpop.f32.mrb[0].mxu0
    %v5119 = vpop.f32.mrb[0].mxu0
    %v5120 = vadd.f32 0.0, %v5119
    %v5121 = vpop.f32.mrb[0].mxu0
    %5122 = vmatprep.mubr.bf16.mxu0 0
    %5123 = vmatmul.mubr.bf16.gmra.mrb[0].mxu0 %v4780
    %v5124 = vpop.f32.mrb[0].mxu0
    %v5125 = vadd.f32 0.0, %v5124
    %v5126 = vpop.f32.mrb[0].mxu0
    %v5127 = vpop.f32.mrb[0].mxu0
    %v5128 = vadd.f32 0.0, %v5127
    %v5129 = vpop.f32.mrb[0].mxu0
    %5130 = vmatprep.mubr.bf16.mxu0 0
    %5131 = vmatmul.mubr.bf16.gmra.mrb[0].mxu0 %v4783
    %v5132 = vpop.f32.mrb[0].mxu0
    %v5133 = vadd.f32 0.0, %v5132
    %v5134 = vpop.f32.mrb[0].mxu0
    %v5135 = vpop.f32.mrb[0].mxu0
    %v5136 = vadd.f32 0.0, %v5135
    %v5137 = vpop.f32.mrb[0].mxu0
    %5138 = vmatprep.mubr.bf16.mxu0 0
    %5139 = vmatmul.mubr.bf16.gmra.mrb[0].mxu0 %v4786
    %v5140 = vpop.f32.mrb[0].mxu0
    %v5141 = vadd.f32 0.0, %v5140
    %v5142 = vpop.f32.mrb[0].mxu0
    %v5143 = vpop.f32.mrb[0].mxu0
    %v5144 = vadd.f32 0.0, %v5143
    %v5145 = vpop.f32.mrb[0].mxu0
    %5146 = vmatprep.mubr.bf16.mxu0 0
    %5147 = vmatmul.mubr.bf16.gmra.mrb[0].mxu0 %v4789
    %v5148 = vpop.f32.mrb[0].mxu0
    %v5149 = vadd.f32 0.0, %v5148
    %v5150 = vpop.f32.mrb[0].mxu0
    %v5151 = vpop.f32.mrb[0].mxu0
    %v5152 = vpop.f32.mrb[0].mxu0
    %5153 = vdwg.mxu0
    %v5154 = vadd.f32 %v4416, %v4829
    %v5155 = vadd.f32 %v4417, %v4832
    %v5156 = vadd.f32 %v4418, %v4837
    %v5157 = vadd.f32 %v4419, %v4840
    %v5158 = vadd.f32 %v4420, %v4845
    %v5159 = vadd.f32 %v4421, %v4848
    %v5160 = vadd.f32 %v4422, %v4853
    %v5161 = vadd.f32 %v4423, %v4856
    %v5162 = vadd.f32 %v4424, %v4861
    %v5163 = vadd.f32 %v4425, %v4864
    %v5164 = vadd.f32 %v4426, %v4869
    %v5165 = vadd.f32 %v4427, %v4872
    %v5166 = vadd.f32 %v4428, %v4877
    %v5167 = vadd.f32 %v4429, %v4880
    %v5168 = vadd.f32 %v4430, %v4885
    %v5169 = vadd.f32 %v4431, %v4888
    %v5170 = vadd.f32 %v4432, %v4893
    %v5171 = vadd.f32 %v4433, %v4896
    %v5172 = vadd.f32 %v4434, %v4901
    %v5173 = vadd.f32 %v4435, %v4904
    %v5174 = vadd.f32 %v4436, %v4909
    %v5175 = vadd.f32 %v4437, %v4912
    %v5176 = vadd.f32 %v4438, %v4917
    %v5177 = vadd.f32 %v4439, %v4920
    %v5178 = vadd.f32 %v4440, %v4925
    %v5179 = vadd.f32 %v4441, %v4928
    %v5180 = vadd.f32 %v4442, %v4933
    %v5181 = vadd.f32 %v4443, %v4936
    %v5182 = vadd.f32 %v4444, %v4941
    %v5183 = vadd.f32 %v4445, %v4944
    %v5184 = vadd.f32 %v4446, %v4949
    %v5185 = vadd.f32 %v4447, %v4952
    %v5186 = vadd.f32 %v4448, %v4957
    %v5187 = vadd.f32 %v4449, %v4960
    %v5188 = vadd.f32 %v4450, %v4965
    %v5189 = vadd.f32 %v4451, %v4968
    %v5190 = vadd.f32 %v4452, %v4973
    %v5191 = vadd.f32 %v4453, %v4976
    %v5192 = vadd.f32 %v4454, %v4981
    %v5193 = vadd.f32 %v4455, %v4984
    %v5194 = vadd.f32 %v4456, %v4989
    %v5195 = vadd.f32 %v4457, %v4992
    %v5196 = vadd.f32 %v4458, %v4997
    %v5197 = vadd.f32 %v4459, %v5000
    %v5198 = vadd.f32 %v4460, %v5005
    %v5199 = vadd.f32 %v4461, %v5008
    %v5200 = vadd.f32 %v4462, %v5013
    %v5201 = vadd.f32 %v4463, %v5016
    %v5202 = vadd.f32 %v4464, %v5021
    %v5203 = vadd.f32 %v4465, %v5024
    %v5204 = vadd.f32 %v4466, %v5029
    %v5205 = vadd.f32 %v4467, %v5032
    %v5206 = vadd.f32 %v4468, %v5037
    %v5207 = vadd.f32 %v4469, %v5040
    %v5208 = vadd.f32 %v4470, %v5045
    %v5209 = vadd.f32 %v4471, %v5048
    %v5210 = vadd.f32 %v4472, %v5053
    %v5211 = vadd.f32 %v4473, %v5056
    %v5212 = vadd.f32 %v4474, %v5061
    %v5213 = vadd.f32 %v4475, %v5064
    %v5214 = vadd.f32 %v4476, %v5069
    %v5215 = vadd.f32 %v4477, %v5072
    %v5216 = vadd.f32 %v4478, %v5077
    %v5217 = vadd.f32 %v4479, %v5080
    %v5218 = vadd.f32 %v4480, %v5085
    %v5219 = vadd.f32 %v4481, %v5088
    %v5220 = vadd.f32 %v4482, %v5093
    %v5221 = vadd.f32 %v4483, %v5096
    %v5222 = vadd.f32 %v4484, %v5101
    %v5223 = vadd.f32 %v4485, %v5104
    %v5224 = vadd.f32 %v4486, %v5109
    %v5225 = vadd.f32 %v4487, %v5112
    %v5226 = vadd.f32 %v4488, %v5117
    %v5227 = vadd.f32 %v4489, %v5120
    %v5228 = vadd.f32 %v4490, %v5125
    %v5229 = vadd.f32 %v4491, %v5128
    %v5230 = vadd.f32 %v4492, %v5133
    %v5231 = vadd.f32 %v4493, %v5136
    %v5232 = vadd.f32 %v4494, %v5141
    %v5233 = vadd.f32 %v4495, %v5144
    %v5234 = vadd.f32 %v4496, %v5149
    %s5235 = scalar_lea.vmem %s1, 16
    %v5236 = vld [vmem:[%s5235] sm:$0x3]
    %vm5237 = vcmask 1044480
    %v5238 = vrot.slane %v199, 3
    %v5239 = vrot.slane %v200, 3
    %v5240 = vsel %vm5237, %v5238, %v5239
    %v5241 = vrot.slane %v201, 3
    %v5242 = vsel %vm5237, %v5239, %v5241
    %v5243 = vrot.slane %v202, 3
    %v5244 = vsel %vm5237, %v5241, %v5243
    %v5245 = vrot.slane %v203, 3
    %v5246 = vsel %vm5237, %v5243, %v5245
    %v5247 = vrot.slane %v204, 3
    %v5248 = vsel %vm5237, %v5245, %v5247
    %v5249 = vrot.slane %v205, 3
    %v5250 = vsel %vm5237, %v5247, %v5249
    %v5251 = vrot.slane %v206, 3
    %v5252 = vsel %vm5237, %v5249, %v5251
    %v5253 = vrot.slane %v207, 3
    %v5254 = vsel %vm5237, %v5251, %v5253
    %v5255 = vrot.slane %v208, 3
    %v5256 = vsel %vm5237, %v5253, %v5255
    %v5257 = vrot.slane %v209, 3
    %v5258 = vsel %vm5237, %v5255, %v5257
    %v5259 = vrot.slane %v210, 3
    %v5260 = vsel %vm5237, %v5257, %v5259
    %v5261 = vrot.slane %v211, 3
    %v5262 = vsel %vm5237, %v5259, %v5261
    %v5263 = vrot.slane %v212, 3
    %v5264 = vsel %vm5237, %v5261, %v5263
    %v5265 = vrot.slane %v213, 3
    %v5266 = vsel %vm5237, %v5263, %v5265
    %v5267 = vrot.slane %v214, 3
    %v5268 = vsel %vm5237, %v5265, %v5267
    %v5269 = vrot.slane %v215, 3
    %v5270 = vsel %vm5237, %v5267, %v5269
    %v5271 = vrot.slane %v216, 3
    %v5272 = vsel %vm5237, %v5269, %v5271
    %v5273 = vrot.slane %v217, 3
    %v5274 = vsel %vm5237, %v5271, %v5273
    %v5275 = vrot.slane %v218, 3
    %v5276 = vsel %vm5237, %v5273, %v5275
    %v5277 = vrot.slane %v219, 3
    %v5278 = vsel %vm5237, %v5275, %v5277
    %v5279 = vrot.slane %v220, 3
    %v5280 = vsel %vm5237, %v5277, %v5279
    %v5281 = vrot.slane %v221, 3
    %v5282 = vsel %vm5237, %v5279, %v5281
    %v5283 = vrot.slane %v222, 3
    %v5284 = vsel %vm5237, %v5281, %v5283
    %v5285 = vrot.slane %v223, 3
    %v5286 = vsel %vm5237, %v5283, %v5285
    %v5287 = vrot.slane %v224, 3
    %v5288 = vsel %vm5237, %v5285, %v5287
    %v5289 = vrot.slane %v225, 3
    %v5290 = vsel %vm5237, %v5287, %v5289
    %v5291 = vrot.slane %v226, 3
    %v5292 = vsel %vm5237, %v5289, %v5291
    %v5293 = vrot.slane %v227, 3
    %v5294 = vsel %vm5237, %v5291, %v5293
    %v5295 = vrot.slane %v228, 3
    %v5296 = vsel %vm5237, %v5293, %v5295
    %v5297 = vrot.slane %v229, 3
    %v5298 = vsel %vm5237, %v5295, %v5297
    %v5299 = vrot.slane %v230, 3
    %v5300 = vsel %vm5237, %v5297, %v5299
    %v5301 = vrot.slane %v231, 3
    %v5302 = vsel %vm5237, %v5299, %v5301
    %v5303 = vrot.slane %v232, 3
    %v5304 = vsel %vm5237, %v5301, %v5303
    %v5305 = vrot.slane %v233, 3
    %v5306 = vsel %vm5237, %v5303, %v5305
    %v5307 = vrot.slane %v234, 3
    %v5308 = vsel %vm5237, %v5305, %v5307
    %v5309 = vrot.slane %v235, 3
    %v5310 = vsel %vm5237, %v5307, %v5309
    %v5311 = vrot.slane %v236, 3
    %v5312 = vsel %vm5237, %v5309, %v5311
    %v5313 = vrot.slane %v239, 3
    %v5314 = vsel %vm5237, %v5311, %v5313
    %v5315 = vrot.slane %v2196, 3
    %v5316 = vsel %vm5237, %v5313, %v5315
    %v5317 = vrot.slane %v4041, 3
    %v5318 = vsel %vm5237, %v5315, %v5317
    %v5320 = vsel %vm570, %v5240, 0
    %v5323 = vsel %vm570, %v5242, 0
    %v5326 = vsel %vm570, %v5244, 0
    %v5329 = vsel %vm570, %v5246, 0
    %v5332 = vsel %vm570, %v5248, 0
    %v5335 = vsel %vm570, %v5250, 0
    %v5338 = vsel %vm570, %v5252, 0
    %v5341 = vsel %vm570, %v5254, 0
    %v5344 = vsel %vm570, %v5256, 0
    %v5347 = vsel %vm570, %v5258, 0
    %v5350 = vsel %vm570, %v5260, 0
    %v5353 = vsel %vm570, %v5262, 0
    %v5356 = vsel %vm570, %v5264, 0
    %v5359 = vsel %vm570, %v5266, 0
    %v5362 = vsel %vm570, %v5268, 0
    %v5365 = vsel %vm570, %v5270, 0
    %v5368 = vsel %vm570, %v5272, 0
    %v5371 = vsel %vm570, %v5274, 0
    %v5374 = vsel %vm570, %v5276, 0
    %v5377 = vsel %vm570, %v5278, 0
    %v5380 = vsel %vm570, %v5280, 0
    %v5383 = vsel %vm570, %v5282, 0
    %v5386 = vsel %vm570, %v5284, 0
    %v5389 = vsel %vm570, %v5286, 0
    %v5392 = vsel %vm570, %v5288, 0
    %v5395 = vsel %vm570, %v5290, 0
    %v5398 = vsel %vm570, %v5292, 0
    %v5401 = vsel %vm570, %v5294, 0
    %v5404 = vsel %vm570, %v5296, 0
    %v5407 = vsel %vm570, %v5298, 0
    %v5410 = vsel %vm570, %v5300, 0
    %v5413 = vsel %vm570, %v5302, 0
    %v5416 = vsel %vm570, %v5304, 0
    %v5419 = vsel %vm570, %v5306, 0
    %v5422 = vsel %vm570, %v5308, 0
    %v5425 = vsel %vm570, %v5310, 0
    %v5428 = vsel %vm570, %v5312, 0
    %v5431 = vsel %vm570, %v5314, 0
    %v5434 = vsel %vm570, %v5316, 0
    %v5437 = vsel %vm570, %v5318, 0
    %v5440 = vsel %vm570, %v5317, 0
    %v5443 = vsel %vm694, %v5236, 0
    %5445 = vmatprep.subr.bf16.mxu0 0
    %5446 = vmatpush1.bf16.msra.mxu0 %v5443
    %5447 = vmatprep.subr.bf16.mxu0 0
    %5448 = vmatpush1.bf16.msra.mxu0 0
    %5449 = vmatprep.subr.bf16.mxu0 0
    %5450 = vmatpush1.bf16.msra.mxu0 0
    %5451 = vmatprep.subr.bf16.mxu0 0
    %5452 = vmatpush1.bf16.msra.mxu0 0
    %5453 = vmatprep.subr.bf16.mxu0 0
    %5454 = vmatpush1.bf16.msra.mxu0 0
    %5455 = vmatprep.subr.bf16.mxu0 0
    %5456 = vmatpush1.bf16.msra.mxu0 0
    %5457 = vmatprep.subr.bf16.mxu0 0
    %5458 = vmatpush1.bf16.msra.mxu0 0
    %5459 = vmatprep.subr.bf16.mxu0 0
    %5460 = vmatpush1.bf16.msra.mxu0 0
    %5461 = vmatprep.subr.bf16.mxu0 0
    %5462 = vmatpush1.bf16.msra.mxu0 0
    %5463 = vmatprep.subr.bf16.mxu0 0
    %5464 = vmatpush1.bf16.msra.mxu0 0
    %5465 = vmatprep.subr.bf16.mxu0 0
    %5466 = vmatpush1.bf16.msra.mxu0 0
    %5467 = vmatprep.subr.bf16.mxu0 0
    %5468 = vmatpush1.bf16.msra.mxu0 0
    %5469 = vmatprep.subr.bf16.mxu0 0
    %5470 = vmatpush1.bf16.msra.mxu0 0
    %5471 = vmatprep.subr.bf16.mxu0 0
    %5472 = vmatpush1.bf16.msra.mxu0 0
    %5473 = vmatprep.subr.bf16.mxu0 0
    %5474 = vmatpush1.bf16.msra.mxu0 0
    %5475 = vmatprep.subr.bf16.mxu0 0
    %5476 = vmatpush1.bf16.msra.mxu0 0
    %5477 = vmatprep.mubr.bf16.mxu0 0
    %5478 = vmatmul.mubr.bf16.gmra.mrb[0].mxu0 %v5320
    %v5479 = vpop.f32.mrb[0].mxu0
    %v5480 = vadd.f32 0.0, %v5479
    %v5481 = vpop.f32.mrb[0].mxu0
    %v5482 = vpop.f32.mrb[0].mxu0
    %v5483 = vadd.f32 0.0, %v5482
    %v5484 = vpop.f32.mrb[0].mxu0
    %5485 = vmatprep.mubr.bf16.mxu0 0
    %5486 = vmatmul.mubr.bf16.gmra.mrb[0].mxu0 %v5323
    %v5487 = vpop.f32.mrb[0].mxu0
    %v5488 = vadd.f32 0.0, %v5487
    %v5489 = vpop.f32.mrb[0].mxu0
    %v5490 = vpop.f32.mrb[0].mxu0
    %v5491 = vadd.f32 0.0, %v5490
    %v5492 = vpop.f32.mrb[0].mxu0
    %5493 = vmatprep.mubr.bf16.mxu0 0
    %5494 = vmatmul.mubr.bf16.gmra.mrb[0].mxu0 %v5326
    %v5495 = vpop.f32.mrb[0].mxu0
    %v5496 = vadd.f32 0.0, %v5495
    %v5497 = vpop.f32.mrb[0].mxu0
    %v5498 = vpop.f32.mrb[0].mxu0
    %v5499 = vadd.f32 0.0, %v5498
    %v5500 = vpop.f32.mrb[0].mxu0
    %5501 = vmatprep.mubr.bf16.mxu0 0
    %5502 = vmatmul.mubr.bf16.gmra.mrb[0].mxu0 %v5329
    %v5503 = vpop.f32.mrb[0].mxu0
    %v5504 = vadd.f32 0.0, %v5503
    %v5505 = vpop.f32.mrb[0].mxu0
    %v5506 = vpop.f32.mrb[0].mxu0
    %v5507 = vadd.f32 0.0, %v5506
    %v5508 = vpop.f32.mrb[0].mxu0
    %5509 = vmatprep.mubr.bf16.mxu0 0
    %5510 = vmatmul.mubr.bf16.gmra.mrb[0].mxu0 %v5332
    %v5511 = vpop.f32.mrb[0].mxu0
    %v5512 = vadd.f32 0.0, %v5511
    %v5513 = vpop.f32.mrb[0].mxu0
    %v5514 = vpop.f32.mrb[0].mxu0
    %v5515 = vadd.f32 0.0, %v5514
    %v5516 = vpop.f32.mrb[0].mxu0
    %5517 = vmatprep.mubr.bf16.mxu0 0
    %5518 = vmatmul.mubr.bf16.gmra.mrb[0].mxu0 %v5335
    %v5519 = vpop.f32.mrb[0].mxu0
    %v5520 = vadd.f32 0.0, %v5519
    %v5521 = vpop.f32.mrb[0].mxu0
    %v5522 = vpop.f32.mrb[0].mxu0
    %v5523 = vadd.f32 0.0, %v5522
    %v5524 = vpop.f32.mrb[0].mxu0
    %5525 = vmatprep.mubr.bf16.mxu0 0
    %5526 = vmatmul.mubr.bf16.gmra.mrb[0].mxu0 %v5338
    %v5527 = vpop.f32.mrb[0].mxu0
    %v5528 = vadd.f32 0.0, %v5527
    %v5529 = vpop.f32.mrb[0].mxu0
    %v5530 = vpop.f32.mrb[0].mxu0
    %v5531 = vadd.f32 0.0, %v5530
    %v5532 = vpop.f32.mrb[0].mxu0
    %5533 = vmatprep.mubr.bf16.mxu0 0
    %5534 = vmatmul.mubr.bf16.gmra.mrb[0].mxu0 %v5341
    %v5535 = vpop.f32.mrb[0].mxu0
    %v5536 = vadd.f32 0.0, %v5535
    %v5537 = vpop.f32.mrb[0].mxu0
    %v5538 = vpop.f32.mrb[0].mxu0
    %v5539 = vadd.f32 0.0, %v5538
    %v5540 = vpop.f32.mrb[0].mxu0
    %5541 = vmatprep.mubr.bf16.mxu0 0
    %5542 = vmatmul.mubr.bf16.gmra.mrb[0].mxu0 %v5344
    %v5543 = vpop.f32.mrb[0].mxu0
    %v5544 = vadd.f32 0.0, %v5543
    %v5545 = vpop.f32.mrb[0].mxu0
    %v5546 = vpop.f32.mrb[0].mxu0
    %v5547 = vadd.f32 0.0, %v5546
    %v5548 = vpop.f32.mrb[0].mxu0
    %5549 = vmatprep.mubr.bf16.mxu0 0
    %5550 = vmatmul.mubr.bf16.gmra.mrb[0].mxu0 %v5347
    %v5551 = vpop.f32.mrb[0].mxu0
    %v5552 = vadd.f32 0.0, %v5551
    %v5553 = vpop.f32.mrb[0].mxu0
    %v5554 = vpop.f32.mrb[0].mxu0
    %v5555 = vadd.f32 0.0, %v5554
    %v5556 = vpop.f32.mrb[0].mxu0
    %5557 = vmatprep.mubr.bf16.mxu0 0
    %5558 = vmatmul.mubr.bf16.gmra.mrb[0].mxu0 %v5350
    %v5559 = vpop.f32.mrb[0].mxu0
    %v5560 = vadd.f32 0.0, %v5559
    %v5561 = vpop.f32.mrb[0].mxu0
    %v5562 = vpop.f32.mrb[0].mxu0
    %v5563 = vadd.f32 0.0, %v5562
    %v5564 = vpop.f32.mrb[0].mxu0
    %5565 = vmatprep.mubr.bf16.mxu0 0
    %5566 = vmatmul.mubr.bf16.gmra.mrb[0].mxu0 %v5353
    %v5567 = vpop.f32.mrb[0].mxu0
    %v5568 = vadd.f32 0.0, %v5567
    %v5569 = vpop.f32.mrb[0].mxu0
    %v5570 = vpop.f32.mrb[0].mxu0
    %v5571 = vadd.f32 0.0, %v5570
    %v5572 = vpop.f32.mrb[0].mxu0
    %5573 = vmatprep.mubr.bf16.mxu0 0
    %5574 = vmatmul.mubr.bf16.gmra.mrb[0].mxu0 %v5356
    %v5575 = vpop.f32.mrb[0].mxu0
    %v5576 = vadd.f32 0.0, %v5575
    %v5577 = vpop.f32.mrb[0].mxu0
    %v5578 = vpop.f32.mrb[0].mxu0
    %v5579 = vadd.f32 0.0, %v5578
    %v5580 = vpop.f32.mrb[0].mxu0
    %5581 = vmatprep.mubr.bf16.mxu0 0
    %5582 = vmatmul.mubr.bf16.gmra.mrb[0].mxu0 %v5359
    %v5583 = vpop.f32.mrb[0].mxu0
    %v5584 = vadd.f32 0.0, %v5583
    %v5585 = vpop.f32.mrb[0].mxu0
    %v5586 = vpop.f32.mrb[0].mxu0
    %v5587 = vadd.f32 0.0, %v5586
    %v5588 = vpop.f32.mrb[0].mxu0
    %5589 = vmatprep.mubr.bf16.mxu0 0
    %5590 = vmatmul.mubr.bf16.gmra.mrb[0].mxu0 %v5362
    %v5591 = vpop.f32.mrb[0].mxu0
    %v5592 = vadd.f32 0.0, %v5591
    %v5593 = vpop.f32.mrb[0].mxu0
    %v5594 = vpop.f32.mrb[0].mxu0
    %v5595 = vadd.f32 0.0, %v5594
    %v5596 = vpop.f32.mrb[0].mxu0
    %5597 = vmatprep.mubr.bf16.mxu0 0
    %5598 = vmatmul.mubr.bf16.gmra.mrb[0].mxu0 %v5365
    %v5599 = vpop.f32.mrb[0].mxu0
    %v5600 = vadd.f32 0.0, %v5599
    %v5601 = vpop.f32.mrb[0].mxu0
    %v5602 = vpop.f32.mrb[0].mxu0
    %v5603 = vadd.f32 0.0, %v5602
    %v5604 = vpop.f32.mrb[0].mxu0
    %5605 = vmatprep.mubr.bf16.mxu0 0
    %5606 = vmatmul.mubr.bf16.gmra.mrb[0].mxu0 %v5368
    %v5607 = vpop.f32.mrb[0].mxu0
    %v5608 = vadd.f32 0.0, %v5607
    %v5609 = vpop.f32.mrb[0].mxu0
    %v5610 = vpop.f32.mrb[0].mxu0
    %v5611 = vadd.f32 0.0, %v5610
    %v5612 = vpop.f32.mrb[0].mxu0
    %5613 = vmatprep.mubr.bf16.mxu0 0
    %5614 = vmatmul.mubr.bf16.gmra.mrb[0].mxu0 %v5371
    %v5615 = vpop.f32.mrb[0].mxu0
    %v5616 = vadd.f32 0.0, %v5615
    %v5617 = vpop.f32.mrb[0].mxu0
    %v5618 = vpop.f32.mrb[0].mxu0
    %v5619 = vadd.f32 0.0, %v5618
    %v5620 = vpop.f32.mrb[0].mxu0
    %5621 = vmatprep.mubr.bf16.mxu0 0
    %5622 = vmatmul.mubr.bf16.gmra.mrb[0].mxu0 %v5374
    %v5623 = vpop.f32.mrb[0].mxu0
    %v5624 = vadd.f32 0.0, %v5623
    %v5625 = vpop.f32.mrb[0].mxu0
    %v5626 = vpop.f32.mrb[0].mxu0
    %v5627 = vadd.f32 0.0, %v5626
    %v5628 = vpop.f32.mrb[0].mxu0
    %5629 = vmatprep.mubr.bf16.mxu0 0
    %5630 = vmatmul.mubr.bf16.gmra.mrb[0].mxu0 %v5377
    %v5631 = vpop.f32.mrb[0].mxu0
    %v5632 = vadd.f32 0.0, %v5631
    %v5633 = vpop.f32.mrb[0].mxu0
    %v5634 = vpop.f32.mrb[0].mxu0
    %v5635 = vadd.f32 0.0, %v5634
    %v5636 = vpop.f32.mrb[0].mxu0
    %5637 = vmatprep.mubr.bf16.mxu0 0
    %5638 = vmatmul.mubr.bf16.gmra.mrb[0].mxu0 %v5380
    %v5639 = vpop.f32.mrb[0].mxu0
    %v5640 = vadd.f32 0.0, %v5639
    %v5641 = vpop.f32.mrb[0].mxu0
    %v5642 = vpop.f32.mrb[0].mxu0
    %v5643 = vadd.f32 0.0, %v5642
    %v5644 = vpop.f32.mrb[0].mxu0
    %5645 = vmatprep.mubr.bf16.mxu0 0
    %5646 = vmatmul.mubr.bf16.gmra.mrb[0].mxu0 %v5383
    %v5647 = vpop.f32.mrb[0].mxu0
    %v5648 = vadd.f32 0.0, %v5647
    %v5649 = vpop.f32.mrb[0].mxu0
    %v5650 = vpop.f32.mrb[0].mxu0
    %v5651 = vadd.f32 0.0, %v5650
    %v5652 = vpop.f32.mrb[0].mxu0
    %5653 = vmatprep.mubr.bf16.mxu0 0
    %5654 = vmatmul.mubr.bf16.gmra.mrb[0].mxu0 %v5386
    %v5655 = vpop.f32.mrb[0].mxu0
    %v5656 = vadd.f32 0.0, %v5655
    %v5657 = vpop.f32.mrb[0].mxu0
    %v5658 = vpop.f32.mrb[0].mxu0
    %v5659 = vadd.f32 0.0, %v5658
    %v5660 = vpop.f32.mrb[0].mxu0
    %5661 = vmatprep.mubr.bf16.mxu0 0
    %5662 = vmatmul.mubr.bf16.gmra.mrb[0].mxu0 %v5389
    %v5663 = vpop.f32.mrb[0].mxu0
    %v5664 = vadd.f32 0.0, %v5663
    %v5665 = vpop.f32.mrb[0].mxu0
    %v5666 = vpop.f32.mrb[0].mxu0
    %v5667 = vadd.f32 0.0, %v5666
    %v5668 = vpop.f32.mrb[0].mxu0
    %5669 = vmatprep.mubr.bf16.mxu0 0
    %5670 = vmatmul.mubr.bf16.gmra.mrb[0].mxu0 %v5392
    %v5671 = vpop.f32.mrb[0].mxu0
    %v5672 = vadd.f32 0.0, %v5671
    %v5673 = vpop.f32.mrb[0].mxu0
    %v5674 = vpop.f32.mrb[0].mxu0
    %v5675 = vadd.f32 0.0, %v5674
    %v5676 = vpop.f32.mrb[0].mxu0
    %5677 = vmatprep.mubr.bf16.mxu0 0
    %5678 = vmatmul.mubr.bf16.gmra.mrb[0].mxu0 %v5395
    %v5679 = vpop.f32.mrb[0].mxu0
    %v5680 = vadd.f32 0.0, %v5679
    %v5681 = vpop.f32.mrb[0].mxu0
    %v5682 = vpop.f32.mrb[0].mxu0
    %v5683 = vadd.f32 0.0, %v5682
    %v5684 = vpop.f32.mrb[0].mxu0
    %5685 = vmatprep.mubr.bf16.mxu0 0
    %5686 = vmatmul.mubr.bf16.gmra.mrb[0].mxu0 %v5398
    %v5687 = vpop.f32.mrb[0].mxu0
    %v5688 = vadd.f32 0.0, %v5687
    %v5689 = vpop.f32.mrb[0].mxu0
    %v5690 = vpop.f32.mrb[0].mxu0
    %v5691 = vadd.f32 0.0, %v5690
    %v5692 = vpop.f32.mrb[0].mxu0
    %5693 = vmatprep.mubr.bf16.mxu0 0
    %5694 = vmatmul.mubr.bf16.gmra.mrb[0].mxu0 %v5401
    %v5695 = vpop.f32.mrb[0].mxu0
    %v5696 = vadd.f32 0.0, %v5695
    %v5697 = vpop.f32.mrb[0].mxu0
    %v5698 = vpop.f32.mrb[0].mxu0
    %v5699 = vadd.f32 0.0, %v5698
    %v5700 = vpop.f32.mrb[0].mxu0
    %5701 = vmatprep.mubr.bf16.mxu0 0
    %5702 = vmatmul.mubr.bf16.gmra.mrb[0].mxu0 %v5404
    %v5703 = vpop.f32.mrb[0].mxu0
    %v5704 = vadd.f32 0.0, %v5703
    %v5705 = vpop.f32.mrb[0].mxu0
    %v5706 = vpop.f32.mrb[0].mxu0
    %v5707 = vadd.f32 0.0, %v5706
    %v5708 = vpop.f32.mrb[0].mxu0
    %5709 = vmatprep.mubr.bf16.mxu0 0
    %5710 = vmatmul.mubr.bf16.gmra.mrb[0].mxu0 %v5407
    %v5711 = vpop.f32.mrb[0].mxu0
    %v5712 = vadd.f32 0.0, %v5711
    %v5713 = vpop.f32.mrb[0].mxu0
    %v5714 = vpop.f32.mrb[0].mxu0
    %v5715 = vadd.f32 0.0, %v5714
    %v5716 = vpop.f32.mrb[0].mxu0
    %5717 = vmatprep.mubr.bf16.mxu0 0
    %5718 = vmatmul.mubr.bf16.gmra.mrb[0].mxu0 %v5410
    %v5719 = vpop.f32.mrb[0].mxu0
    %v5720 = vadd.f32 0.0, %v5719
    %v5721 = vpop.f32.mrb[0].mxu0
    %v5722 = vpop.f32.mrb[0].mxu0
    %v5723 = vadd.f32 0.0, %v5722
    %v5724 = vpop.f32.mrb[0].mxu0
    %5725 = vmatprep.mubr.bf16.mxu0 0
    %5726 = vmatmul.mubr.bf16.gmra.mrb[0].mxu0 %v5413
    %v5727 = vpop.f32.mrb[0].mxu0
    %v5728 = vadd.f32 0.0, %v5727
    %v5729 = vpop.f32.mrb[0].mxu0
    %v5730 = vpop.f32.mrb[0].mxu0
    %v5731 = vadd.f32 0.0, %v5730
    %v5732 = vpop.f32.mrb[0].mxu0
    %5733 = vmatprep.mubr.bf16.mxu0 0
    %5734 = vmatmul.mubr.bf16.gmra.mrb[0].mxu0 %v5416
    %v5735 = vpop.f32.mrb[0].mxu0
    %v5736 = vadd.f32 0.0, %v5735
    %v5737 = vpop.f32.mrb[0].mxu0
    %v5738 = vpop.f32.mrb[0].mxu0
    %v5739 = vadd.f32 0.0, %v5738
    %v5740 = vpop.f32.mrb[0].mxu0
    %5741 = vmatprep.mubr.bf16.mxu0 0
    %5742 = vmatmul.mubr.bf16.gmra.mrb[0].mxu0 %v5419
    %v5743 = vpop.f32.mrb[0].mxu0
    %v5744 = vadd.f32 0.0, %v5743
    %v5745 = vpop.f32.mrb[0].mxu0
    %v5746 = vpop.f32.mrb[0].mxu0
    %v5747 = vadd.f32 0.0, %v5746
    %v5748 = vpop.f32.mrb[0].mxu0
    %5749 = vmatprep.mubr.bf16.mxu0 0
    %5750 = vmatmul.mubr.bf16.gmra.mrb[0].mxu0 %v5422
    %v5751 = vpop.f32.mrb[0].mxu0
    %v5752 = vadd.f32 0.0, %v5751
    %v5753 = vpop.f32.mrb[0].mxu0
    %v5754 = vpop.f32.mrb[0].mxu0
    %v5755 = vadd.f32 0.0, %v5754
    %v5756 = vpop.f32.mrb[0].mxu0
    %5757 = vmatprep.mubr.bf16.mxu0 0
    %5758 = vmatmul.mubr.bf16.gmra.mrb[0].mxu0 %v5425
    %v5759 = vpop.f32.mrb[0].mxu0
    %v5760 = vadd.f32 0.0, %v5759
    %v5761 = vpop.f32.mrb[0].mxu0
    %v5762 = vpop.f32.mrb[0].mxu0
    %v5763 = vadd.f32 0.0, %v5762
    %v5764 = vpop.f32.mrb[0].mxu0
    %5765 = vmatprep.mubr.bf16.mxu0 0
    %5766 = vmatmul.mubr.bf16.gmra.mrb[0].mxu0 %v5428
    %v5767 = vpop.f32.mrb[0].mxu0
    %v5768 = vadd.f32 0.0, %v5767
    %v5769 = vpop.f32.mrb[0].mxu0
    %v5770 = vpop.f32.mrb[0].mxu0
    %v5771 = vadd.f32 0.0, %v5770
    %v5772 = vpop.f32.mrb[0].mxu0
    %5773 = vmatprep.mubr.bf16.mxu0 0
    %5774 = vmatmul.mubr.bf16.gmra.mrb[0].mxu0 %v5431
    %v5775 = vpop.f32.mrb[0].mxu0
    %v5776 = vadd.f32 0.0, %v5775
    %v5777 = vpop.f32.mrb[0].mxu0
    %v5778 = vpop.f32.mrb[0].mxu0
    %v5779 = vadd.f32 0.0, %v5778
    %v5780 = vpop.f32.mrb[0].mxu0
    %5781 = vmatprep.mubr.bf16.mxu0 0
    %5782 = vmatmul.mubr.bf16.gmra.mrb[0].mxu0 %v5434
    %v5783 = vpop.f32.mrb[0].mxu0
    %v5784 = vadd.f32 0.0, %v5783
    %v5785 = vpop.f32.mrb[0].mxu0
    %v5786 = vpop.f32.mrb[0].mxu0
    %v5787 = vadd.f32 0.0, %v5786
    %v5788 = vpop.f32.mrb[0].mxu0
    %5789 = vmatprep.mubr.bf16.mxu0 0
    %5790 = vmatmul.mubr.bf16.gmra.mrb[0].mxu0 %v5437
    %v5791 = vpop.f32.mrb[0].mxu0
    %v5792 = vadd.f32 0.0, %v5791
    %v5793 = vpop.f32.mrb[0].mxu0
    %v5794 = vpop.f32.mrb[0].mxu0
    %v5795 = vadd.f32 0.0, %v5794
    %v5796 = vpop.f32.mrb[0].mxu0
    %5797 = vmatprep.mubr.bf16.mxu0 0
    %5798 = vmatmul.mubr.bf16.gmra.mrb[0].mxu0 %v5440
    %v5799 = vpop.f32.mrb[0].mxu0
    %v5800 = vadd.f32 0.0, %v5799
    %v5801 = vpop.f32.mrb[0].mxu0
    %v5802 = vpop.f32.mrb[0].mxu0
    %v5803 = vpop.f32.mrb[0].mxu0
    %5804 = vdwg.mxu0
    %v5805 = vadd.f32 %v5154, %v5480
    %v5806 = vadd.f32 %v5155, %v5483
    %v5807 = vadd.f32 %v5156, %v5488
    %v5808 = vadd.f32 %v5157, %v5491
    %v5809 = vadd.f32 %v5158, %v5496
    %v5810 = vadd.f32 %v5159, %v5499
    %v5811 = vadd.f32 %v5160, %v5504
    %v5812 = vadd.f32 %v5161, %v5507
    %v5813 = vadd.f32 %v5162, %v5512
    %v5814 = vadd.f32 %v5163, %v5515
    %v5815 = vadd.f32 %v5164, %v5520
    %v5816 = vadd.f32 %v5165, %v5523
    %v5817 = vadd.f32 %v5166, %v5528
    %v5818 = vadd.f32 %v5167, %v5531
    %v5819 = vadd.f32 %v5168, %v5536
    %v5820 = vadd.f32 %v5169, %v5539
    %v5821 = vadd.f32 %v5170, %v5544
    %v5822 = vadd.f32 %v5171, %v5547
    %v5823 = vadd.f32 %v5172, %v5552
    %v5824 = vadd.f32 %v5173, %v5555
    %v5825 = vadd.f32 %v5174, %v5560
    %v5826 = vadd.f32 %v5175, %v5563
    %v5827 = vadd.f32 %v5176, %v5568
    %v5828 = vadd.f32 %v5177, %v5571
    %v5829 = vadd.f32 %v5178, %v5576
    %v5830 = vadd.f32 %v5179, %v5579
    %v5831 = vadd.f32 %v5180, %v5584
    %v5832 = vadd.f32 %v5181, %v5587
    %v5833 = vadd.f32 %v5182, %v5592
    %v5834 = vadd.f32 %v5183, %v5595
    %v5835 = vadd.f32 %v5184, %v5600
    %v5836 = vadd.f32 %v5185, %v5603
    %v5837 = vadd.f32 %v5186, %v5608
    %v5838 = vadd.f32 %v5187, %v5611
    %v5839 = vadd.f32 %v5188, %v5616
    %v5840 = vadd.f32 %v5189, %v5619
    %v5841 = vadd.f32 %v5190, %v5624
    %v5842 = vadd.f32 %v5191, %v5627
    %v5843 = vadd.f32 %v5192, %v5632
    %v5844 = vadd.f32 %v5193, %v5635
    %v5845 = vadd.f32 %v5194, %v5640
    %v5846 = vadd.f32 %v5195, %v5643
    %v5847 = vadd.f32 %v5196, %v5648
    %v5848 = vadd.f32 %v5197, %v5651
    %v5849 = vadd.f32 %v5198, %v5656
    %v5850 = vadd.f32 %v5199, %v5659
    %v5851 = vadd.f32 %v5200, %v5664
    %v5852 = vadd.f32 %v5201, %v5667
    %v5853 = vadd.f32 %v5202, %v5672
    %v5854 = vadd.f32 %v5203, %v5675
    %v5855 = vadd.f32 %v5204, %v5680
    %v5856 = vadd.f32 %v5205, %v5683
    %v5857 = vadd.f32 %v5206, %v5688
    %v5858 = vadd.f32 %v5207, %v5691
    %v5859 = vadd.f32 %v5208, %v5696
    %v5860 = vadd.f32 %v5209, %v5699
    %v5861 = vadd.f32 %v5210, %v5704
    %v5862 = vadd.f32 %v5211, %v5707
    %v5863 = vadd.f32 %v5212, %v5712
    %v5864 = vadd.f32 %v5213, %v5715
    %v5865 = vadd.f32 %v5214, %v5720
    %v5866 = vadd.f32 %v5215, %v5723
    %v5867 = vadd.f32 %v5216, %v5728
    %v5868 = vadd.f32 %v5217, %v5731
    %v5869 = vadd.f32 %v5218, %v5736
    %v5870 = vadd.f32 %v5219, %v5739
    %v5871 = vadd.f32 %v5220, %v5744
    %v5872 = vadd.f32 %v5221, %v5747
    %v5873 = vadd.f32 %v5222, %v5752
    %v5874 = vadd.f32 %v5223, %v5755
    %v5875 = vadd.f32 %v5224, %v5760
    %v5876 = vadd.f32 %v5225, %v5763
    %v5877 = vadd.f32 %v5226, %v5768
    %v5878 = vadd.f32 %v5227, %v5771
    %v5879 = vadd.f32 %v5228, %v5776
    %v5880 = vadd.f32 %v5229, %v5779
    %v5881 = vadd.f32 %v5230, %v5784
    %v5882 = vadd.f32 %v5231, %v5787
    %v5883 = vadd.f32 %v5232, %v5792
    %v5884 = vadd.f32 %v5233, %v5795
    %v5885 = vadd.f32 %v5234, %v5800
    %v5886 = vld [vmem:[%s2] sm:$0x1]
    %v5888 = vlaneseq
    %v5889 = vshrl.u32 %v5888, 7
    %v5890 = vsub.s32 0, %v5889
    %v5891 = vrot.slane %v5886, %v5890
    %v5893 = vadd.f32 %v5805, %v5891
    %v5894 = vadd.f32 %v5806, %v5891
    %v5895 = vadd.f32 %v5807, %v5891
    %v5896 = vadd.f32 %v5808, %v5891
    %v5897 = vadd.f32 %v5809, %v5891
    %v5898 = vadd.f32 %v5810, %v5891
    %v5899 = vadd.f32 %v5811, %v5891
    %v5900 = vadd.f32 %v5812, %v5891
    %v5901 = vadd.f32 %v5813, %v5891
    %v5902 = vadd.f32 %v5814, %v5891
    %v5903 = vadd.f32 %v5815, %v5891
    %v5904 = vadd.f32 %v5816, %v5891
    %v5905 = vadd.f32 %v5817, %v5891
    %v5906 = vadd.f32 %v5818, %v5891
    %v5907 = vadd.f32 %v5819, %v5891
    %v5908 = vadd.f32 %v5820, %v5891
    %v5909 = vadd.f32 %v5821, %v5891
    %v5910 = vadd.f32 %v5822, %v5891
    %v5911 = vadd.f32 %v5823, %v5891
    %v5912 = vadd.f32 %v5824, %v5891
    %v5913 = vadd.f32 %v5825, %v5891
    %v5914 = vadd.f32 %v5826, %v5891
    %v5915 = vadd.f32 %v5827, %v5891
    %v5916 = vadd.f32 %v5828, %v5891
    %v5917 = vadd.f32 %v5829, %v5891
    %v5918 = vadd.f32 %v5830, %v5891
    %v5919 = vadd.f32 %v5831, %v5891
    %v5920 = vadd.f32 %v5832, %v5891
    %v5921 = vadd.f32 %v5833, %v5891
    %v5922 = vadd.f32 %v5834, %v5891
    %v5923 = vadd.f32 %v5835, %v5891
    %v5924 = vadd.f32 %v5836, %v5891
    %v5925 = vadd.f32 %v5837, %v5891
    %v5926 = vadd.f32 %v5838, %v5891
    %v5927 = vadd.f32 %v5839, %v5891
    %v5928 = vadd.f32 %v5840, %v5891
    %v5929 = vadd.f32 %v5841, %v5891
    %v5930 = vadd.f32 %v5842, %v5891
    %v5931 = vadd.f32 %v5843, %v5891
    %v5932 = vadd.f32 %v5844, %v5891
    %v5933 = vadd.f32 %v5845, %v5891
    %v5934 = vadd.f32 %v5846, %v5891
    %v5935 = vadd.f32 %v5847, %v5891
    %v5936 = vadd.f32 %v5848, %v5891
    %v5937 = vadd.f32 %v5849, %v5891
    %v5938 = vadd.f32 %v5850, %v5891
    %v5939 = vadd.f32 %v5851, %v5891
    %v5940 = vadd.f32 %v5852, %v5891
    %v5941 = vadd.f32 %v5853, %v5891
    %v5942 = vadd.f32 %v5854, %v5891
    %v5943 = vadd.f32 %v5855, %v5891
    %v5944 = vadd.f32 %v5856, %v5891
    %v5945 = vadd.f32 %v5857, %v5891
    %v5946 = vadd.f32 %v5858, %v5891
    %v5947 = vadd.f32 %v5859, %v5891
    %v5948 = vadd.f32 %v5860, %v5891
    %v5949 = vadd.f32 %v5861, %v5891
    %v5950 = vadd.f32 %v5862, %v5891
    %v5951 = vadd.f32 %v5863, %v5891
    %v5952 = vadd.f32 %v5864, %v5891
    %v5953 = vadd.f32 %v5865, %v5891
    %v5954 = vadd.f32 %v5866, %v5891
    %v5955 = vadd.f32 %v5867, %v5891
    %v5956 = vadd.f32 %v5868, %v5891
    %v5957 = vadd.f32 %v5869, %v5891
    %v5958 = vadd.f32 %v5870, %v5891
    %v5959 = vadd.f32 %v5871, %v5891
    %v5960 = vadd.f32 %v5872, %v5891
    %v5961 = vadd.f32 %v5873, %v5891
    %v5962 = vadd.f32 %v5874, %v5891
    %v5963 = vadd.f32 %v5875, %v5891
    %v5964 = vadd.f32 %v5876, %v5891
    %v5965 = vadd.f32 %v5877, %v5891
    %v5966 = vadd.f32 %v5878, %v5891
    %v5967 = vadd.f32 %v5879, %v5891
    %v5968 = vadd.f32 %v5880, %v5891
    %v5969 = vadd.f32 %v5881, %v5891
    %v5970 = vadd.f32 %v5882, %v5891
    %v5971 = vadd.f32 %v5883, %v5891
    %v5972 = vadd.f32 %v5884, %v5891
    %v5973 = vadd.f32 %v5885, %v5891
    %v5974 = vmax.f32 %v5893, 0.0
    %v5975 = vmax.f32 %v5894, 0.0
    %v5976 = vmax.f32 %v5895, 0.0
    %v5977 = vmax.f32 %v5896, 0.0
    %v5978 = vmax.f32 %v5897, 0.0
    %v5979 = vmax.f32 %v5898, 0.0
    %v5980 = vmax.f32 %v5899, 0.0
    %v5981 = vmax.f32 %v5900, 0.0
    %v5982 = vmax.f32 %v5901, 0.0
    %v5983 = vmax.f32 %v5902, 0.0
    %v5984 = vmax.f32 %v5903, 0.0
    %v5985 = vmax.f32 %v5904, 0.0
    %v5986 = vmax.f32 %v5905, 0.0
    %v5987 = vmax.f32 %v5906, 0.0
    %v5988 = vmax.f32 %v5907, 0.0
    %v5989 = vmax.f32 %v5908, 0.0
    %v5990 = vmax.f32 %v5909, 0.0
    %v5991 = vmax.f32 %v5910, 0.0
    %v5992 = vmax.f32 %v5911, 0.0
    %v5993 = vmax.f32 %v5912, 0.0
    %v5994 = vmax.f32 %v5913, 0.0
    %v5995 = vmax.f32 %v5914, 0.0
    %v5996 = vmax.f32 %v5915, 0.0
    %v5997 = vmax.f32 %v5916, 0.0
    %v5998 = vmax.f32 %v5917, 0.0
    %v5999 = vmax.f32 %v5918, 0.0
    %v6000 = vmax.f32 %v5919, 0.0
    %v6001 = vmax.f32 %v5920, 0.0
    %v6002 = vmax.f32 %v5921, 0.0
    %v6003 = vmax.f32 %v5922, 0.0
    %v6004 = vmax.f32 %v5923, 0.0
    %v6005 = vmax.f32 %v5924, 0.0
    %v6006 = vmax.f32 %v5925, 0.0
    %v6007 = vmax.f32 %v5926, 0.0
    %v6008 = vmax.f32 %v5927, 0.0
    %v6009 = vmax.f32 %v5928, 0.0
    %v6010 = vmax.f32 %v5929, 0.0
    %v6011 = vmax.f32 %v5930, 0.0
    %v6012 = vmax.f32 %v5931, 0.0
    %v6013 = vmax.f32 %v5932, 0.0
    %v6014 = vmax.f32 %v5933, 0.0
    %v6015 = vmax.f32 %v5934, 0.0
    %v6016 = vmax.f32 %v5935, 0.0
    %v6017 = vmax.f32 %v5936, 0.0
    %v6018 = vmax.f32 %v5937, 0.0
    %v6019 = vmax.f32 %v5938, 0.0
    %v6020 = vmax.f32 %v5939, 0.0
    %v6021 = vmax.f32 %v5940, 0.0
    %v6022 = vmax.f32 %v5941, 0.0
    %v6023 = vmax.f32 %v5942, 0.0
    %v6024 = vmax.f32 %v5943, 0.0
    %v6025 = vmax.f32 %v5944, 0.0
    %v6026 = vmax.f32 %v5945, 0.0
    %v6027 = vmax.f32 %v5946, 0.0
    %v6028 = vmax.f32 %v5947, 0.0
    %v6029 = vmax.f32 %v5948, 0.0
    %v6030 = vmax.f32 %v5949, 0.0
    %v6031 = vmax.f32 %v5950, 0.0
    %v6032 = vmax.f32 %v5951, 0.0
    %v6033 = vmax.f32 %v5952, 0.0
    %v6034 = vmax.f32 %v5953, 0.0
    %v6035 = vmax.f32 %v5954, 0.0
    %v6036 = vmax.f32 %v5955, 0.0
    %v6037 = vmax.f32 %v5956, 0.0
    %v6038 = vmax.f32 %v5957, 0.0
    %v6039 = vmax.f32 %v5958, 0.0
    %v6040 = vmax.f32 %v5959, 0.0
    %v6041 = vmax.f32 %v5960, 0.0
    %v6042 = vmax.f32 %v5961, 0.0
    %v6043 = vmax.f32 %v5962, 0.0
    %v6044 = vmax.f32 %v5963, 0.0
    %v6045 = vmax.f32 %v5964, 0.0
    %v6046 = vmax.f32 %v5965, 0.0
    %v6047 = vmax.f32 %v5966, 0.0
    %v6048 = vmax.f32 %v5967, 0.0
    %v6049 = vmax.f32 %v5968, 0.0
    %v6050 = vmax.f32 %v5969, 0.0
    %v6051 = vmax.f32 %v5970, 0.0
    %v6052 = vmax.f32 %v5971, 0.0
    %v6053 = vmax.f32 %v5972, 0.0
    %v6054 = vmax.f32 %v5973, 0.0
    %v6055 = vld [vmem:[%s3] sm:$0xff]
    %v6056 = vld [vmem:[%s3 + $0x8] sm:$0xf]
    %v6059 = vcombine.high %v6055, %v6055
    %v6061 = vunpack.c.l.s4 1983009808
    %v6062 = vunpack.c.0.s8 %v6061
    %v6063 = vlaneseq
    %v6064 = vshrl.u32 %v6063, 7
    %v6065 = vsub.s32 %v6062, %v6064
    %v6066 = vrot.slane %v6055, %v6065
    %v6068 = vunpack.c.l.s4 1983009808
    %v6069 = vunpack.c.0.s8 %v6068
    %v6070 = vlaneseq
    %v6071 = vshrl.u32 %v6070, 7
    %v6072 = vsub.s32 %v6069, %v6071
    %v6073 = vrot.slane %v6059, %v6072
    %v6074 = vcombine.high %v6066, %v6066
    %v6075 = vcombine.high %v6073, %v6073
    %v6077 = vunpack.c.l.s4 1983009808
    %v6078 = vunpack.c.0.s8 %v6077
    %v6079 = vlaneseq
    %v6080 = vshrl.u32 %v6079, 7
    %v6081 = vsub.s32 %v6078, %v6080
    %v6082 = vrot.slane %v6056, %v6081
    %v6083 = vcombine.high %v6082, %v6082
    %vm6089 = vcmask 64512
    %v6090 = vsel %vm6089, %v6083, 0
    %6092 = vmatprep.subr.mxu0 0.0
    %6093 = vmatpush1.msra.mxu0 %v5974
    %6094 = vmatprep.subr.mxu0 0.0
    %6095 = vmatpush1.msra.mxu0 %v5975
    %6096 = vmatprep.subr.mxu0 0.0
    %6097 = vmatpush1.msra.mxu0 %v5976
    %6098 = vmatprep.subr.mxu0 0.0
    %6099 = vmatpush1.msra.mxu0 %v5977
    %6100 = vmatprep.subr.mxu0 0.0
    %6101 = vmatpush1.msra.mxu0 %v5978
    %6102 = vmatprep.subr.mxu0 0.0
    %6103 = vmatpush1.msra.mxu0 %v5979
    %6104 = vmatprep.subr.mxu0 0.0
    %6105 = vmatpush1.msra.mxu0 %v5980
    %6106 = vmatprep.subr.mxu0 0.0
    %6107 = vmatpush1.msra.mxu0 %v5981
    %6108 = vmatprep.subr.mxu0 0.0
    %6109 = vmatpush1.msra.mxu0 %v5982
    %6110 = vmatprep.subr.mxu0 0.0
    %6111 = vmatpush1.msra.mxu0 %v5983
    %6112 = vmatprep.subr.mxu0 0.0
    %6113 = vmatpush1.msra.mxu0 %v5984
    %6114 = vmatprep.subr.mxu0 0.0
    %6115 = vmatpush1.msra.mxu0 %v5985
    %6116 = vmatprep.subr.mxu0 0.0
    %6117 = vmatpush1.msra.mxu0 %v5986
    %6118 = vmatprep.subr.mxu0 0.0
    %6119 = vmatpush1.msra.mxu0 %v5987
    %6120 = vmatprep.subr.mxu0 0.0
    %6121 = vmatpush1.msra.mxu0 %v5988
    %6122 = vmatprep.subr.mxu0 0.0
    %6123 = vmatpush1.msra.mxu0 %v5989
    %6124 = vmatprep.subr.mxu0 0.0
    %6125 = vmatpush1.msra.mxu0 %v5990
    %6126 = vmatprep.subr.mxu0 0.0
    %6127 = vmatpush1.msra.mxu0 %v5991
    %6128 = vmatprep.subr.mxu0 0.0
    %6129 = vmatpush1.msra.mxu0 %v5992
    %6130 = vmatprep.subr.mxu0 0.0
    %6131 = vmatpush1.msra.mxu0 %v5993
    %6132 = vmatprep.subr.mxu0 0.0
    %6133 = vmatpush1.msra.mxu0 %v5994
    %6134 = vmatprep.subr.mxu0 0.0
    %6135 = vmatpush1.msra.mxu0 %v5995
    %6136 = vmatprep.subr.mxu0 0.0
    %6137 = vmatpush1.msra.mxu0 %v5996
    %6138 = vmatprep.subr.mxu0 0.0
    %6139 = vmatpush1.msra.mxu0 %v5997
    %6140 = vmatprep.subr.mxu0 0.0
    %6141 = vmatpush1.msra.mxu0 %v5998
    %6142 = vmatprep.subr.mxu0 0.0
    %6143 = vmatpush1.msra.mxu0 %v5999
    %6144 = vmatprep.subr.mxu0 0.0
    %6145 = vmatpush1.msra.mxu0 %v6000
    %6146 = vmatprep.subr.mxu0 0.0
    %6147 = vmatpush1.msra.mxu0 %v6001
    %6148 = vmatprep.subr.mxu0 0.0
    %6149 = vmatpush1.msra.mxu0 %v6002
    %6150 = vmatprep.subr.mxu0 0.0
    %6151 = vmatpush1.msra.mxu0 %v6003
    %6152 = vmatprep.subr.mxu0 0.0
    %6153 = vmatpush1.msra.mxu0 %v6004
    %6154 = vmatprep.subr.mxu0 0.0
    %6155 = vmatpush1.msra.mxu0 %v6005
    %6156 = vmatprep.mubr.f32.mxu0 %v6074
    %6157 = vmatmul.mubr.f32.gmra.mrb[0].mxu0 %v6066
    %v6158 = vpop.f32.mrb[0].mxu0
    %v6159 = vadd.f32 0.0, %v6158
    %v6160 = vpop.f32.mrb[0].mxu0
    %6161 = vdwg.mxu0
    %6162 = vmatprep.subr.mxu0 0.0
    %6163 = vmatpush1.msra.mxu0 %v6006
    %6164 = vmatprep.subr.mxu0 0.0
    %6165 = vmatpush1.msra.mxu0 %v6007
    %6166 = vmatprep.subr.mxu0 0.0
    %6167 = vmatpush1.msra.mxu0 %v6008
    %6168 = vmatprep.subr.mxu0 0.0
    %6169 = vmatpush1.msra.mxu0 %v6009
    %6170 = vmatprep.subr.mxu0 0.0
    %6171 = vmatpush1.msra.mxu0 %v6010
    %6172 = vmatprep.subr.mxu0 0.0
    %6173 = vmatpush1.msra.mxu0 %v6011
    %6174 = vmatprep.subr.mxu0 0.0
    %6175 = vmatpush1.msra.mxu0 %v6012
    %6176 = vmatprep.subr.mxu0 0.0
    %6177 = vmatpush1.msra.mxu0 %v6013
    %6178 = vmatprep.subr.mxu0 0.0
    %6179 = vmatpush1.msra.mxu0 %v6014
    %6180 = vmatprep.subr.mxu0 0.0
    %6181 = vmatpush1.msra.mxu0 %v6015
    %6182 = vmatprep.subr.mxu0 0.0
    %6183 = vmatpush1.msra.mxu0 %v6016
    %6184 = vmatprep.subr.mxu0 0.0
    %6185 = vmatpush1.msra.mxu0 %v6017
    %6186 = vmatprep.subr.mxu0 0.0
    %6187 = vmatpush1.msra.mxu0 %v6018
    %6188 = vmatprep.subr.mxu0 0.0
    %6189 = vmatpush1.msra.mxu0 %v6019
    %6190 = vmatprep.subr.mxu0 0.0
    %6191 = vmatpush1.msra.mxu0 %v6020
    %6192 = vmatprep.subr.mxu0 0.0
    %6193 = vmatpush1.msra.mxu0 %v6021
    %6194 = vmatprep.subr.mxu0 0.0
    %6195 = vmatpush1.msra.mxu0 %v6022
    %6196 = vmatprep.subr.mxu0 0.0
    %6197 = vmatpush1.msra.mxu0 %v6023
    %6198 = vmatprep.subr.mxu0 0.0
    %6199 = vmatpush1.msra.mxu0 %v6024
    %6200 = vmatprep.subr.mxu0 0.0
    %6201 = vmatpush1.msra.mxu0 %v6025
    %6202 = vmatprep.subr.mxu0 0.0
    %6203 = vmatpush1.msra.mxu0 %v6026
    %6204 = vmatprep.subr.mxu0 0.0
    %6205 = vmatpush1.msra.mxu0 %v6027
    %6206 = vmatprep.subr.mxu0 0.0
    %6207 = vmatpush1.msra.mxu0 %v6028
    %6208 = vmatprep.subr.mxu0 0.0
    %6209 = vmatpush1.msra.mxu0 %v6029
    %6210 = vmatprep.subr.mxu0 0.0
    %6211 = vmatpush1.msra.mxu0 %v6030
    %6212 = vmatprep.subr.mxu0 0.0
    %6213 = vmatpush1.msra.mxu0 %v6031
    %6214 = vmatprep.subr.mxu0 0.0
    %6215 = vmatpush1.msra.mxu0 %v6032
    %6216 = vmatprep.subr.mxu0 0.0
    %6217 = vmatpush1.msra.mxu0 %v6033
    %6218 = vmatprep.subr.mxu0 0.0
    %6219 = vmatpush1.msra.mxu0 %v6034
    %6220 = vmatprep.subr.mxu0 0.0
    %6221 = vmatpush1.msra.mxu0 %v6035
    %6222 = vmatprep.subr.mxu0 0.0
    %6223 = vmatpush1.msra.mxu0 %v6036
    %6224 = vmatprep.subr.mxu0 0.0
    %6225 = vmatpush1.msra.mxu0 %v6037
    %6226 = vmatprep.mubr.f32.mxu0 %v6075
    %6227 = vmatmul.mubr.f32.gmra.mrb[0].mxu0 %v6073
    %v6228 = vpop.f32.mrb[0].mxu0
    %v6229 = vadd.f32 %v6159, %v6228
    %v6230 = vpop.f32.mrb[0].mxu0
    %6231 = vdwg.mxu0
    %6232 = vmatprep.subr.mxu0 0.0
    %6233 = vmatpush1.msra.mxu0 %v6038
    %6234 = vmatprep.subr.mxu0 0.0
    %6235 = vmatpush1.msra.mxu0 %v6039
    %6236 = vmatprep.subr.mxu0 0.0
    %6237 = vmatpush1.msra.mxu0 %v6040
    %6238 = vmatprep.subr.mxu0 0.0
    %6239 = vmatpush1.msra.mxu0 %v6041
    %6240 = vmatprep.subr.mxu0 0.0
    %6241 = vmatpush1.msra.mxu0 %v6042
    %6242 = vmatprep.subr.mxu0 0.0
    %6243 = vmatpush1.msra.mxu0 %v6043
    %6244 = vmatprep.subr.mxu0 0.0
    %6245 = vmatpush1.msra.mxu0 %v6044
    %6246 = vmatprep.subr.mxu0 0.0
    %6247 = vmatpush1.msra.mxu0 %v6045
    %6248 = vmatprep.subr.mxu0 0.0
    %6249 = vmatpush1.msra.mxu0 %v6046
    %6250 = vmatprep.subr.mxu0 0.0
    %6251 = vmatpush1.msra.mxu0 %v6047
    %6252 = vmatprep.subr.mxu0 0.0
    %6253 = vmatpush1.msra.mxu0 %v6048
    %6254 = vmatprep.subr.mxu0 0.0
    %6255 = vmatpush1.msra.mxu0 %v6049
    %6256 = vmatprep.subr.mxu0 0.0
    %6257 = vmatpush1.msra.mxu0 %v6050
    %6258 = vmatprep.subr.mxu0 0.0
    %6259 = vmatpush1.msra.mxu0 %v6051
    %6260 = vmatprep.subr.mxu0 0.0
    %6261 = vmatpush1.msra.mxu0 %v6052
    %6262 = vmatprep.subr.mxu0 0.0
    %6263 = vmatpush1.msra.mxu0 %v6053
    %6264 = vmatprep.subr.mxu0 0.0
    %6265 = vmatpush1.msra.mxu0 %v6054
    %6266 = vmatprep.subr.mxu0 0.0
    %6267 = vmatpush1.msra.mxu0 0.0
    %6268 = vmatprep.subr.mxu0 0.0
    %6269 = vmatpush1.msra.mxu0 0.0
    %6270 = vmatprep.subr.mxu0 0.0
    %6271 = vmatpush1.msra.mxu0 0.0
    %6272 = vmatprep.subr.mxu0 0.0
    %6273 = vmatpush1.msra.mxu0 0.0
    %6274 = vmatprep.subr.mxu0 0.0
    %6275 = vmatpush1.msra.mxu0 0.0
    %6276 = vmatprep.subr.mxu0 0.0
    %6277 = vmatpush1.msra.mxu0 0.0
    %6278 = vmatprep.subr.mxu0 0.0
    %6279 = vmatpush1.msra.mxu0 0.0
    %6280 = vmatprep.subr.mxu0 0.0
    %6281 = vmatpush1.msra.mxu0 0.0
    %6282 = vmatprep.subr.mxu0 0.0
    %6283 = vmatpush1.msra.mxu0 0.0
    %6284 = vmatprep.subr.mxu0 0.0
    %6285 = vmatpush1.msra.mxu0 0.0
    %6286 = vmatprep.subr.mxu0 0.0
    %6287 = vmatpush1.msra.mxu0 0.0
    %6288 = vmatprep.subr.mxu0 0.0
    %6289 = vmatpush1.msra.mxu0 0.0
    %6290 = vmatprep.subr.mxu0 0.0
    %6291 = vmatpush1.msra.mxu0 0.0
    %6292 = vmatprep.subr.mxu0 0.0
    %6293 = vmatpush1.msra.mxu0 0.0
    %6294 = vmatprep.subr.mxu0 0.0
    %6295 = vmatpush1.msra.mxu0 0.0
    %6296 = vmatprep.mubr.f32.mxu0 %v6090
    %6297 = vmatmul.mubr.f32.gmra.mrb[0].mxu0 %v6082
    %v6298 = vpop.f32.mrb[0].mxu0
    %v6299 = vadd.f32 %v6229, %v6298
    %v6300 = vpop.f32.mrb[0].mxu0
    %6301 = vdwg.mxu0
    %v6302 = vld [vmem:[%s4] sm:$0xff]
    %v6303 = vld [vmem:[%s4 + $0x8] sm:$0xff]
    %v6304 = vld [vmem:[%s4 + $0x10] sm:$0xff]
    %v6305 = vld [vmem:[%s4 + $0x18] sm:$0xff]
    %v6306 = vld [vmem:[%s4 + $0x20] sm:$0xff]
    %v6307 = vld [vmem:[%s4 + $0x28] sm:$0xff]
    %v6308 = vld [vmem:[%s4 + $0x30] sm:$0xff]
    %v6309 = vld [vmem:[%s4 + $0x38] sm:$0xff]
    %v6310 = vld [vmem:[%s4 + $0x40] sm:$0xff]
    %v6311 = vld [vmem:[%s4 + $0x48] sm:$0xff]
    %v6312 = vld [vmem:[%s4 + $0x50] sm:$0xff]
    %v6313 = vld [vmem:[%s4 + $0x58] sm:$0xff]
    %v6314 = vld [vmem:[%s4 + $0x60] sm:$0xff]
    %v6315 = vld [vmem:[%s4 + $0x68] sm:$0xff]
    %v6316 = vld [vmem:[%s4 + $0x70] sm:$0xff]
    %v6317 = vld [vmem:[%s4 + $0x78] sm:$0xff]
    %v6318 = vld [vmem:[%s5] sm:$0x1]
    %v6320 = vlaneseq
    %v6321 = vshrl.u32 %v6320, 7
    %v6322 = vsub.s32 0, %v6321
    %v6323 = vrot.slane %v6318, %v6322
    %6325 = vmatprep.subr.mxu0 0.0
    %6326 = vmatpush1.msra.mxu0 %v6302
    %6327 = vmatprep.subr.mxu0 0.0
    %6328 = vmatpush1.msra.mxu0 %v6303
    %6329 = vmatprep.subr.mxu0 0.0
    %6330 = vmatpush1.msra.mxu0 %v6304
    %6331 = vmatprep.subr.mxu0 0.0
    %6332 = vmatpush1.msra.mxu0 %v6305
    %6333 = vmatprep.subr.mxu0 0.0
    %6334 = vmatpush1.msra.mxu0 %v6306
    %6335 = vmatprep.subr.mxu0 0.0
    %6336 = vmatpush1.msra.mxu0 %v6307
    %6337 = vmatprep.subr.mxu0 0.0
    %6338 = vmatpush1.msra.mxu0 %v6308
    %6339 = vmatprep.subr.mxu0 0.0
    %6340 = vmatpush1.msra.mxu0 %v6309
    %6341 = vmatprep.subr.mxu0 0.0
    %6342 = vmatpush1.msra.mxu0 %v6310
    %6343 = vmatprep.subr.mxu0 0.0
    %6344 = vmatpush1.msra.mxu0 %v6311
    %6345 = vmatprep.subr.mxu0 0.0
    %6346 = vmatpush1.msra.mxu0 %v6312
    %6347 = vmatprep.subr.mxu0 0.0
    %6348 = vmatpush1.msra.mxu0 %v6313
    %6349 = vmatprep.subr.mxu0 0.0
    %6350 = vmatpush1.msra.mxu0 %v6314
    %6351 = vmatprep.subr.mxu0 0.0
    %6352 = vmatpush1.msra.mxu0 %v6315
    %6353 = vmatprep.subr.mxu0 0.0
    %6354 = vmatpush1.msra.mxu0 %v6316
    %6355 = vmatprep.subr.mxu0 0.0
    %6356 = vmatpush1.msra.mxu0 %v6317
    %6357 = vmatprep.subr.mxu0 0.0
    %6358 = vmatpush1.msra.mxu0 0.0
    %6359 = vmatprep.subr.mxu0 0.0
    %6360 = vmatpush1.msra.mxu0 0.0
    %6361 = vmatprep.subr.mxu0 0.0
    %6362 = vmatpush1.msra.mxu0 0.0
    %6363 = vmatprep.subr.mxu0 0.0
    %6364 = vmatpush1.msra.mxu0 0.0
    %6365 = vmatprep.subr.mxu0 0.0
    %6366 = vmatpush1.msra.mxu0 0.0
    %6367 = vmatprep.subr.mxu0 0.0
    %6368 = vmatpush1.msra.mxu0 0.0
    %6369 = vmatprep.subr.mxu0 0.0
    %6370 = vmatpush1.msra.mxu0 0.0
    %6371 = vmatprep.subr.mxu0 0.0
    %6372 = vmatpush1.msra.mxu0 0.0
    %6373 = vmatprep.subr.mxu0 0.0
    %6374 = vmatpush1.msra.mxu0 0.0
    %6375 = vmatprep.subr.mxu0 0.0
    %6376 = vmatpush1.msra.mxu0 0.0
    %6377 = vmatprep.subr.mxu0 0.0
    %6378 = vmatpush1.msra.mxu0 0.0
    %6379 = vmatprep.subr.mxu0 0.0
    %6380 = vmatpush1.msra.mxu0 0.0
    %6381 = vmatprep.subr.mxu0 0.0
    %6382 = vmatpush1.msra.mxu0 0.0
    %6383 = vmatprep.subr.mxu0 0.0
    %6384 = vmatpush1.msra.mxu0 0.0
    %6385 = vmatprep.subr.mxu0 0.0
    %6386 = vmatpush1.msra.mxu0 0.0
    %6387 = vmatprep.subr.mxu0 0.0
    %6388 = vmatpush1.msra.mxu0 0.0
    %6389 = vmatprep.mubr.f32.mxu0 0.0
    %6390 = vmatmul.mubr.f32.gmra.mrb[0].mxu0 %v6299
    %v6391 = vpop.f32.mrb[0].mxu0
    %v6392 = vadd.f32 %v6323, %v6391
    %v6393 = vpop.f32.mrb[0].mxu0
    %6394 = vdwg.mxu0
    %6395 = vst [vmem:[#allocation2] sm:$0x3] %v6392
    // Predicated region
    $region26: #{tpu_custom_call.1} parent=1 // pred_check
      _
    $region27: #{tpu_custom_call.1} parent=1 // pred_check_branch
      %6397 = sbr.rel (0) target = $region29
    $region28: #{tpu_custom_call.1} parent=1 // pred_region
      %s6399 = ssub.s32 32, 32
      %6400 = vsyncadd [#allocation3], %s6399
      %s6402 = sshll.u32 [#allocation2], 4
      %s6403 = int_to_ptr.vmem [resolvable:$true] %s6402
      %6405 = dma.vmem_to_hbm [thread:$0]  %s6403, 32, %s6, [#allocation3]
    $region29: #{tpu_custom_call.1} parent=1 // pred_fallthru
      _
    // Predicated region
    $region30: #{tpu_custom_call.1} parent=1 // pred_check
      _
    $region31: #{tpu_custom_call.1} parent=1 // pred_check_branch
      %6407 = sbr.rel (0) target = $region33
    $region32: #{tpu_custom_call.1} parent=1 // pred_region
      %6408 = dma.done [#allocation3], 32
    $region33: #{tpu_custom_call.1} parent=1 // pred_fallthru
      _
    %6409 = vsyncpa [#allocation3], 1

</llo_original>
